<compile_context>
chip_gen: v7x
topology: tpu7x:2x2x1
jax: 0.10.0
libtpu: 0.0.40
codegen_flags: <defaults>
</compile_context>

<pallas_src>
from functools import partial

import numpy as np

import jax
import jax.numpy as jnp
from jax import lax
from jax.experimental import pallas as pl
from jax.experimental.pallas import tpu as pltpu

BN_EPS = 1e-5

# Set to jnp.bfloat16 on v6e/v7x for ~2x MXU rate and half the activation bytes
# (all BN / rsqrt math stays f32).  f32 keeps exact parity with the reference.
MXU_DTYPE = jnp.float32


def _resblock_kernel(xe_ref, mask_ref, w1_ref, b1_ref, g1_ref, be1_ref,
                     w2_ref, b2_ref, g2_ref, be2_ref, out_ref,
                     *, C, Wp, G, L_out, n_valid):
    """Fused residual block on a channel-major flat-padded layout.

    xe_ref  : (C, L_out + 4G)  zero-padded input, flattened spatial on lanes,
              extended by 2G zeros on each end so every tap is an in-bounds slice.
    mask_ref: (1, L_out + 2G)  1.0 at real interior pixels, 0.0 elsewhere.
    w*_ref  : (9, C, C)        per-tap weights, w[k, c_out, c_in], k = dy*3 + dx.
    b*/g*/be*: (C, 1)          conv bias / BN gamma / BN beta.
    out_ref : (C, L_out)       output on the flat padded layout (interior valid).
    """
    f32 = jnp.float32
    taps = [dy * Wp + dx for dy in (-1, 0, 1) for dx in (-1, 0, 1)]

    def conv3x3(src, width, w_ref, b_ref):
        # src: (C, width + 2G) value.  Each 3x3 tap is a constant lane offset ->
        # static slice + one MXU matmul (C_out, C_in) @ (C_in, width).
        acc = None
        for k, t in enumerate(taps):
            slab = src[:, G + t:G + t + width].astype(MXU_DTYPE)
            w_tap = w_ref[k].astype(MXU_DTYPE)                     # (C_out, C_in)
            part = jnp.dot(w_tap, slab, preferred_element_type=jnp.float32)
            acc = part if acc is None else acc + part
        return acc + b_ref[...]

    def batchnorm(y, msk, g_ref, be_ref):
        # Training-mode BN over the masked (interior) positions, biased variance,
        # single fused stats pass: var = E[y^2] - mean^2, accumulated in f32.
        cnt = f32(n_valid)
        ym = y * msk
        s = jnp.sum(ym, axis=1, keepdims=True)                     # (C, 1)
        q = jnp.sum(ym * y, axis=1, keepdims=True)                 # (C, 1)
        mean = s / cnt
        var = q / cnt - mean * mean
        inv = lax.rsqrt(var + BN_EPS)
        return (y - mean) * (inv * g_ref[...]) + be_ref[...]

    mask1 = mask_ref[...]                                          # (1, L_out+2G)
    mask0 = mask1[:, G:G + L_out]                                  # (1, L_out)

    xe = xe_ref[...].astype(f32)                                   # (C, L_out+4G)

    # conv1 -> bn1 -> relu  (width shrinks by 2G per conv)
    y1 = conv3x3(xe, L_out + 2 * G, w1_ref, b1_ref)                # (C, L_out+2G)
    y1 = jnp.maximum(batchnorm(y1, mask1, g1_ref, be1_ref), 0.0) * mask1

    # conv2 on the masked intermediate (pad ring is exactly zero again)
    y2 = conv3x3(y1, L_out, w2_ref, b2_ref)                        # (C, L_out)

    # residual add -> bn2 -> relu
    x_c = xe[:, 2 * G:2 * G + L_out]                               # original x
    out = jnp.maximum(batchnorm(x_c + y2, mask0, g2_ref, be2_ref), 0.0)
    out_ref[...] = out.astype(out_ref.dtype)


def resnet_block_forward(x_nchw, params):
    """params = (w1, b1, g1, be1, w2, b2, g2, be2); conv weights in HWIO (3,3,C,C)."""
    w1, b1, g1, be1, w2, b2, g2, be2 = params
    N, C, H, W = x_nchw.shape
    Hp, Wp = H + 2, W + 2
    G = Wp + 1                        # max |lane shift| of a 3x3 tap, flat layout
    L = N * Hp * Wp                   # flat padded spatial length (output width)
    L1 = L + 2 * G                    # conv1 output width
    L2 = L + 4 * G                    # kernel input width

    # One fused XLA layout op: NCHW -> zero-padded, channel-major, flattened
    # spatial (lane-dense), extended by 2G zeros at both ends.
    xp = jnp.pad(x_nchw.astype(jnp.float32), ((0, 0), (0, 0), (1, 1), (1, 1)))
    xf = jnp.transpose(xp, (1, 0, 2, 3)).reshape(C, L)
    xe = jnp.pad(xf, ((0, 0), (2 * G, 2 * G)))                     # (C, L2)

    # Static interior mask (host-side numpy; tiny, reused for both BNs).
    m = np.zeros((N, Hp, Wp), np.float32)
    m[:, 1:H + 1, 1:W + 1] = 1.0
    mask1 = np.zeros((1, L1), np.float32)
    mask1[0, G:G + L] = m.reshape(-1)
    mask1 = jnp.asarray(mask1)

    # Per-tap weight matrices w[k, c_out, c_in], k = dy*3 + dx (from HWIO).
    to_taps = lambda w: jnp.transpose(
        w.reshape(9, C, C), (0, 2, 1)).astype(jnp.float32)
    as_col = lambda v: v.reshape(C, 1).astype(jnp.float32)

    kern = partial(_resblock_kernel, C=C, Wp=Wp, G=G, L_out=L, n_valid=N * H * W)
    vspec = pl.BlockSpec(memory_space=pltpu.MemorySpace.VMEM)

    flops = int(2 * (2 * 9 * C * C * N * H * W) + 12 * C * L)      # convs + BN/ReLU
    bytes_accessed = int(4 * (C * L2 + 2 * 9 * C * C + 8 * C + L1 + C * L))

    out_flat = pl.pallas_call(
        kern,
        out_shape=jax.ShapeDtypeStruct((C, L), jnp.float32),
        in_specs=[vspec] * 10,
        out_specs=vspec,
        cost_estimate=pl.CostEstimate(flops=flops,
                                      transcendentals=2 * C,
                                      bytes_accessed=bytes_accessed),
    )(xe, mask1, to_taps(w1), as_col(b1), as_col(g1), as_col(be1),
      to_taps(w2), as_col(b2), as_col(g2), as_col(be2))

    # Flat padded layout -> NCHW (interior pixels only).
    out = out_flat.reshape(C, N, Hp, Wp)[:, :, 1:H + 1, 1:W + 1]
    return jnp.transpose(out, (1, 0, 2, 3))


def reference_forward(x_nchw, params):
    """Pure-JAX reference mirroring the PyTorch module (training-mode BN)."""
    w1, b1, g1, be1, w2, b2, g2, be2 = params
    x = jnp.transpose(x_nchw, (0, 2, 3, 1)).astype(jnp.float32)

    def conv(h, w, b):
        return lax.conv_general_dilated(
            h, w, window_strides=(1, 1), padding='SAME',
            dimension_numbers=('NHWC', 'HWIO', 'NHWC')) + b

    def bn(h, g, bt):
        mu = h.mean(axis=(0, 1, 2))
        v = ((h - mu) ** 2).mean(axis=(0, 1, 2))
        return (h - mu) * lax.rsqrt(v + BN_EPS) * g + bt

    y = jax.nn.relu(bn(conv(x, w1, b1), g1, be1))
    y = conv(y, w2, b2)
    y = jax.nn.relu(bn(x + y, g2, be2))
    return jnp.transpose(y, (0, 3, 1, 2))


if __name__ == "__main__":
    N, C, H, W = 2, 4, 16, 16
    ks = jax.random.split(jax.random.PRNGKey(0), 9)

    x = jax.random.normal(ks[0], (N, C, H, W), jnp.float32)
    # Deterministic synthetic parameters (conv weights in HWIO = (3,3,Cin,Cout)).
    w1 = 0.2 * jax.random.normal(ks[1], (3, 3, C, C), jnp.float32)
    b1 = 0.1 * jax.random.normal(ks[2], (C,), jnp.float32)
    w2 = 0.2 * jax.random.normal(ks[3], (3, 3, C, C), jnp.float32)
    b2 = 0.1 * jax.random.normal(ks[4], (C,), jnp.float32)
    g1 = 1.0 + 0.1 * jax.random.normal(ks[5], (C,), jnp.float32)
    be1 = 0.1 * jax.random.normal(ks[6], (C,), jnp.float32)
    g2 = 1.0 + 0.1 * jax.random.normal(ks[7], (C,), jnp.float32)
    be2 = 0.1 * jax.random.normal(ks[8], (C,), jnp.float32)
    params = (w1, b1, g1, be1, w2, b2, g2, be2)

    out = jax.block_until_ready(resnet_block_forward(x, params))
    ref = jax.block_until_ready(reference_forward(x, params))

    assert out.shape == (N, C, H, W), out.shape
    err = float(jnp.max(jnp.abs(out - ref)))
    if not jnp.allclose(out, ref, atol=1e-4, rtol=1e-4):
        raise AssertionError(f"Pallas kernel mismatch vs reference, max abs err = {err}")
    print("KERNEL_OK")
</pallas_src>

<mosaic_0001>
module attributes {stable_mosaic.version = 11 : i64} {
  func.func @_resblock_kernel(%arg0: memref<4x724xf32, #tpu.memory_space<vmem>>, %arg1: memref<1x686xf32, #tpu.memory_space<vmem>>, %arg2: memref<9x4x4xf32, #tpu.memory_space<vmem>>, %arg3: memref<4x1xf32, #tpu.memory_space<vmem>>, %arg4: memref<4x1xf32, #tpu.memory_space<vmem>>, %arg5: memref<4x1xf32, #tpu.memory_space<vmem>>, %arg6: memref<9x4x4xf32, #tpu.memory_space<vmem>>, %arg7: memref<4x1xf32, #tpu.memory_space<vmem>>, %arg8: memref<4x1xf32, #tpu.memory_space<vmem>>, %arg9: memref<4x1xf32, #tpu.memory_space<vmem>>, %arg10: memref<4x648xf32, #tpu.memory_space<vmem>>) attributes {dimension_semantics = [], scalar_prefetch = 0 : i64, scratch_operands = 0 : i64, tpu.core_type = #tpu.core_type<tc>} {
    %c0 = arith.constant 0 : index
    %c0_0 = arith.constant 0 : index
    %0 = vector.load %arg1[%c0, %c0_0] : memref<1x686xf32, #tpu.memory_space<vmem>>, vector<1x686xf32>
    %1 = vector.extract_strided_slice %0 {offsets = [0, 19], sizes = [1, 648], strides = [1, 1]} : vector<1x686xf32> to vector<1x648xf32>
    %c0_1 = arith.constant 0 : index
    %c0_2 = arith.constant 0 : index
    %2 = vector.load %arg0[%c0_1, %c0_2] : memref<4x724xf32, #tpu.memory_space<vmem>>, vector<4x724xf32>
    %3 = vector.extract_strided_slice %2 {offsets = [0, 0], sizes = [4, 686], strides = [1, 1]} : vector<4x724xf32> to vector<4x686xf32>
    %c0_3 = arith.constant 0 : index
    %c0_4 = arith.constant 0 : index
    %c0_5 = arith.constant 0 : index
    %4 = vector.load %arg2[%c0_3, %c0_4, %c0_5] : memref<9x4x4xf32, #tpu.memory_space<vmem>>, vector<1x4x4xf32>
    %5 = vector.shape_cast %4 : vector<1x4x4xf32> to vector<4x4xf32>
    %cst = arith.constant dense<0.000000e+00> : vector<4x686xf32>
    %6 = tpu.matmul %5, %3, %cst {dimension_numbers = #tpu.dot_dimension_numbers<[1], [0], [0], [1], [0, 0, 1, 1], [], []>} : vector<4x4xf32>, vector<4x686xf32>, vector<4x686xf32> -> vector<4x686xf32>
    %7 = vector.extract_strided_slice %2 {offsets = [0, 1], sizes = [4, 686], strides = [1, 1]} : vector<4x724xf32> to vector<4x686xf32>
    %c1 = arith.constant 1 : index
    %c0_6 = arith.constant 0 : index
    %c0_7 = arith.constant 0 : index
    %8 = vector.load %arg2[%c1, %c0_6, %c0_7] : memref<9x4x4xf32, #tpu.memory_space<vmem>>, vector<1x4x4xf32>
    %9 = vector.shape_cast %8 : vector<1x4x4xf32> to vector<4x4xf32>
    %cst_8 = arith.constant dense<0.000000e+00> : vector<4x686xf32>
    %10 = tpu.matmul %9, %7, %cst_8 {dimension_numbers = #tpu.dot_dimension_numbers<[1], [0], [0], [1], [0, 0, 1, 1], [], []>} : vector<4x4xf32>, vector<4x686xf32>, vector<4x686xf32> -> vector<4x686xf32>
    %11 = arith.addf %6, %10 : vector<4x686xf32>
    %12 = vector.extract_strided_slice %2 {offsets = [0, 2], sizes = [4, 686], strides = [1, 1]} : vector<4x724xf32> to vector<4x686xf32>
    %c2 = arith.constant 2 : index
    %c0_9 = arith.constant 0 : index
    %c0_10 = arith.constant 0 : index
    %13 = vector.load %arg2[%c2, %c0_9, %c0_10] : memref<9x4x4xf32, #tpu.memory_space<vmem>>, vector<1x4x4xf32>
    %14 = vector.shape_cast %13 : vector<1x4x4xf32> to vector<4x4xf32>
    %cst_11 = arith.constant dense<0.000000e+00> : vector<4x686xf32>
    %15 = tpu.matmul %14, %12, %cst_11 {dimension_numbers = #tpu.dot_dimension_numbers<[1], [0], [0], [1], [0, 0, 1, 1], [], []>} : vector<4x4xf32>, vector<4x686xf32>, vector<4x686xf32> -> vector<4x686xf32>
    %16 = arith.addf %11, %15 : vector<4x686xf32>
    %17 = vector.extract_strided_slice %2 {offsets = [0, 18], sizes = [4, 686], strides = [1, 1]} : vector<4x724xf32> to vector<4x686xf32>
    %c3 = arith.constant 3 : index
    %c0_12 = arith.constant 0 : index
    %c0_13 = arith.constant 0 : index
    %18 = vector.load %arg2[%c3, %c0_12, %c0_13] : memref<9x4x4xf32, #tpu.memory_space<vmem>>, vector<1x4x4xf32>
    %19 = vector.shape_cast %18 : vector<1x4x4xf32> to vector<4x4xf32>
    %cst_14 = arith.constant dense<0.000000e+00> : vector<4x686xf32>
    %20 = tpu.matmul %19, %17, %cst_14 {dimension_numbers = #tpu.dot_dimension_numbers<[1], [0], [0], [1], [0, 0, 1, 1], [], []>} : vector<4x4xf32>, vector<4x686xf32>, vector<4x686xf32> -> vector<4x686xf32>
    %21 = arith.addf %16, %20 : vector<4x686xf32>
    %22 = vector.extract_strided_slice %2 {offsets = [0, 19], sizes = [4, 686], strides = [1, 1]} : vector<4x724xf32> to vector<4x686xf32>
    %c4 = arith.constant 4 : index
    %c0_15 = arith.constant 0 : index
    %c0_16 = arith.constant 0 : index
    %23 = vector.load %arg2[%c4, %c0_15, %c0_16] : memref<9x4x4xf32, #tpu.memory_space<vmem>>, vector<1x4x4xf32>
    %24 = vector.shape_cast %23 : vector<1x4x4xf32> to vector<4x4xf32>
    %cst_17 = arith.constant dense<0.000000e+00> : vector<4x686xf32>
    %25 = tpu.matmul %24, %22, %cst_17 {dimension_numbers = #tpu.dot_dimension_numbers<[1], [0], [0], [1], [0, 0, 1, 1], [], []>} : vector<4x4xf32>, vector<4x686xf32>, vector<4x686xf32> -> vector<4x686xf32>
    %26 = arith.addf %21, %25 : vector<4x686xf32>
    %27 = vector.extract_strided_slice %2 {offsets = [0, 20], sizes = [4, 686], strides = [1, 1]} : vector<4x724xf32> to vector<4x686xf32>
    %c5 = arith.constant 5 : index
    %c0_18 = arith.constant 0 : index
    %c0_19 = arith.constant 0 : index
    %28 = vector.load %arg2[%c5, %c0_18, %c0_19] : memref<9x4x4xf32, #tpu.memory_space<vmem>>, vector<1x4x4xf32>
    %29 = vector.shape_cast %28 : vector<1x4x4xf32> to vector<4x4xf32>
    %cst_20 = arith.constant dense<0.000000e+00> : vector<4x686xf32>
    %30 = tpu.matmul %29, %27, %cst_20 {dimension_numbers = #tpu.dot_dimension_numbers<[1], [0], [0], [1], [0, 0, 1, 1], [], []>} : vector<4x4xf32>, vector<4x686xf32>, vector<4x686xf32> -> vector<4x686xf32>
    %31 = arith.addf %26, %30 : vector<4x686xf32>
    %32 = vector.extract_strided_slice %2 {offsets = [0, 36], sizes = [4, 686], strides = [1, 1]} : vector<4x724xf32> to vector<4x686xf32>
    %c6 = arith.constant 6 : index
    %c0_21 = arith.constant 0 : index
    %c0_22 = arith.constant 0 : index
    %33 = vector.load %arg2[%c6, %c0_21, %c0_22] : memref<9x4x4xf32, #tpu.memory_space<vmem>>, vector<1x4x4xf32>
    %34 = vector.shape_cast %33 : vector<1x4x4xf32> to vector<4x4xf32>
    %cst_23 = arith.constant dense<0.000000e+00> : vector<4x686xf32>
    %35 = tpu.matmul %34, %32, %cst_23 {dimension_numbers = #tpu.dot_dimension_numbers<[1], [0], [0], [1], [0, 0, 1, 1], [], []>} : vector<4x4xf32>, vector<4x686xf32>, vector<4x686xf32> -> vector<4x686xf32>
    %36 = arith.addf %31, %35 : vector<4x686xf32>
    %37 = vector.extract_strided_slice %2 {offsets = [0, 37], sizes = [4, 686], strides = [1, 1]} : vector<4x724xf32> to vector<4x686xf32>
    %c7 = arith.constant 7 : index
    %c0_24 = arith.constant 0 : index
    %c0_25 = arith.constant 0 : index
    %38 = vector.load %arg2[%c7, %c0_24, %c0_25] : memref<9x4x4xf32, #tpu.memory_space<vmem>>, vector<1x4x4xf32>
    %39 = vector.shape_cast %38 : vector<1x4x4xf32> to vector<4x4xf32>
    %cst_26 = arith.constant dense<0.000000e+00> : vector<4x686xf32>
    %40 = tpu.matmul %39, %37, %cst_26 {dimension_numbers = #tpu.dot_dimension_numbers<[1], [0], [0], [1], [0, 0, 1, 1], [], []>} : vector<4x4xf32>, vector<4x686xf32>, vector<4x686xf32> -> vector<4x686xf32>
    %41 = arith.addf %36, %40 : vector<4x686xf32>
    %42 = vector.extract_strided_slice %2 {offsets = [0, 38], sizes = [4, 686], strides = [1, 1]} : vector<4x724xf32> to vector<4x686xf32>
    %c8 = arith.constant 8 : index
    %c0_27 = arith.constant 0 : index
    %c0_28 = arith.constant 0 : index
    %43 = vector.load %arg2[%c8, %c0_27, %c0_28] : memref<9x4x4xf32, #tpu.memory_space<vmem>>, vector<1x4x4xf32>
    %44 = vector.shape_cast %43 : vector<1x4x4xf32> to vector<4x4xf32>
    %cst_29 = arith.constant dense<0.000000e+00> : vector<4x686xf32>
    %45 = tpu.matmul %44, %42, %cst_29 {dimension_numbers = #tpu.dot_dimension_numbers<[1], [0], [0], [1], [0, 0, 1, 1], [], []>} : vector<4x4xf32>, vector<4x686xf32>, vector<4x686xf32> -> vector<4x686xf32>
    %46 = arith.addf %41, %45 : vector<4x686xf32>
    %c0_30 = arith.constant 0 : index
    %c0_31 = arith.constant 0 : index
    %47 = vector.load %arg3[%c0_30, %c0_31] : memref<4x1xf32, #tpu.memory_space<vmem>>, vector<4x1xf32>
    %48 = vector.broadcast %47 : vector<4x1xf32> to vector<4x686xf32>
    %49 = arith.addf %46, %48 : vector<4x686xf32>
    %50 = vector.broadcast %0 : vector<1x686xf32> to vector<4x686xf32>
    %51 = arith.mulf %49, %50 : vector<4x686xf32>
    %cst_32 = arith.constant dense<0.000000e+00> : vector<4xf32>
    %52 = vector.multi_reduction <add>, %51, %cst_32 [1] : vector<4x686xf32> to vector<4xf32>
    %53 = vector.shape_cast %52 : vector<4xf32> to vector<4x1xf32>
    %54 = arith.mulf %51, %49 : vector<4x686xf32>
    %cst_33 = arith.constant dense<0.000000e+00> : vector<4xf32>
    %55 = vector.multi_reduction <add>, %54, %cst_33 [1] : vector<4x686xf32> to vector<4xf32>
    %56 = vector.shape_cast %55 : vector<4xf32> to vector<4x1xf32>
    %cst_34 = arith.constant 5.120000e+02 : f32
    %57 = vector.broadcast %cst_34 : f32 to vector<4x1xf32>
    %58 = arith.divf %53, %57 : vector<4x1xf32>
    %cst_35 = arith.constant 5.120000e+02 : f32
    %59 = vector.broadcast %cst_35 : f32 to vector<4x1xf32>
    %60 = arith.divf %56, %59 : vector<4x1xf32>
    %61 = arith.mulf %58, %58 : vector<4x1xf32>
    %62 = arith.subf %60, %61 : vector<4x1xf32>
    %cst_36 = arith.constant 9.99999974E-6 : f32
    %63 = vector.broadcast %cst_36 : f32 to vector<4x1xf32>
    %64 = arith.addf %62, %63 : vector<4x1xf32>
    %65 = math.rsqrt %64 : vector<4x1xf32>
    %66 = vector.broadcast %58 : vector<4x1xf32> to vector<4x686xf32>
    %67 = arith.subf %49, %66 : vector<4x686xf32>
    %c0_37 = arith.constant 0 : index
    %c0_38 = arith.constant 0 : index
    %68 = vector.load %arg4[%c0_37, %c0_38] : memref<4x1xf32, #tpu.memory_space<vmem>>, vector<4x1xf32>
    %69 = arith.mulf %65, %68 : vector<4x1xf32>
    %70 = vector.broadcast %69 : vector<4x1xf32> to vector<4x686xf32>
    %71 = arith.mulf %67, %70 : vector<4x686xf32>
    %c0_39 = arith.constant 0 : index
    %c0_40 = arith.constant 0 : index
    %72 = vector.load %arg5[%c0_39, %c0_40] : memref<4x1xf32, #tpu.memory_space<vmem>>, vector<4x1xf32>
    %73 = vector.broadcast %72 : vector<4x1xf32> to vector<4x686xf32>
    %74 = arith.addf %71, %73 : vector<4x686xf32>
    %cst_41 = arith.constant 0.000000e+00 : f32
    %75 = vector.broadcast %cst_41 : f32 to vector<4x686xf32>
    %76 = arith.maximumf %74, %75 : vector<4x686xf32>
    %77 = vector.broadcast %0 : vector<1x686xf32> to vector<4x686xf32>
    %78 = arith.mulf %76, %77 : vector<4x686xf32>
    %79 = vector.extract_strided_slice %78 {offsets = [0, 0], sizes = [4, 648], strides = [1, 1]} : vector<4x686xf32> to vector<4x648xf32>
    %c0_42 = arith.constant 0 : index
    %c0_43 = arith.constant 0 : index
    %c0_44 = arith.constant 0 : index
    %80 = vector.load %arg6[%c0_42, %c0_43, %c0_44] : memref<9x4x4xf32, #tpu.memory_space<vmem>>, vector<1x4x4xf32>
    %81 = vector.shape_cast %80 : vector<1x4x4xf32> to vector<4x4xf32>
    %cst_45 = arith.constant dense<0.000000e+00> : vector<4x648xf32>
    %82 = tpu.matmul %81, %79, %cst_45 {dimension_numbers = #tpu.dot_dimension_numbers<[1], [0], [0], [1], [0, 0, 1, 1], [], []>} : vector<4x4xf32>, vector<4x648xf32>, vector<4x648xf32> -> vector<4x648xf32>
    %83 = vector.extract_strided_slice %78 {offsets = [0, 1], sizes = [4, 648], strides = [1, 1]} : vector<4x686xf32> to vector<4x648xf32>
    %c1_46 = arith.constant 1 : index
    %c0_47 = arith.constant 0 : index
    %c0_48 = arith.constant 0 : index
    %84 = vector.load %arg6[%c1_46, %c0_47, %c0_48] : memref<9x4x4xf32, #tpu.memory_space<vmem>>, vector<1x4x4xf32>
    %85 = vector.shape_cast %84 : vector<1x4x4xf32> to vector<4x4xf32>
    %cst_49 = arith.constant dense<0.000000e+00> : vector<4x648xf32>
    %86 = tpu.matmul %85, %83, %cst_49 {dimension_numbers = #tpu.dot_dimension_numbers<[1], [0], [0], [1], [0, 0, 1, 1], [], []>} : vector<4x4xf32>, vector<4x648xf32>, vector<4x648xf32> -> vector<4x648xf32>
    %87 = arith.addf %82, %86 : vector<4x648xf32>
    %88 = vector.extract_strided_slice %78 {offsets = [0, 2], sizes = [4, 648], strides = [1, 1]} : vector<4x686xf32> to vector<4x648xf32>
    %c2_50 = arith.constant 2 : index
    %c0_51 = arith.constant 0 : index
    %c0_52 = arith.constant 0 : index
    %89 = vector.load %arg6[%c2_50, %c0_51, %c0_52] : memref<9x4x4xf32, #tpu.memory_space<vmem>>, vector<1x4x4xf32>
    %90 = vector.shape_cast %89 : vector<1x4x4xf32> to vector<4x4xf32>
    %cst_53 = arith.constant dense<0.000000e+00> : vector<4x648xf32>
    %91 = tpu.matmul %90, %88, %cst_53 {dimension_numbers = #tpu.dot_dimension_numbers<[1], [0], [0], [1], [0, 0, 1, 1], [], []>} : vector<4x4xf32>, vector<4x648xf32>, vector<4x648xf32> -> vector<4x648xf32>
    %92 = arith.addf %87, %91 : vector<4x648xf32>
    %93 = vector.extract_strided_slice %78 {offsets = [0, 18], sizes = [4, 648], strides = [1, 1]} : vector<4x686xf32> to vector<4x648xf32>
    %c3_54 = arith.constant 3 : index
    %c0_55 = arith.constant 0 : index
    %c0_56 = arith.constant 0 : index
    %94 = vector.load %arg6[%c3_54, %c0_55, %c0_56] : memref<9x4x4xf32, #tpu.memory_space<vmem>>, vector<1x4x4xf32>
    %95 = vector.shape_cast %94 : vector<1x4x4xf32> to vector<4x4xf32>
    %cst_57 = arith.constant dense<0.000000e+00> : vector<4x648xf32>
    %96 = tpu.matmul %95, %93, %cst_57 {dimension_numbers = #tpu.dot_dimension_numbers<[1], [0], [0], [1], [0, 0, 1, 1], [], []>} : vector<4x4xf32>, vector<4x648xf32>, vector<4x648xf32> -> vector<4x648xf32>
    %97 = arith.addf %92, %96 : vector<4x648xf32>
    %98 = vector.extract_strided_slice %78 {offsets = [0, 19], sizes = [4, 648], strides = [1, 1]} : vector<4x686xf32> to vector<4x648xf32>
    %c4_58 = arith.constant 4 : index
    %c0_59 = arith.constant 0 : index
    %c0_60 = arith.constant 0 : index
    %99 = vector.load %arg6[%c4_58, %c0_59, %c0_60] : memref<9x4x4xf32, #tpu.memory_space<vmem>>, vector<1x4x4xf32>
    %100 = vector.shape_cast %99 : vector<1x4x4xf32> to vector<4x4xf32>
    %cst_61 = arith.constant dense<0.000000e+00> : vector<4x648xf32>
    %101 = tpu.matmul %100, %98, %cst_61 {dimension_numbers = #tpu.dot_dimension_numbers<[1], [0], [0], [1], [0, 0, 1, 1], [], []>} : vector<4x4xf32>, vector<4x648xf32>, vector<4x648xf32> -> vector<4x648xf32>
    %102 = arith.addf %97, %101 : vector<4x648xf32>
    %103 = vector.extract_strided_slice %78 {offsets = [0, 20], sizes = [4, 648], strides = [1, 1]} : vector<4x686xf32> to vector<4x648xf32>
    %c5_62 = arith.constant 5 : index
    %c0_63 = arith.constant 0 : index
    %c0_64 = arith.constant 0 : index
    %104 = vector.load %arg6[%c5_62, %c0_63, %c0_64] : memref<9x4x4xf32, #tpu.memory_space<vmem>>, vector<1x4x4xf32>
    %105 = vector.shape_cast %104 : vector<1x4x4xf32> to vector<4x4xf32>
    %cst_65 = arith.constant dense<0.000000e+00> : vector<4x648xf32>
    %106 = tpu.matmul %105, %103, %cst_65 {dimension_numbers = #tpu.dot_dimension_numbers<[1], [0], [0], [1], [0, 0, 1, 1], [], []>} : vector<4x4xf32>, vector<4x648xf32>, vector<4x648xf32> -> vector<4x648xf32>
    %107 = arith.addf %102, %106 : vector<4x648xf32>
    %108 = vector.extract_strided_slice %78 {offsets = [0, 36], sizes = [4, 648], strides = [1, 1]} : vector<4x686xf32> to vector<4x648xf32>
    %c6_66 = arith.constant 6 : index
    %c0_67 = arith.constant 0 : index
    %c0_68 = arith.constant 0 : index
    %109 = vector.load %arg6[%c6_66, %c0_67, %c0_68] : memref<9x4x4xf32, #tpu.memory_space<vmem>>, vector<1x4x4xf32>
    %110 = vector.shape_cast %109 : vector<1x4x4xf32> to vector<4x4xf32>
    %cst_69 = arith.constant dense<0.000000e+00> : vector<4x648xf32>
    %111 = tpu.matmul %110, %108, %cst_69 {dimension_numbers = #tpu.dot_dimension_numbers<[1], [0], [0], [1], [0, 0, 1, 1], [], []>} : vector<4x4xf32>, vector<4x648xf32>, vector<4x648xf32> -> vector<4x648xf32>
    %112 = arith.addf %107, %111 : vector<4x648xf32>
    %113 = vector.extract_strided_slice %78 {offsets = [0, 37], sizes = [4, 648], strides = [1, 1]} : vector<4x686xf32> to vector<4x648xf32>
    %c7_70 = arith.constant 7 : index
    %c0_71 = arith.constant 0 : index
    %c0_72 = arith.constant 0 : index
    %114 = vector.load %arg6[%c7_70, %c0_71, %c0_72] : memref<9x4x4xf32, #tpu.memory_space<vmem>>, vector<1x4x4xf32>
    %115 = vector.shape_cast %114 : vector<1x4x4xf32> to vector<4x4xf32>
    %cst_73 = arith.constant dense<0.000000e+00> : vector<4x648xf32>
    %116 = tpu.matmul %115, %113, %cst_73 {dimension_numbers = #tpu.dot_dimension_numbers<[1], [0], [0], [1], [0, 0, 1, 1], [], []>} : vector<4x4xf32>, vector<4x648xf32>, vector<4x648xf32> -> vector<4x648xf32>
    %117 = arith.addf %112, %116 : vector<4x648xf32>
    %118 = vector.extract_strided_slice %78 {offsets = [0, 38], sizes = [4, 648], strides = [1, 1]} : vector<4x686xf32> to vector<4x648xf32>
    %c8_74 = arith.constant 8 : index
    %c0_75 = arith.constant 0 : index
    %c0_76 = arith.constant 0 : index
    %119 = vector.load %arg6[%c8_74, %c0_75, %c0_76] : memref<9x4x4xf32, #tpu.memory_space<vmem>>, vector<1x4x4xf32>
    %120 = vector.shape_cast %119 : vector<1x4x4xf32> to vector<4x4xf32>
    %cst_77 = arith.constant dense<0.000000e+00> : vector<4x648xf32>
    %121 = tpu.matmul %120, %118, %cst_77 {dimension_numbers = #tpu.dot_dimension_numbers<[1], [0], [0], [1], [0, 0, 1, 1], [], []>} : vector<4x4xf32>, vector<4x648xf32>, vector<4x648xf32> -> vector<4x648xf32>
    %122 = arith.addf %117, %121 : vector<4x648xf32>
    %c0_78 = arith.constant 0 : index
    %c0_79 = arith.constant 0 : index
    %123 = vector.load %arg7[%c0_78, %c0_79] : memref<4x1xf32, #tpu.memory_space<vmem>>, vector<4x1xf32>
    %124 = vector.broadcast %123 : vector<4x1xf32> to vector<4x648xf32>
    %125 = arith.addf %122, %124 : vector<4x648xf32>
    %126 = vector.extract_strided_slice %2 {offsets = [0, 38], sizes = [4, 648], strides = [1, 1]} : vector<4x724xf32> to vector<4x648xf32>
    %127 = arith.addf %126, %125 : vector<4x648xf32>
    %128 = vector.broadcast %1 : vector<1x648xf32> to vector<4x648xf32>
    %129 = arith.mulf %127, %128 : vector<4x648xf32>
    %cst_80 = arith.constant dense<0.000000e+00> : vector<4xf32>
    %130 = vector.multi_reduction <add>, %129, %cst_80 [1] : vector<4x648xf32> to vector<4xf32>
    %131 = vector.shape_cast %130 : vector<4xf32> to vector<4x1xf32>
    %132 = arith.mulf %129, %127 : vector<4x648xf32>
    %cst_81 = arith.constant dense<0.000000e+00> : vector<4xf32>
    %133 = vector.multi_reduction <add>, %132, %cst_81 [1] : vector<4x648xf32> to vector<4xf32>
    %134 = vector.shape_cast %133 : vector<4xf32> to vector<4x1xf32>
    %cst_82 = arith.constant 5.120000e+02 : f32
    %135 = vector.broadcast %cst_82 : f32 to vector<4x1xf32>
    %136 = arith.divf %131, %135 : vector<4x1xf32>
    %cst_83 = arith.constant 5.120000e+02 : f32
    %137 = vector.broadcast %cst_83 : f32 to vector<4x1xf32>
    %138 = arith.divf %134, %137 : vector<4x1xf32>
    %139 = arith.mulf %136, %136 : vector<4x1xf32>
    %140 = arith.subf %138, %139 : vector<4x1xf32>
    %cst_84 = arith.constant 9.99999974E-6 : f32
    %141 = vector.broadcast %cst_84 : f32 to vector<4x1xf32>
    %142 = arith.addf %140, %141 : vector<4x1xf32>
    %143 = math.rsqrt %142 : vector<4x1xf32>
    %144 = vector.broadcast %136 : vector<4x1xf32> to vector<4x648xf32>
    %145 = arith.subf %127, %144 : vector<4x648xf32>
    %c0_85 = arith.constant 0 : index
    %c0_86 = arith.constant 0 : index
    %146 = vector.load %arg8[%c0_85, %c0_86] : memref<4x1xf32, #tpu.memory_space<vmem>>, vector<4x1xf32>
    %147 = arith.mulf %143, %146 : vector<4x1xf32>
    %148 = vector.broadcast %147 : vector<4x1xf32> to vector<4x648xf32>
    %149 = arith.mulf %145, %148 : vector<4x648xf32>
    %c0_87 = arith.constant 0 : index
    %c0_88 = arith.constant 0 : index
    %150 = vector.load %arg9[%c0_87, %c0_88] : memref<4x1xf32, #tpu.memory_space<vmem>>, vector<4x1xf32>
    %151 = vector.broadcast %150 : vector<4x1xf32> to vector<4x648xf32>
    %152 = arith.addf %149, %151 : vector<4x648xf32>
    %cst_89 = arith.constant 0.000000e+00 : f32
    %153 = vector.broadcast %cst_89 : f32 to vector<4x648xf32>
    %154 = arith.maximumf %152, %153 : vector<4x648xf32>
    %c0_90 = arith.constant 0 : index
    %c0_91 = arith.constant 0 : index
    %155 = vector.load %arg10[%c0_90, %c0_91] : memref<4x648xf32, #tpu.memory_space<vmem>>, vector<4x648xf32>
    tpu.vector_store %arg10[%c0_90, %c0_91], %154 {strides = array<i32>} : memref<4x648xf32, #tpu.memory_space<vmem>>, vector<4x648xf32>,
    return
  }
}

</mosaic_0001>

<llo_original>
// kernel: tpu_custom_call.1
$region0: #{tpu_custom_call.1}
  #allocation0 [shape = 'u32[]', space=smem, size = 0x4, offset = 0x4, fixed_abs, tag = 'smem constant byte address 0x4 - core index']
  #allocation1 [shape = 'u32[144,128]{1,0:T(1,128)}', space=vmem, size = 0x12000, scoped, tag = 'internal scratch']
  %s0 = inlined_call_operand.vmem [shape: f32[4,724], index: 0, kind: input, shape index: {}]
  %s1 = inlined_call_operand.vmem [shape: f32[1,686], index: 1, kind: input, shape index: {}]
  %s2 = inlined_call_operand.vmem [shape: f32[9,4,4], index: 2, kind: input, shape index: {}]
  %s3 = inlined_call_operand.vmem [shape: f32[4,1], index: 3, kind: input, shape index: {}]
  %s4 = inlined_call_operand.vmem [shape: f32[4,1], index: 4, kind: input, shape index: {}]
  %s5 = inlined_call_operand.vmem [shape: f32[4,1], index: 5, kind: input, shape index: {}]
  %s6 = inlined_call_operand.vmem [shape: f32[9,4,4], index: 6, kind: input, shape index: {}]
  %s7 = inlined_call_operand.vmem [shape: f32[4,1], index: 7, kind: input, shape index: {}]
  %s8 = inlined_call_operand.vmem [shape: f32[4,1], index: 8, kind: input, shape index: {}]
  %s9 = inlined_call_operand.vmem [shape: f32[4,1], index: 9, kind: input, shape index: {}]
  %s10 = inlined_call_operand.hbm [shape: f32[4,648], index: 10, kind: output, shape index: {}]
  %s11 = sld [smem:[#allocation0]]
  $region50: #{tpu_custom_call.1} parent=0
    _
  %s13 = ssub.s32 1, %s11
  %s14 = scalar_select 0, %s13, %s11
  $region1: #{tpu_custom_call.1} parent=0
    #allocation2 [shape = 'u8[12288]{0}', space=vmem, size = 0x3000, scoped, tag = 'output window, operand 0, single buffered']
    #allocation3 [shape = 's32[1]{0}', space=sflag, size = 0x4, scoped, tag = 'scoped memory for tpu_custom_call.1']
    %15 = vsyncpa [#allocation3], 0
    // Predicated region
    $region2: #{tpu_custom_call.1} parent=1 // pred_check
      _
    $region3: #{tpu_custom_call.1} parent=1 // pred_check_branch
      %17 = sbr.rel (0) target = $region5
    $region4: #{tpu_custom_call.1} parent=1 // pred_region
      _
    $region5: #{tpu_custom_call.1} parent=1 // pred_fallthru
      _
    // Predicated region
    $region6: #{tpu_custom_call.1} parent=1 // pred_check
      _
    $region7: #{tpu_custom_call.1} parent=1 // pred_check_branch
      %19 = sbr.rel (0) target = $region9
    $region8: #{tpu_custom_call.1} parent=1 // pred_region
      _
    $region9: #{tpu_custom_call.1} parent=1 // pred_fallthru
      _
    // Predicated region
    $region10: #{tpu_custom_call.1} parent=1 // pred_check
      _
    $region11: #{tpu_custom_call.1} parent=1 // pred_check_branch
      %21 = sbr.rel (0) target = $region13
    $region12: #{tpu_custom_call.1} parent=1 // pred_region
      _
    $region13: #{tpu_custom_call.1} parent=1 // pred_fallthru
      _
    // Predicated region
    $region14: #{tpu_custom_call.1} parent=1 // pred_check
      _
    $region15: #{tpu_custom_call.1} parent=1 // pred_check_branch
      %23 = sbr.rel (0) target = $region17
    $region16: #{tpu_custom_call.1} parent=1 // pred_region
      _
    $region17: #{tpu_custom_call.1} parent=1 // pred_fallthru
      _
    // Predicated region
    $region18: #{tpu_custom_call.1} parent=1 // pred_check
      _
    $region19: #{tpu_custom_call.1} parent=1 // pred_check_branch
      %25 = sbr.rel (0) target = $region21
    $region20: #{tpu_custom_call.1} parent=1 // pred_region
      _
    $region21: #{tpu_custom_call.1} parent=1 // pred_fallthru
      _
    // Predicated region
    $region22: #{tpu_custom_call.1} parent=1 // pred_check
      _
    $region23: #{tpu_custom_call.1} parent=1 // pred_check_branch
      %27 = sbr.rel (0) target = $region25
    $region24: #{tpu_custom_call.1} parent=1 // pred_region
      _
    $region25: #{tpu_custom_call.1} parent=1 // pred_fallthru
      _
    // Predicated region
    $region26: #{tpu_custom_call.1} parent=1 // pred_check
      _
    $region27: #{tpu_custom_call.1} parent=1 // pred_check_branch
      %29 = sbr.rel (0) target = $region29
    $region28: #{tpu_custom_call.1} parent=1 // pred_region
      _
    $region29: #{tpu_custom_call.1} parent=1 // pred_fallthru
      _
    // Predicated region
    $region30: #{tpu_custom_call.1} parent=1 // pred_check
      _
    $region31: #{tpu_custom_call.1} parent=1 // pred_check_branch
      %31 = sbr.rel (0) target = $region33
    $region32: #{tpu_custom_call.1} parent=1 // pred_region
      _
    $region33: #{tpu_custom_call.1} parent=1 // pred_fallthru
      _
    // Predicated region
    $region34: #{tpu_custom_call.1} parent=1 // pred_check
      _
    $region35: #{tpu_custom_call.1} parent=1 // pred_check_branch
      %33 = sbr.rel (0) target = $region37
    $region36: #{tpu_custom_call.1} parent=1 // pred_region
      _
    $region37: #{tpu_custom_call.1} parent=1 // pred_fallthru
      _
    // Predicated region
    $region38: #{tpu_custom_call.1} parent=1 // pred_check
      _
    $region39: #{tpu_custom_call.1} parent=1 // pred_check_branch
      %35 = sbr.rel (0) target = $region41
    $region40: #{tpu_custom_call.1} parent=1 // pred_region
      _
    $region41: #{tpu_custom_call.1} parent=1 // pred_fallthru
      _
    %v36 = vld [vmem:[%s1] sm:$0x3f]
    %v37 = vld [vmem:[%s0] sm:$0xff]
    %v38 = vld [vmem:[%s0 + $0x8] sm:$0xff]
    %v39 = vld [vmem:[%s0 + $0x10] sm:$0xff]
    %v40 = vld [vmem:[%s2] sm:$0xf]
    %s41 = scalar_lea.vmem %s2, 4
    %v42 = vld [vmem:[%s41] sm:$0xf]
    %v46 = vcombine.high %v37, %v37
    %v47 = vcombine.high %v38, %v38
    %v48 = vcombine.high %v39, %v39
    %49 = vrot.lane.b32.xlu0 %v37, 127
    %v50 = vpop.permute.xlu0 %49
    %51 = vrot.lane.b32.xlu0 %v46, 127
    %v52 = vpop.permute.xlu0 %51
    %53 = vrot.lane.b32.xlu0 %v38, 127
    %v54 = vpop.permute.xlu0 %53
    %55 = vrot.lane.b32.xlu0 %v47, 127
    %v56 = vpop.permute.xlu0 %55
    %57 = vrot.lane.b32.xlu0 %v39, 127
    %v58 = vpop.permute.xlu0 %57
    %59 = vrot.lane.b32.xlu0 %v48, 127
    %v60 = vpop.permute.xlu0 %59
    %vm61 = vcmask 1039360
    %v62 = vsel %vm61, %v50, %v52
    %v63 = vsel %vm61, %v52, %v54
    %v64 = vsel %vm61, %v54, %v56
    %v65 = vsel %vm61, %v56, %v58
    %v66 = vsel %vm61, %v58, %v60
    %vm67 = vcmask 31744
    %v69 = vsel %vm67, %v42, 0
    %vm71 = vcmask 1043456
    %v72 = vsel %vm71, %v62, 0
    %v74 = vsel %vm71, %v63, 0
    %v76 = vsel %vm71, %v64, 0
    %v78 = vsel %vm71, %v65, 0
    %v80 = vsel %vm71, %v66, 0
    %v82 = vsel %vm71, %v60, 0
    %84 = vmatprep.subr.mxu0 %v74
    %85 = vmatpush1.msra.mxu0 %v72
    %86 = vmatprep.subr.mxu0 0.0
    %87 = vmatpush1.msra.mxu0 0.0
    %88 = vmatprep.subr.mxu0 0.0
    %89 = vmatpush1.msra.mxu0 0.0
    %90 = vmatprep.subr.mxu0 0.0
    %91 = vmatpush1.msra.mxu0 0.0
    %92 = vmatprep.subr.mxu0 0.0
    %93 = vmatpush1.msra.mxu0 0.0
    %94 = vmatprep.subr.mxu0 0.0
    %95 = vmatpush1.msra.mxu0 0.0
    %96 = vmatprep.subr.mxu0 0.0
    %97 = vmatpush1.msra.mxu0 0.0
    %98 = vmatprep.subr.mxu0 0.0
    %99 = vmatpush1.msra.mxu0 0.0
    %100 = vmatprep.subr.mxu0 0.0
    %101 = vmatpush1.msra.mxu0 0.0
    %102 = vmatprep.subr.mxu0 0.0
    %103 = vmatpush1.msra.mxu0 0.0
    %104 = vmatprep.subr.mxu0 0.0
    %105 = vmatpush1.msra.mxu0 0.0
    %106 = vmatprep.subr.mxu0 0.0
    %107 = vmatpush1.msra.mxu0 0.0
    %108 = vmatprep.subr.mxu0 0.0
    %109 = vmatpush1.msra.mxu0 0.0
    %110 = vmatprep.subr.mxu0 0.0
    %111 = vmatpush1.msra.mxu0 0.0
    %112 = vmatprep.subr.mxu0 0.0
    %113 = vmatpush1.msra.mxu0 0.0
    %114 = vmatprep.subr.mxu0 0.0
    %115 = vmatpush1.msra.mxu0 0.0
    %116 = vmatprep.subr.mxu0 0.0
    %117 = vmatpush1.msra.mxu0 0.0
    %118 = vmatprep.subr.mxu0 0.0
    %119 = vmatpush1.msra.mxu0 0.0
    %120 = vmatprep.subr.mxu0 0.0
    %121 = vmatpush1.msra.mxu0 0.0
    %122 = vmatprep.subr.mxu0 0.0
    %123 = vmatpush1.msra.mxu0 0.0
    %124 = vmatprep.subr.mxu0 0.0
    %125 = vmatpush1.msra.mxu0 0.0
    %126 = vmatprep.subr.mxu0 0.0
    %127 = vmatpush1.msra.mxu0 0.0
    %128 = vmatprep.subr.mxu0 0.0
    %129 = vmatpush1.msra.mxu0 0.0
    %130 = vmatprep.subr.mxu0 0.0
    %131 = vmatpush1.msra.mxu0 0.0
    %132 = vmatprep.subr.mxu0 0.0
    %133 = vmatpush1.msra.mxu0 0.0
    %134 = vmatprep.subr.mxu0 0.0
    %135 = vmatpush1.msra.mxu0 0.0
    %136 = vmatprep.subr.mxu0 0.0
    %137 = vmatpush1.msra.mxu0 0.0
    %138 = vmatprep.subr.mxu0 0.0
    %139 = vmatpush1.msra.mxu0 0.0
    %140 = vmatprep.subr.mxu0 0.0
    %141 = vmatpush1.msra.mxu0 0.0
    %142 = vmatprep.subr.mxu0 0.0
    %143 = vmatpush1.msra.mxu0 0.0
    %144 = vmatprep.subr.mxu0 0.0
    %145 = vmatpush1.msra.mxu0 0.0
    %146 = vmatprep.subr.mxu0 0.0
    %147 = vmatpush1.msra.mxu0 0.0
    %148 = vmatprep.mubr.f32.mxu0 0.0
    %149 = vmatmul.mubr.f32.gmra.mrb[0].mxu0 %v69
    %v150 = vpop.f32.mrb[0].mxu0
    %v151 = vadd.f32 0.0, %v150
    %v152 = vpop.f32.mrb[0].mxu0
    %v153 = vadd.f32 0.0, %v152
    %154 = vdwg.mxu0
    %155 = vmatprep.subr.mxu0 %v78
    %156 = vmatpush1.msra.mxu0 %v76
    %157 = vmatprep.subr.mxu0 0.0
    %158 = vmatpush1.msra.mxu0 0.0
    %159 = vmatprep.subr.mxu0 0.0
    %160 = vmatpush1.msra.mxu0 0.0
    %161 = vmatprep.subr.mxu0 0.0
    %162 = vmatpush1.msra.mxu0 0.0
    %163 = vmatprep.subr.mxu0 0.0
    %164 = vmatpush1.msra.mxu0 0.0
    %165 = vmatprep.subr.mxu0 0.0
    %166 = vmatpush1.msra.mxu0 0.0
    %167 = vmatprep.subr.mxu0 0.0
    %168 = vmatpush1.msra.mxu0 0.0
    %169 = vmatprep.subr.mxu0 0.0
    %170 = vmatpush1.msra.mxu0 0.0
    %171 = vmatprep.subr.mxu0 0.0
    %172 = vmatpush1.msra.mxu0 0.0
    %173 = vmatprep.subr.mxu0 0.0
    %174 = vmatpush1.msra.mxu0 0.0
    %175 = vmatprep.subr.mxu0 0.0
    %176 = vmatpush1.msra.mxu0 0.0
    %177 = vmatprep.subr.mxu0 0.0
    %178 = vmatpush1.msra.mxu0 0.0
    %179 = vmatprep.subr.mxu0 0.0
    %180 = vmatpush1.msra.mxu0 0.0
    %181 = vmatprep.subr.mxu0 0.0
    %182 = vmatpush1.msra.mxu0 0.0
    %183 = vmatprep.subr.mxu0 0.0
    %184 = vmatpush1.msra.mxu0 0.0
    %185 = vmatprep.subr.mxu0 0.0
    %186 = vmatpush1.msra.mxu0 0.0
    %187 = vmatprep.subr.mxu0 0.0
    %188 = vmatpush1.msra.mxu0 0.0
    %189 = vmatprep.subr.mxu0 0.0
    %190 = vmatpush1.msra.mxu0 0.0
    %191 = vmatprep.subr.mxu0 0.0
    %192 = vmatpush1.msra.mxu0 0.0
    %193 = vmatprep.subr.mxu0 0.0
    %194 = vmatpush1.msra.mxu0 0.0
    %195 = vmatprep.subr.mxu0 0.0
    %196 = vmatpush1.msra.mxu0 0.0
    %197 = vmatprep.subr.mxu0 0.0
    %198 = vmatpush1.msra.mxu0 0.0
    %199 = vmatprep.subr.mxu0 0.0
    %200 = vmatpush1.msra.mxu0 0.0
    %201 = vmatprep.subr.mxu0 0.0
    %202 = vmatpush1.msra.mxu0 0.0
    %203 = vmatprep.subr.mxu0 0.0
    %204 = vmatpush1.msra.mxu0 0.0
    %205 = vmatprep.subr.mxu0 0.0
    %206 = vmatpush1.msra.mxu0 0.0
    %207 = vmatprep.subr.mxu0 0.0
    %208 = vmatpush1.msra.mxu0 0.0
    %209 = vmatprep.subr.mxu0 0.0
    %210 = vmatpush1.msra.mxu0 0.0
    %211 = vmatprep.subr.mxu0 0.0
    %212 = vmatpush1.msra.mxu0 0.0
    %213 = vmatprep.subr.mxu0 0.0
    %214 = vmatpush1.msra.mxu0 0.0
    %215 = vmatprep.subr.mxu0 0.0
    %216 = vmatpush1.msra.mxu0 0.0
    %217 = vmatprep.subr.mxu0 0.0
    %218 = vmatpush1.msra.mxu0 0.0
    %219 = vmatprep.mubr.f32.mxu0 0.0
    %220 = vmatmul.mubr.f32.gmra.mrb[0].mxu0 %v69
    %v221 = vpop.f32.mrb[0].mxu0
    %v222 = vadd.f32 0.0, %v221
    %v223 = vpop.f32.mrb[0].mxu0
    %v224 = vadd.f32 0.0, %v223
    %225 = vdwg.mxu0
    %226 = vmatprep.subr.mxu0 %v82
    %227 = vmatpush1.msra.mxu0 %v80
    %228 = vmatprep.subr.mxu0 0.0
    %229 = vmatpush1.msra.mxu0 0.0
    %230 = vmatprep.subr.mxu0 0.0
    %231 = vmatpush1.msra.mxu0 0.0
    %232 = vmatprep.subr.mxu0 0.0
    %233 = vmatpush1.msra.mxu0 0.0
    %234 = vmatprep.subr.mxu0 0.0
    %235 = vmatpush1.msra.mxu0 0.0
    %236 = vmatprep.subr.mxu0 0.0
    %237 = vmatpush1.msra.mxu0 0.0
    %238 = vmatprep.subr.mxu0 0.0
    %239 = vmatpush1.msra.mxu0 0.0
    %240 = vmatprep.subr.mxu0 0.0
    %241 = vmatpush1.msra.mxu0 0.0
    %242 = vmatprep.subr.mxu0 0.0
    %243 = vmatpush1.msra.mxu0 0.0
    %244 = vmatprep.subr.mxu0 0.0
    %245 = vmatpush1.msra.mxu0 0.0
    %246 = vmatprep.subr.mxu0 0.0
    %247 = vmatpush1.msra.mxu0 0.0
    %248 = vmatprep.subr.mxu0 0.0
    %249 = vmatpush1.msra.mxu0 0.0
    %250 = vmatprep.subr.mxu0 0.0
    %251 = vmatpush1.msra.mxu0 0.0
    %252 = vmatprep.subr.mxu0 0.0
    %253 = vmatpush1.msra.mxu0 0.0
    %254 = vmatprep.subr.mxu0 0.0
    %255 = vmatpush1.msra.mxu0 0.0
    %256 = vmatprep.subr.mxu0 0.0
    %257 = vmatpush1.msra.mxu0 0.0
    %258 = vmatprep.subr.mxu0 0.0
    %259 = vmatpush1.msra.mxu0 0.0
    %260 = vmatprep.subr.mxu0 0.0
    %261 = vmatpush1.msra.mxu0 0.0
    %262 = vmatprep.subr.mxu0 0.0
    %263 = vmatpush1.msra.mxu0 0.0
    %264 = vmatprep.subr.mxu0 0.0
    %265 = vmatpush1.msra.mxu0 0.0
    %266 = vmatprep.subr.mxu0 0.0
    %267 = vmatpush1.msra.mxu0 0.0
    %268 = vmatprep.subr.mxu0 0.0
    %269 = vmatpush1.msra.mxu0 0.0
    %270 = vmatprep.subr.mxu0 0.0
    %271 = vmatpush1.msra.mxu0 0.0
    %272 = vmatprep.subr.mxu0 0.0
    %273 = vmatpush1.msra.mxu0 0.0
    %274 = vmatprep.subr.mxu0 0.0
    %275 = vmatpush1.msra.mxu0 0.0
    %276 = vmatprep.subr.mxu0 0.0
    %277 = vmatpush1.msra.mxu0 0.0
    %278 = vmatprep.subr.mxu0 0.0
    %279 = vmatpush1.msra.mxu0 0.0
    %280 = vmatprep.subr.mxu0 0.0
    %281 = vmatpush1.msra.mxu0 0.0
    %282 = vmatprep.subr.mxu0 0.0
    %283 = vmatpush1.msra.mxu0 0.0
    %284 = vmatprep.subr.mxu0 0.0
    %285 = vmatpush1.msra.mxu0 0.0
    %286 = vmatprep.subr.mxu0 0.0
    %287 = vmatpush1.msra.mxu0 0.0
    %288 = vmatprep.subr.mxu0 0.0
    %289 = vmatpush1.msra.mxu0 0.0
    %290 = vmatprep.mubr.f32.mxu0 0.0
    %291 = vmatmul.mubr.f32.gmra.mrb[0].mxu0 %v69
    %v292 = vpop.f32.mrb[0].mxu0
    %v293 = vadd.f32 0.0, %v292
    %v294 = vpop.f32.mrb[0].mxu0
    %v295 = vadd.f32 0.0, %v294
    %296 = vdwg.mxu0
    %v298 = vsel %vm67, %v40, 0
    %v300 = vsel %vm71, %v37, 0
    %v302 = vsel %vm71, %v46, 0
    %v304 = vsel %vm71, %v38, 0
    %v306 = vsel %vm71, %v47, 0
    %v308 = vsel %vm71, %v39, 0
    %v310 = vsel %vm71, %v48, 0
    %312 = vmatprep.subr.mxu0 %v302
    %313 = vmatpush1.msra.mxu0 %v300
    %314 = vmatprep.subr.mxu0 0.0
    %315 = vmatpush1.msra.mxu0 0.0
    %316 = vmatprep.subr.mxu0 0.0
    %317 = vmatpush1.msra.mxu0 0.0
    %318 = vmatprep.subr.mxu0 0.0
    %319 = vmatpush1.msra.mxu0 0.0
    %320 = vmatprep.subr.mxu0 0.0
    %321 = vmatpush1.msra.mxu0 0.0
    %322 = vmatprep.subr.mxu0 0.0
    %323 = vmatpush1.msra.mxu0 0.0
    %324 = vmatprep.subr.mxu0 0.0
    %325 = vmatpush1.msra.mxu0 0.0
    %326 = vmatprep.subr.mxu0 0.0
    %327 = vmatpush1.msra.mxu0 0.0
    %328 = vmatprep.subr.mxu0 0.0
    %329 = vmatpush1.msra.mxu0 0.0
    %330 = vmatprep.subr.mxu0 0.0
    %331 = vmatpush1.msra.mxu0 0.0
    %332 = vmatprep.subr.mxu0 0.0
    %333 = vmatpush1.msra.mxu0 0.0
    %334 = vmatprep.subr.mxu0 0.0
    %335 = vmatpush1.msra.mxu0 0.0
    %336 = vmatprep.subr.mxu0 0.0
    %337 = vmatpush1.msra.mxu0 0.0
    %338 = vmatprep.subr.mxu0 0.0
    %339 = vmatpush1.msra.mxu0 0.0
    %340 = vmatprep.subr.mxu0 0.0
    %341 = vmatpush1.msra.mxu0 0.0
    %342 = vmatprep.subr.mxu0 0.0
    %343 = vmatpush1.msra.mxu0 0.0
    %344 = vmatprep.subr.mxu0 0.0
    %345 = vmatpush1.msra.mxu0 0.0
    %346 = vmatprep.subr.mxu0 0.0
    %347 = vmatpush1.msra.mxu0 0.0
    %348 = vmatprep.subr.mxu0 0.0
    %349 = vmatpush1.msra.mxu0 0.0
    %350 = vmatprep.subr.mxu0 0.0
    %351 = vmatpush1.msra.mxu0 0.0
    %352 = vmatprep.subr.mxu0 0.0
    %353 = vmatpush1.msra.mxu0 0.0
    %354 = vmatprep.subr.mxu0 0.0
    %355 = vmatpush1.msra.mxu0 0.0
    %356 = vmatprep.subr.mxu0 0.0
    %357 = vmatpush1.msra.mxu0 0.0
    %358 = vmatprep.subr.mxu0 0.0
    %359 = vmatpush1.msra.mxu0 0.0
    %360 = vmatprep.subr.mxu0 0.0
    %361 = vmatpush1.msra.mxu0 0.0
    %362 = vmatprep.subr.mxu0 0.0
    %363 = vmatpush1.msra.mxu0 0.0
    %364 = vmatprep.subr.mxu0 0.0
    %365 = vmatpush1.msra.mxu0 0.0
    %366 = vmatprep.subr.mxu0 0.0
    %367 = vmatpush1.msra.mxu0 0.0
    %368 = vmatprep.subr.mxu0 0.0
    %369 = vmatpush1.msra.mxu0 0.0
    %370 = vmatprep.subr.mxu0 0.0
    %371 = vmatpush1.msra.mxu0 0.0
    %372 = vmatprep.subr.mxu0 0.0
    %373 = vmatpush1.msra.mxu0 0.0
    %374 = vmatprep.subr.mxu0 0.0
    %375 = vmatpush1.msra.mxu0 0.0
    %376 = vmatprep.mubr.f32.mxu0 0.0
    %377 = vmatmul.mubr.f32.gmra.mrb[0].mxu0 %v298
    %v378 = vpop.f32.mrb[0].mxu0
    %v379 = vadd.f32 %v151, %v378
    %v380 = vpop.f32.mrb[0].mxu0
    %v381 = vadd.f32 %v153, %v380
    %382 = vdwg.mxu0
    %383 = vmatprep.subr.mxu0 %v306
    %384 = vmatpush1.msra.mxu0 %v304
    %385 = vmatprep.subr.mxu0 0.0
    %386 = vmatpush1.msra.mxu0 0.0
    %387 = vmatprep.subr.mxu0 0.0
    %388 = vmatpush1.msra.mxu0 0.0
    %389 = vmatprep.subr.mxu0 0.0
    %390 = vmatpush1.msra.mxu0 0.0
    %391 = vmatprep.subr.mxu0 0.0
    %392 = vmatpush1.msra.mxu0 0.0
    %393 = vmatprep.subr.mxu0 0.0
    %394 = vmatpush1.msra.mxu0 0.0
    %395 = vmatprep.subr.mxu0 0.0
    %396 = vmatpush1.msra.mxu0 0.0
    %397 = vmatprep.subr.mxu0 0.0
    %398 = vmatpush1.msra.mxu0 0.0
    %399 = vmatprep.subr.mxu0 0.0
    %400 = vmatpush1.msra.mxu0 0.0
    %401 = vmatprep.subr.mxu0 0.0
    %402 = vmatpush1.msra.mxu0 0.0
    %403 = vmatprep.subr.mxu0 0.0
    %404 = vmatpush1.msra.mxu0 0.0
    %405 = vmatprep.subr.mxu0 0.0
    %406 = vmatpush1.msra.mxu0 0.0
    %407 = vmatprep.subr.mxu0 0.0
    %408 = vmatpush1.msra.mxu0 0.0
    %409 = vmatprep.subr.mxu0 0.0
    %410 = vmatpush1.msra.mxu0 0.0
    %411 = vmatprep.subr.mxu0 0.0
    %412 = vmatpush1.msra.mxu0 0.0
    %413 = vmatprep.subr.mxu0 0.0
    %414 = vmatpush1.msra.mxu0 0.0
    %415 = vmatprep.subr.mxu0 0.0
    %416 = vmatpush1.msra.mxu0 0.0
    %417 = vmatprep.subr.mxu0 0.0
    %418 = vmatpush1.msra.mxu0 0.0
    %419 = vmatprep.subr.mxu0 0.0
    %420 = vmatpush1.msra.mxu0 0.0
    %421 = vmatprep.subr.mxu0 0.0
    %422 = vmatpush1.msra.mxu0 0.0
    %423 = vmatprep.subr.mxu0 0.0
    %424 = vmatpush1.msra.mxu0 0.0
    %425 = vmatprep.subr.mxu0 0.0
    %426 = vmatpush1.msra.mxu0 0.0
    %427 = vmatprep.subr.mxu0 0.0
    %428 = vmatpush1.msra.mxu0 0.0
    %429 = vmatprep.subr.mxu0 0.0
    %430 = vmatpush1.msra.mxu0 0.0
    %431 = vmatprep.subr.mxu0 0.0
    %432 = vmatpush1.msra.mxu0 0.0
    %433 = vmatprep.subr.mxu0 0.0
    %434 = vmatpush1.msra.mxu0 0.0
    %435 = vmatprep.subr.mxu0 0.0
    %436 = vmatpush1.msra.mxu0 0.0
    %437 = vmatprep.subr.mxu0 0.0
    %438 = vmatpush1.msra.mxu0 0.0
    %439 = vmatprep.subr.mxu0 0.0
    %440 = vmatpush1.msra.mxu0 0.0
    %441 = vmatprep.subr.mxu0 0.0
    %442 = vmatpush1.msra.mxu0 0.0
    %443 = vmatprep.subr.mxu0 0.0
    %444 = vmatpush1.msra.mxu0 0.0
    %445 = vmatprep.subr.mxu0 0.0
    %446 = vmatpush1.msra.mxu0 0.0
    %447 = vmatprep.mubr.f32.mxu0 0.0
    %448 = vmatmul.mubr.f32.gmra.mrb[0].mxu0 %v298
    %v449 = vpop.f32.mrb[0].mxu0
    %v450 = vadd.f32 %v222, %v449
    %v451 = vpop.f32.mrb[0].mxu0
    %v452 = vadd.f32 %v224, %v451
    %453 = vdwg.mxu0
    %454 = vmatprep.subr.mxu0 %v310
    %455 = vmatpush1.msra.mxu0 %v308
    %456 = vmatprep.subr.mxu0 0.0
    %457 = vmatpush1.msra.mxu0 0.0
    %458 = vmatprep.subr.mxu0 0.0
    %459 = vmatpush1.msra.mxu0 0.0
    %460 = vmatprep.subr.mxu0 0.0
    %461 = vmatpush1.msra.mxu0 0.0
    %462 = vmatprep.subr.mxu0 0.0
    %463 = vmatpush1.msra.mxu0 0.0
    %464 = vmatprep.subr.mxu0 0.0
    %465 = vmatpush1.msra.mxu0 0.0
    %466 = vmatprep.subr.mxu0 0.0
    %467 = vmatpush1.msra.mxu0 0.0
    %468 = vmatprep.subr.mxu0 0.0
    %469 = vmatpush1.msra.mxu0 0.0
    %470 = vmatprep.subr.mxu0 0.0
    %471 = vmatpush1.msra.mxu0 0.0
    %472 = vmatprep.subr.mxu0 0.0
    %473 = vmatpush1.msra.mxu0 0.0
    %474 = vmatprep.subr.mxu0 0.0
    %475 = vmatpush1.msra.mxu0 0.0
    %476 = vmatprep.subr.mxu0 0.0
    %477 = vmatpush1.msra.mxu0 0.0
    %478 = vmatprep.subr.mxu0 0.0
    %479 = vmatpush1.msra.mxu0 0.0
    %480 = vmatprep.subr.mxu0 0.0
    %481 = vmatpush1.msra.mxu0 0.0
    %482 = vmatprep.subr.mxu0 0.0
    %483 = vmatpush1.msra.mxu0 0.0
    %484 = vmatprep.subr.mxu0 0.0
    %485 = vmatpush1.msra.mxu0 0.0
    %486 = vmatprep.subr.mxu0 0.0
    %487 = vmatpush1.msra.mxu0 0.0
    %488 = vmatprep.subr.mxu0 0.0
    %489 = vmatpush1.msra.mxu0 0.0
    %490 = vmatprep.subr.mxu0 0.0
    %491 = vmatpush1.msra.mxu0 0.0
    %492 = vmatprep.subr.mxu0 0.0
    %493 = vmatpush1.msra.mxu0 0.0
    %494 = vmatprep.subr.mxu0 0.0
    %495 = vmatpush1.msra.mxu0 0.0
    %496 = vmatprep.subr.mxu0 0.0
    %497 = vmatpush1.msra.mxu0 0.0
    %498 = vmatprep.subr.mxu0 0.0
    %499 = vmatpush1.msra.mxu0 0.0
    %500 = vmatprep.subr.mxu0 0.0
    %501 = vmatpush1.msra.mxu0 0.0
    %502 = vmatprep.subr.mxu0 0.0
    %503 = vmatpush1.msra.mxu0 0.0
    %504 = vmatprep.subr.mxu0 0.0
    %505 = vmatpush1.msra.mxu0 0.0
    %506 = vmatprep.subr.mxu0 0.0
    %507 = vmatpush1.msra.mxu0 0.0
    %508 = vmatprep.subr.mxu0 0.0
    %509 = vmatpush1.msra.mxu0 0.0
    %510 = vmatprep.subr.mxu0 0.0
    %511 = vmatpush1.msra.mxu0 0.0
    %512 = vmatprep.subr.mxu0 0.0
    %513 = vmatpush1.msra.mxu0 0.0
    %514 = vmatprep.subr.mxu0 0.0
    %515 = vmatpush1.msra.mxu0 0.0
    %516 = vmatprep.subr.mxu0 0.0
    %517 = vmatpush1.msra.mxu0 0.0
    %518 = vmatprep.mubr.f32.mxu0 0.0
    %519 = vmatmul.mubr.f32.gmra.mrb[0].mxu0 %v298
    %v520 = vpop.f32.mrb[0].mxu0
    %v521 = vadd.f32 %v293, %v520
    %v522 = vpop.f32.mrb[0].mxu0
    %v523 = vadd.f32 %v295, %v522
    %524 = vdwg.mxu0
    %s525 = scalar_lea.vmem %s2, 8
    %v526 = vld [vmem:[%s525] sm:$0xf]
    %527 = vrot.lane.b32.xlu0 %v37, 126
    %v528 = vpop.permute.xlu0 %527
    %529 = vrot.lane.b32.xlu0 %v46, 126
    %v530 = vpop.permute.xlu0 %529
    %531 = vrot.lane.b32.xlu0 %v38, 126
    %v532 = vpop.permute.xlu0 %531
    %533 = vrot.lane.b32.xlu0 %v47, 126
    %v534 = vpop.permute.xlu0 %533
    %535 = vrot.lane.b32.xlu0 %v39, 126
    %v536 = vpop.permute.xlu0 %535
    %537 = vrot.lane.b32.xlu0 %v48, 126
    %v538 = vpop.permute.xlu0 %537
    %vm539 = vcmask 1031168
    %v540 = vsel %vm539, %v528, %v530
    %v541 = vsel %vm539, %v530, %v532
    %v542 = vsel %vm539, %v532, %v534
    %v543 = vsel %vm539, %v534, %v536
    %v544 = vsel %vm539, %v536, %v538
    %v546 = vsel %vm67, %v526, 0
    %v548 = vsel %vm71, %v540, 0
    %v550 = vsel %vm71, %v541, 0
    %v552 = vsel %vm71, %v542, 0
    %v554 = vsel %vm71, %v543, 0
    %v556 = vsel %vm71, %v544, 0
    %v558 = vsel %vm71, %v538, 0
    %560 = vmatprep.subr.mxu0 %v550
    %561 = vmatpush1.msra.mxu0 %v548
    %562 = vmatprep.subr.mxu0 0.0
    %563 = vmatpush1.msra.mxu0 0.0
    %564 = vmatprep.subr.mxu0 0.0
    %565 = vmatpush1.msra.mxu0 0.0
    %566 = vmatprep.subr.mxu0 0.0
    %567 = vmatpush1.msra.mxu0 0.0
    %568 = vmatprep.subr.mxu0 0.0
    %569 = vmatpush1.msra.mxu0 0.0
    %570 = vmatprep.subr.mxu0 0.0
    %571 = vmatpush1.msra.mxu0 0.0
    %572 = vmatprep.subr.mxu0 0.0
    %573 = vmatpush1.msra.mxu0 0.0
    %574 = vmatprep.subr.mxu0 0.0
    %575 = vmatpush1.msra.mxu0 0.0
    %576 = vmatprep.subr.mxu0 0.0
    %577 = vmatpush1.msra.mxu0 0.0
    %578 = vmatprep.subr.mxu0 0.0
    %579 = vmatpush1.msra.mxu0 0.0
    %580 = vmatprep.subr.mxu0 0.0
    %581 = vmatpush1.msra.mxu0 0.0
    %582 = vmatprep.subr.mxu0 0.0
    %583 = vmatpush1.msra.mxu0 0.0
    %584 = vmatprep.subr.mxu0 0.0
    %585 = vmatpush1.msra.mxu0 0.0
    %586 = vmatprep.subr.mxu0 0.0
    %587 = vmatpush1.msra.mxu0 0.0
    %588 = vmatprep.subr.mxu0 0.0
    %589 = vmatpush1.msra.mxu0 0.0
    %590 = vmatprep.subr.mxu0 0.0
    %591 = vmatpush1.msra.mxu0 0.0
    %592 = vmatprep.subr.mxu0 0.0
    %593 = vmatpush1.msra.mxu0 0.0
    %594 = vmatprep.subr.mxu0 0.0
    %595 = vmatpush1.msra.mxu0 0.0
    %596 = vmatprep.subr.mxu0 0.0
    %597 = vmatpush1.msra.mxu0 0.0
    %598 = vmatprep.subr.mxu0 0.0
    %599 = vmatpush1.msra.mxu0 0.0
    %600 = vmatprep.subr.mxu0 0.0
    %601 = vmatpush1.msra.mxu0 0.0
    %602 = vmatprep.subr.mxu0 0.0
    %603 = vmatpush1.msra.mxu0 0.0
    %604 = vmatprep.subr.mxu0 0.0
    %605 = vmatpush1.msra.mxu0 0.0
    %606 = vmatprep.subr.mxu0 0.0
    %607 = vmatpush1.msra.mxu0 0.0
    %608 = vmatprep.subr.mxu0 0.0
    %609 = vmatpush1.msra.mxu0 0.0
    %610 = vmatprep.subr.mxu0 0.0
    %611 = vmatpush1.msra.mxu0 0.0
    %612 = vmatprep.subr.mxu0 0.0
    %613 = vmatpush1.msra.mxu0 0.0
    %614 = vmatprep.subr.mxu0 0.0
    %615 = vmatpush1.msra.mxu0 0.0
    %616 = vmatprep.subr.mxu0 0.0
    %617 = vmatpush1.msra.mxu0 0.0
    %618 = vmatprep.subr.mxu0 0.0
    %619 = vmatpush1.msra.mxu0 0.0
    %620 = vmatprep.subr.mxu0 0.0
    %621 = vmatpush1.msra.mxu0 0.0
    %622 = vmatprep.subr.mxu0 0.0
    %623 = vmatpush1.msra.mxu0 0.0
    %624 = vmatprep.mubr.f32.mxu0 0.0
    %625 = vmatmul.mubr.f32.gmra.mrb[0].mxu0 %v546
    %v626 = vpop.f32.mrb[0].mxu0
    %v627 = vadd.f32 0.0, %v626
    %v628 = vpop.f32.mrb[0].mxu0
    %v629 = vadd.f32 0.0, %v628
    %630 = vdwg.mxu0
    %631 = vmatprep.subr.mxu0 %v554
    %632 = vmatpush1.msra.mxu0 %v552
    %633 = vmatprep.subr.mxu0 0.0
    %634 = vmatpush1.msra.mxu0 0.0
    %635 = vmatprep.subr.mxu0 0.0
    %636 = vmatpush1.msra.mxu0 0.0
    %637 = vmatprep.subr.mxu0 0.0
    %638 = vmatpush1.msra.mxu0 0.0
    %639 = vmatprep.subr.mxu0 0.0
    %640 = vmatpush1.msra.mxu0 0.0
    %641 = vmatprep.subr.mxu0 0.0
    %642 = vmatpush1.msra.mxu0 0.0
    %643 = vmatprep.subr.mxu0 0.0
    %644 = vmatpush1.msra.mxu0 0.0
    %645 = vmatprep.subr.mxu0 0.0
    %646 = vmatpush1.msra.mxu0 0.0
    %647 = vmatprep.subr.mxu0 0.0
    %648 = vmatpush1.msra.mxu0 0.0
    %649 = vmatprep.subr.mxu0 0.0
    %650 = vmatpush1.msra.mxu0 0.0
    %651 = vmatprep.subr.mxu0 0.0
    %652 = vmatpush1.msra.mxu0 0.0
    %653 = vmatprep.subr.mxu0 0.0
    %654 = vmatpush1.msra.mxu0 0.0
    %655 = vmatprep.subr.mxu0 0.0
    %656 = vmatpush1.msra.mxu0 0.0
    %657 = vmatprep.subr.mxu0 0.0
    %658 = vmatpush1.msra.mxu0 0.0
    %659 = vmatprep.subr.mxu0 0.0
    %660 = vmatpush1.msra.mxu0 0.0
    %661 = vmatprep.subr.mxu0 0.0
    %662 = vmatpush1.msra.mxu0 0.0
    %663 = vmatprep.subr.mxu0 0.0
    %664 = vmatpush1.msra.mxu0 0.0
    %665 = vmatprep.subr.mxu0 0.0
    %666 = vmatpush1.msra.mxu0 0.0
    %667 = vmatprep.subr.mxu0 0.0
    %668 = vmatpush1.msra.mxu0 0.0
    %669 = vmatprep.subr.mxu0 0.0
    %670 = vmatpush1.msra.mxu0 0.0
    %671 = vmatprep.subr.mxu0 0.0
    %672 = vmatpush1.msra.mxu0 0.0
    %673 = vmatprep.subr.mxu0 0.0
    %674 = vmatpush1.msra.mxu0 0.0
    %675 = vmatprep.subr.mxu0 0.0
    %676 = vmatpush1.msra.mxu0 0.0
    %677 = vmatprep.subr.mxu0 0.0
    %678 = vmatpush1.msra.mxu0 0.0
    %679 = vmatprep.subr.mxu0 0.0
    %680 = vmatpush1.msra.mxu0 0.0
    %681 = vmatprep.subr.mxu0 0.0
    %682 = vmatpush1.msra.mxu0 0.0
    %683 = vmatprep.subr.mxu0 0.0
    %684 = vmatpush1.msra.mxu0 0.0
    %685 = vmatprep.subr.mxu0 0.0
    %686 = vmatpush1.msra.mxu0 0.0
    %687 = vmatprep.subr.mxu0 0.0
    %688 = vmatpush1.msra.mxu0 0.0
    %689 = vmatprep.subr.mxu0 0.0
    %690 = vmatpush1.msra.mxu0 0.0
    %691 = vmatprep.subr.mxu0 0.0
    %692 = vmatpush1.msra.mxu0 0.0
    %693 = vmatprep.subr.mxu0 0.0
    %694 = vmatpush1.msra.mxu0 0.0
    %695 = vmatprep.mubr.f32.mxu0 0.0
    %696 = vmatmul.mubr.f32.gmra.mrb[0].mxu0 %v546
    %v697 = vpop.f32.mrb[0].mxu0
    %v698 = vadd.f32 0.0, %v697
    %v699 = vpop.f32.mrb[0].mxu0
    %v700 = vadd.f32 0.0, %v699
    %701 = vdwg.mxu0
    %702 = vmatprep.subr.mxu0 %v558
    %703 = vmatpush1.msra.mxu0 %v556
    %704 = vmatprep.subr.mxu0 0.0
    %705 = vmatpush1.msra.mxu0 0.0
    %706 = vmatprep.subr.mxu0 0.0
    %707 = vmatpush1.msra.mxu0 0.0
    %708 = vmatprep.subr.mxu0 0.0
    %709 = vmatpush1.msra.mxu0 0.0
    %710 = vmatprep.subr.mxu0 0.0
    %711 = vmatpush1.msra.mxu0 0.0
    %712 = vmatprep.subr.mxu0 0.0
    %713 = vmatpush1.msra.mxu0 0.0
    %714 = vmatprep.subr.mxu0 0.0
    %715 = vmatpush1.msra.mxu0 0.0
    %716 = vmatprep.subr.mxu0 0.0
    %717 = vmatpush1.msra.mxu0 0.0
    %718 = vmatprep.subr.mxu0 0.0
    %719 = vmatpush1.msra.mxu0 0.0
    %720 = vmatprep.subr.mxu0 0.0
    %721 = vmatpush1.msra.mxu0 0.0
    %722 = vmatprep.subr.mxu0 0.0
    %723 = vmatpush1.msra.mxu0 0.0
    %724 = vmatprep.subr.mxu0 0.0
    %725 = vmatpush1.msra.mxu0 0.0
    %726 = vmatprep.subr.mxu0 0.0
    %727 = vmatpush1.msra.mxu0 0.0
    %728 = vmatprep.subr.mxu0 0.0
    %729 = vmatpush1.msra.mxu0 0.0
    %730 = vmatprep.subr.mxu0 0.0
    %731 = vmatpush1.msra.mxu0 0.0
    %732 = vmatprep.subr.mxu0 0.0
    %733 = vmatpush1.msra.mxu0 0.0
    %734 = vmatprep.subr.mxu0 0.0
    %735 = vmatpush1.msra.mxu0 0.0
    %736 = vmatprep.subr.mxu0 0.0
    %737 = vmatpush1.msra.mxu0 0.0
    %738 = vmatprep.subr.mxu0 0.0
    %739 = vmatpush1.msra.mxu0 0.0
    %740 = vmatprep.subr.mxu0 0.0
    %741 = vmatpush1.msra.mxu0 0.0
    %742 = vmatprep.subr.mxu0 0.0
    %743 = vmatpush1.msra.mxu0 0.0
    %744 = vmatprep.subr.mxu0 0.0
    %745 = vmatpush1.msra.mxu0 0.0
    %746 = vmatprep.subr.mxu0 0.0
    %747 = vmatpush1.msra.mxu0 0.0
    %748 = vmatprep.subr.mxu0 0.0
    %749 = vmatpush1.msra.mxu0 0.0
    %750 = vmatprep.subr.mxu0 0.0
    %751 = vmatpush1.msra.mxu0 0.0
    %752 = vmatprep.subr.mxu0 0.0
    %753 = vmatpush1.msra.mxu0 0.0
    %754 = vmatprep.subr.mxu0 0.0
    %755 = vmatpush1.msra.mxu0 0.0
    %756 = vmatprep.subr.mxu0 0.0
    %757 = vmatpush1.msra.mxu0 0.0
    %758 = vmatprep.subr.mxu0 0.0
    %759 = vmatpush1.msra.mxu0 0.0
    %760 = vmatprep.subr.mxu0 0.0
    %761 = vmatpush1.msra.mxu0 0.0
    %762 = vmatprep.subr.mxu0 0.0
    %763 = vmatpush1.msra.mxu0 0.0
    %764 = vmatprep.subr.mxu0 0.0
    %765 = vmatpush1.msra.mxu0 0.0
    %766 = vmatprep.mubr.f32.mxu0 0.0
    %767 = vmatmul.mubr.f32.gmra.mrb[0].mxu0 %v546
    %v768 = vpop.f32.mrb[0].mxu0
    %v769 = vadd.f32 0.0, %v768
    %v770 = vpop.f32.mrb[0].mxu0
    %v771 = vadd.f32 0.0, %v770
    %772 = vdwg.mxu0
    %v773 = vadd.f32 %v379, %v627
    %v774 = vadd.f32 %v381, %v629
    %v775 = vadd.f32 %v450, %v698
    %v776 = vadd.f32 %v452, %v700
    %v777 = vadd.f32 %v521, %v769
    %v778 = vadd.f32 %v523, %v771
    %s779 = scalar_lea.vmem %s2, 12
    %v780 = vld [vmem:[%s779] sm:$0xf]
    %781 = vrot.lane.b32.xlu0 %v37, 110
    %v782 = vpop.permute.xlu0 %781
    %783 = vrot.lane.b32.xlu0 %v46, 110
    %v784 = vpop.permute.xlu0 %783
    %785 = vrot.lane.b32.xlu0 %v38, 110
    %v786 = vpop.permute.xlu0 %785
    %787 = vrot.lane.b32.xlu0 %v47, 110
    %v788 = vpop.permute.xlu0 %787
    %789 = vrot.lane.b32.xlu0 %v39, 110
    %v790 = vpop.permute.xlu0 %789
    %791 = vrot.lane.b32.xlu0 %v48, 110
    %v792 = vpop.permute.xlu0 %791
    %vm793 = vcmask 900096
    %v794 = vsel %vm793, %v782, %v784
    %v795 = vsel %vm793, %v784, %v786
    %v796 = vsel %vm793, %v786, %v788
    %v797 = vsel %vm793, %v788, %v790
    %v798 = vsel %vm793, %v790, %v792
    %v800 = vsel %vm67, %v780, 0
    %v802 = vsel %vm71, %v794, 0
    %v804 = vsel %vm71, %v795, 0
    %v806 = vsel %vm71, %v796, 0
    %v808 = vsel %vm71, %v797, 0
    %v810 = vsel %vm71, %v798, 0
    %v812 = vsel %vm71, %v792, 0
    %814 = vmatprep.subr.mxu0 %v804
    %815 = vmatpush1.msra.mxu0 %v802
    %816 = vmatprep.subr.mxu0 0.0
    %817 = vmatpush1.msra.mxu0 0.0
    %818 = vmatprep.subr.mxu0 0.0
    %819 = vmatpush1.msra.mxu0 0.0
    %820 = vmatprep.subr.mxu0 0.0
    %821 = vmatpush1.msra.mxu0 0.0
    %822 = vmatprep.subr.mxu0 0.0
    %823 = vmatpush1.msra.mxu0 0.0
    %824 = vmatprep.subr.mxu0 0.0
    %825 = vmatpush1.msra.mxu0 0.0
    %826 = vmatprep.subr.mxu0 0.0
    %827 = vmatpush1.msra.mxu0 0.0
    %828 = vmatprep.subr.mxu0 0.0
    %829 = vmatpush1.msra.mxu0 0.0
    %830 = vmatprep.subr.mxu0 0.0
    %831 = vmatpush1.msra.mxu0 0.0
    %832 = vmatprep.subr.mxu0 0.0
    %833 = vmatpush1.msra.mxu0 0.0
    %834 = vmatprep.subr.mxu0 0.0
    %835 = vmatpush1.msra.mxu0 0.0
    %836 = vmatprep.subr.mxu0 0.0
    %837 = vmatpush1.msra.mxu0 0.0
    %838 = vmatprep.subr.mxu0 0.0
    %839 = vmatpush1.msra.mxu0 0.0
    %840 = vmatprep.subr.mxu0 0.0
    %841 = vmatpush1.msra.mxu0 0.0
    %842 = vmatprep.subr.mxu0 0.0
    %843 = vmatpush1.msra.mxu0 0.0
    %844 = vmatprep.subr.mxu0 0.0
    %845 = vmatpush1.msra.mxu0 0.0
    %846 = vmatprep.subr.mxu0 0.0
    %847 = vmatpush1.msra.mxu0 0.0
    %848 = vmatprep.subr.mxu0 0.0
    %849 = vmatpush1.msra.mxu0 0.0
    %850 = vmatprep.subr.mxu0 0.0
    %851 = vmatpush1.msra.mxu0 0.0
    %852 = vmatprep.subr.mxu0 0.0
    %853 = vmatpush1.msra.mxu0 0.0
    %854 = vmatprep.subr.mxu0 0.0
    %855 = vmatpush1.msra.mxu0 0.0
    %856 = vmatprep.subr.mxu0 0.0
    %857 = vmatpush1.msra.mxu0 0.0
    %858 = vmatprep.subr.mxu0 0.0
    %859 = vmatpush1.msra.mxu0 0.0
    %860 = vmatprep.subr.mxu0 0.0
    %861 = vmatpush1.msra.mxu0 0.0
    %862 = vmatprep.subr.mxu0 0.0
    %863 = vmatpush1.msra.mxu0 0.0
    %864 = vmatprep.subr.mxu0 0.0
    %865 = vmatpush1.msra.mxu0 0.0
    %866 = vmatprep.subr.mxu0 0.0
    %867 = vmatpush1.msra.mxu0 0.0
    %868 = vmatprep.subr.mxu0 0.0
    %869 = vmatpush1.msra.mxu0 0.0
    %870 = vmatprep.subr.mxu0 0.0
    %871 = vmatpush1.msra.mxu0 0.0
    %872 = vmatprep.subr.mxu0 0.0
    %873 = vmatpush1.msra.mxu0 0.0
    %874 = vmatprep.subr.mxu0 0.0
    %875 = vmatpush1.msra.mxu0 0.0
    %876 = vmatprep.subr.mxu0 0.0
    %877 = vmatpush1.msra.mxu0 0.0
    %878 = vmatprep.mubr.f32.mxu0 0.0
    %879 = vmatmul.mubr.f32.gmra.mrb[0].mxu0 %v800
    %v880 = vpop.f32.mrb[0].mxu0
    %v881 = vadd.f32 0.0, %v880
    %v882 = vpop.f32.mrb[0].mxu0
    %v883 = vadd.f32 0.0, %v882
    %884 = vdwg.mxu0
    %885 = vmatprep.subr.mxu0 %v808
    %886 = vmatpush1.msra.mxu0 %v806
    %887 = vmatprep.subr.mxu0 0.0
    %888 = vmatpush1.msra.mxu0 0.0
    %889 = vmatprep.subr.mxu0 0.0
    %890 = vmatpush1.msra.mxu0 0.0
    %891 = vmatprep.subr.mxu0 0.0
    %892 = vmatpush1.msra.mxu0 0.0
    %893 = vmatprep.subr.mxu0 0.0
    %894 = vmatpush1.msra.mxu0 0.0
    %895 = vmatprep.subr.mxu0 0.0
    %896 = vmatpush1.msra.mxu0 0.0
    %897 = vmatprep.subr.mxu0 0.0
    %898 = vmatpush1.msra.mxu0 0.0
    %899 = vmatprep.subr.mxu0 0.0
    %900 = vmatpush1.msra.mxu0 0.0
    %901 = vmatprep.subr.mxu0 0.0
    %902 = vmatpush1.msra.mxu0 0.0
    %903 = vmatprep.subr.mxu0 0.0
    %904 = vmatpush1.msra.mxu0 0.0
    %905 = vmatprep.subr.mxu0 0.0
    %906 = vmatpush1.msra.mxu0 0.0
    %907 = vmatprep.subr.mxu0 0.0
    %908 = vmatpush1.msra.mxu0 0.0
    %909 = vmatprep.subr.mxu0 0.0
    %910 = vmatpush1.msra.mxu0 0.0
    %911 = vmatprep.subr.mxu0 0.0
    %912 = vmatpush1.msra.mxu0 0.0
    %913 = vmatprep.subr.mxu0 0.0
    %914 = vmatpush1.msra.mxu0 0.0
    %915 = vmatprep.subr.mxu0 0.0
    %916 = vmatpush1.msra.mxu0 0.0
    %917 = vmatprep.subr.mxu0 0.0
    %918 = vmatpush1.msra.mxu0 0.0
    %919 = vmatprep.subr.mxu0 0.0
    %920 = vmatpush1.msra.mxu0 0.0
    %921 = vmatprep.subr.mxu0 0.0
    %922 = vmatpush1.msra.mxu0 0.0
    %923 = vmatprep.subr.mxu0 0.0
    %924 = vmatpush1.msra.mxu0 0.0
    %925 = vmatprep.subr.mxu0 0.0
    %926 = vmatpush1.msra.mxu0 0.0
    %927 = vmatprep.subr.mxu0 0.0
    %928 = vmatpush1.msra.mxu0 0.0
    %929 = vmatprep.subr.mxu0 0.0
    %930 = vmatpush1.msra.mxu0 0.0
    %931 = vmatprep.subr.mxu0 0.0
    %932 = vmatpush1.msra.mxu0 0.0
    %933 = vmatprep.subr.mxu0 0.0
    %934 = vmatpush1.msra.mxu0 0.0
    %935 = vmatprep.subr.mxu0 0.0
    %936 = vmatpush1.msra.mxu0 0.0
    %937 = vmatprep.subr.mxu0 0.0
    %938 = vmatpush1.msra.mxu0 0.0
    %939 = vmatprep.subr.mxu0 0.0
    %940 = vmatpush1.msra.mxu0 0.0
    %941 = vmatprep.subr.mxu0 0.0
    %942 = vmatpush1.msra.mxu0 0.0
    %943 = vmatprep.subr.mxu0 0.0
    %944 = vmatpush1.msra.mxu0 0.0
    %945 = vmatprep.subr.mxu0 0.0
    %946 = vmatpush1.msra.mxu0 0.0
    %947 = vmatprep.subr.mxu0 0.0
    %948 = vmatpush1.msra.mxu0 0.0
    %949 = vmatprep.mubr.f32.mxu0 0.0
    %950 = vmatmul.mubr.f32.gmra.mrb[0].mxu0 %v800
    %v951 = vpop.f32.mrb[0].mxu0
    %v952 = vadd.f32 0.0, %v951
    %v953 = vpop.f32.mrb[0].mxu0
    %v954 = vadd.f32 0.0, %v953
    %955 = vdwg.mxu0
    %956 = vmatprep.subr.mxu0 %v812
    %957 = vmatpush1.msra.mxu0 %v810
    %958 = vmatprep.subr.mxu0 0.0
    %959 = vmatpush1.msra.mxu0 0.0
    %960 = vmatprep.subr.mxu0 0.0
    %961 = vmatpush1.msra.mxu0 0.0
    %962 = vmatprep.subr.mxu0 0.0
    %963 = vmatpush1.msra.mxu0 0.0
    %964 = vmatprep.subr.mxu0 0.0
    %965 = vmatpush1.msra.mxu0 0.0
    %966 = vmatprep.subr.mxu0 0.0
    %967 = vmatpush1.msra.mxu0 0.0
    %968 = vmatprep.subr.mxu0 0.0
    %969 = vmatpush1.msra.mxu0 0.0
    %970 = vmatprep.subr.mxu0 0.0
    %971 = vmatpush1.msra.mxu0 0.0
    %972 = vmatprep.subr.mxu0 0.0
    %973 = vmatpush1.msra.mxu0 0.0
    %974 = vmatprep.subr.mxu0 0.0
    %975 = vmatpush1.msra.mxu0 0.0
    %976 = vmatprep.subr.mxu0 0.0
    %977 = vmatpush1.msra.mxu0 0.0
    %978 = vmatprep.subr.mxu0 0.0
    %979 = vmatpush1.msra.mxu0 0.0
    %980 = vmatprep.subr.mxu0 0.0
    %981 = vmatpush1.msra.mxu0 0.0
    %982 = vmatprep.subr.mxu0 0.0
    %983 = vmatpush1.msra.mxu0 0.0
    %984 = vmatprep.subr.mxu0 0.0
    %985 = vmatpush1.msra.mxu0 0.0
    %986 = vmatprep.subr.mxu0 0.0
    %987 = vmatpush1.msra.mxu0 0.0
    %988 = vmatprep.subr.mxu0 0.0
    %989 = vmatpush1.msra.mxu0 0.0
    %990 = vmatprep.subr.mxu0 0.0
    %991 = vmatpush1.msra.mxu0 0.0
    %992 = vmatprep.subr.mxu0 0.0
    %993 = vmatpush1.msra.mxu0 0.0
    %994 = vmatprep.subr.mxu0 0.0
    %995 = vmatpush1.msra.mxu0 0.0
    %996 = vmatprep.subr.mxu0 0.0
    %997 = vmatpush1.msra.mxu0 0.0
    %998 = vmatprep.subr.mxu0 0.0
    %999 = vmatpush1.msra.mxu0 0.0
    %1000 = vmatprep.subr.mxu0 0.0
    %1001 = vmatpush1.msra.mxu0 0.0
    %1002 = vmatprep.subr.mxu0 0.0
    %1003 = vmatpush1.msra.mxu0 0.0
    %1004 = vmatprep.subr.mxu0 0.0
    %1005 = vmatpush1.msra.mxu0 0.0
    %1006 = vmatprep.subr.mxu0 0.0
    %1007 = vmatpush1.msra.mxu0 0.0
    %1008 = vmatprep.subr.mxu0 0.0
    %1009 = vmatpush1.msra.mxu0 0.0
    %1010 = vmatprep.subr.mxu0 0.0
    %1011 = vmatpush1.msra.mxu0 0.0
    %1012 = vmatprep.subr.mxu0 0.0
    %1013 = vmatpush1.msra.mxu0 0.0
    %1014 = vmatprep.subr.mxu0 0.0
    %1015 = vmatpush1.msra.mxu0 0.0
    %1016 = vmatprep.subr.mxu0 0.0
    %1017 = vmatpush1.msra.mxu0 0.0
    %1018 = vmatprep.subr.mxu0 0.0
    %1019 = vmatpush1.msra.mxu0 0.0
    %1020 = vmatprep.mubr.f32.mxu0 0.0
    %1021 = vmatmul.mubr.f32.gmra.mrb[0].mxu0 %v800
    %v1022 = vpop.f32.mrb[0].mxu0
    %v1023 = vadd.f32 0.0, %v1022
    %v1024 = vpop.f32.mrb[0].mxu0
    %v1025 = vadd.f32 0.0, %v1024
    %1026 = vdwg.mxu0
    %v1027 = vadd.f32 %v773, %v881
    %v1028 = vadd.f32 %v774, %v883
    %v1029 = vadd.f32 %v775, %v952
    %v1030 = vadd.f32 %v776, %v954
    %v1031 = vadd.f32 %v777, %v1023
    %v1032 = vadd.f32 %v778, %v1025
    %s1033 = scalar_lea.vmem %s2, 16
    %v1034 = vld [vmem:[%s1033] sm:$0xf]
    %1035 = vrot.lane.b32.xlu0 %v37, 109
    %v1036 = vpop.permute.xlu0 %1035
    %1037 = vrot.lane.b32.xlu0 %v46, 109
    %v1038 = vpop.permute.xlu0 %1037
    %1039 = vrot.lane.b32.xlu0 %v38, 109
    %v1040 = vpop.permute.xlu0 %1039
    %1041 = vrot.lane.b32.xlu0 %v47, 109
    %v1042 = vpop.permute.xlu0 %1041
    %1043 = vrot.lane.b32.xlu0 %v39, 109
    %v1044 = vpop.permute.xlu0 %1043
    %1045 = vrot.lane.b32.xlu0 %v48, 109
    %v1046 = vpop.permute.xlu0 %1045
    %vm1047 = vcmask 891904
    %v1048 = vsel %vm1047, %v1036, %v1038
    %v1049 = vsel %vm1047, %v1038, %v1040
    %v1050 = vsel %vm1047, %v1040, %v1042
    %v1051 = vsel %vm1047, %v1042, %v1044
    %v1052 = vsel %vm1047, %v1044, %v1046
    %v1054 = vsel %vm67, %v1034, 0
    %v1056 = vsel %vm71, %v1048, 0
    %v1058 = vsel %vm71, %v1049, 0
    %v1060 = vsel %vm71, %v1050, 0
    %v1062 = vsel %vm71, %v1051, 0
    %v1064 = vsel %vm71, %v1052, 0
    %v1066 = vsel %vm71, %v1046, 0
    %1068 = vmatprep.subr.mxu0 %v1058
    %1069 = vmatpush1.msra.mxu0 %v1056
    %1070 = vmatprep.subr.mxu0 0.0
    %1071 = vmatpush1.msra.mxu0 0.0
    %1072 = vmatprep.subr.mxu0 0.0
    %1073 = vmatpush1.msra.mxu0 0.0
    %1074 = vmatprep.subr.mxu0 0.0
    %1075 = vmatpush1.msra.mxu0 0.0
    %1076 = vmatprep.subr.mxu0 0.0
    %1077 = vmatpush1.msra.mxu0 0.0
    %1078 = vmatprep.subr.mxu0 0.0
    %1079 = vmatpush1.msra.mxu0 0.0
    %1080 = vmatprep.subr.mxu0 0.0
    %1081 = vmatpush1.msra.mxu0 0.0
    %1082 = vmatprep.subr.mxu0 0.0
    %1083 = vmatpush1.msra.mxu0 0.0
    %1084 = vmatprep.subr.mxu0 0.0
    %1085 = vmatpush1.msra.mxu0 0.0
    %1086 = vmatprep.subr.mxu0 0.0
    %1087 = vmatpush1.msra.mxu0 0.0
    %1088 = vmatprep.subr.mxu0 0.0
    %1089 = vmatpush1.msra.mxu0 0.0
    %1090 = vmatprep.subr.mxu0 0.0
    %1091 = vmatpush1.msra.mxu0 0.0
    %1092 = vmatprep.subr.mxu0 0.0
    %1093 = vmatpush1.msra.mxu0 0.0
    %1094 = vmatprep.subr.mxu0 0.0
    %1095 = vmatpush1.msra.mxu0 0.0
    %1096 = vmatprep.subr.mxu0 0.0
    %1097 = vmatpush1.msra.mxu0 0.0
    %1098 = vmatprep.subr.mxu0 0.0
    %1099 = vmatpush1.msra.mxu0 0.0
    %1100 = vmatprep.subr.mxu0 0.0
    %1101 = vmatpush1.msra.mxu0 0.0
    %1102 = vmatprep.subr.mxu0 0.0
    %1103 = vmatpush1.msra.mxu0 0.0
    %1104 = vmatprep.subr.mxu0 0.0
    %1105 = vmatpush1.msra.mxu0 0.0
    %1106 = vmatprep.subr.mxu0 0.0
    %1107 = vmatpush1.msra.mxu0 0.0
    %1108 = vmatprep.subr.mxu0 0.0
    %1109 = vmatpush1.msra.mxu0 0.0
    %1110 = vmatprep.subr.mxu0 0.0
    %1111 = vmatpush1.msra.mxu0 0.0
    %1112 = vmatprep.subr.mxu0 0.0
    %1113 = vmatpush1.msra.mxu0 0.0
    %1114 = vmatprep.subr.mxu0 0.0
    %1115 = vmatpush1.msra.mxu0 0.0
    %1116 = vmatprep.subr.mxu0 0.0
    %1117 = vmatpush1.msra.mxu0 0.0
    %1118 = vmatprep.subr.mxu0 0.0
    %1119 = vmatpush1.msra.mxu0 0.0
    %1120 = vmatprep.subr.mxu0 0.0
    %1121 = vmatpush1.msra.mxu0 0.0
    %1122 = vmatprep.subr.mxu0 0.0
    %1123 = vmatpush1.msra.mxu0 0.0
    %1124 = vmatprep.subr.mxu0 0.0
    %1125 = vmatpush1.msra.mxu0 0.0
    %1126 = vmatprep.subr.mxu0 0.0
    %1127 = vmatpush1.msra.mxu0 0.0
    %1128 = vmatprep.subr.mxu0 0.0
    %1129 = vmatpush1.msra.mxu0 0.0
    %1130 = vmatprep.subr.mxu0 0.0
    %1131 = vmatpush1.msra.mxu0 0.0
    %1132 = vmatprep.mubr.f32.mxu0 0.0
    %1133 = vmatmul.mubr.f32.gmra.mrb[0].mxu0 %v1054
    %v1134 = vpop.f32.mrb[0].mxu0
    %v1135 = vadd.f32 0.0, %v1134
    %v1136 = vpop.f32.mrb[0].mxu0
    %v1137 = vadd.f32 0.0, %v1136
    %1138 = vdwg.mxu0
    %1139 = vmatprep.subr.mxu0 %v1062
    %1140 = vmatpush1.msra.mxu0 %v1060
    %1141 = vmatprep.subr.mxu0 0.0
    %1142 = vmatpush1.msra.mxu0 0.0
    %1143 = vmatprep.subr.mxu0 0.0
    %1144 = vmatpush1.msra.mxu0 0.0
    %1145 = vmatprep.subr.mxu0 0.0
    %1146 = vmatpush1.msra.mxu0 0.0
    %1147 = vmatprep.subr.mxu0 0.0
    %1148 = vmatpush1.msra.mxu0 0.0
    %1149 = vmatprep.subr.mxu0 0.0
    %1150 = vmatpush1.msra.mxu0 0.0
    %1151 = vmatprep.subr.mxu0 0.0
    %1152 = vmatpush1.msra.mxu0 0.0
    %1153 = vmatprep.subr.mxu0 0.0
    %1154 = vmatpush1.msra.mxu0 0.0
    %1155 = vmatprep.subr.mxu0 0.0
    %1156 = vmatpush1.msra.mxu0 0.0
    %1157 = vmatprep.subr.mxu0 0.0
    %1158 = vmatpush1.msra.mxu0 0.0
    %1159 = vmatprep.subr.mxu0 0.0
    %1160 = vmatpush1.msra.mxu0 0.0
    %1161 = vmatprep.subr.mxu0 0.0
    %1162 = vmatpush1.msra.mxu0 0.0
    %1163 = vmatprep.subr.mxu0 0.0
    %1164 = vmatpush1.msra.mxu0 0.0
    %1165 = vmatprep.subr.mxu0 0.0
    %1166 = vmatpush1.msra.mxu0 0.0
    %1167 = vmatprep.subr.mxu0 0.0
    %1168 = vmatpush1.msra.mxu0 0.0
    %1169 = vmatprep.subr.mxu0 0.0
    %1170 = vmatpush1.msra.mxu0 0.0
    %1171 = vmatprep.subr.mxu0 0.0
    %1172 = vmatpush1.msra.mxu0 0.0
    %1173 = vmatprep.subr.mxu0 0.0
    %1174 = vmatpush1.msra.mxu0 0.0
    %1175 = vmatprep.subr.mxu0 0.0
    %1176 = vmatpush1.msra.mxu0 0.0
    %1177 = vmatprep.subr.mxu0 0.0
    %1178 = vmatpush1.msra.mxu0 0.0
    %1179 = vmatprep.subr.mxu0 0.0
    %1180 = vmatpush1.msra.mxu0 0.0
    %1181 = vmatprep.subr.mxu0 0.0
    %1182 = vmatpush1.msra.mxu0 0.0
    %1183 = vmatprep.subr.mxu0 0.0
    %1184 = vmatpush1.msra.mxu0 0.0
    %1185 = vmatprep.subr.mxu0 0.0
    %1186 = vmatpush1.msra.mxu0 0.0
    %1187 = vmatprep.subr.mxu0 0.0
    %1188 = vmatpush1.msra.mxu0 0.0
    %1189 = vmatprep.subr.mxu0 0.0
    %1190 = vmatpush1.msra.mxu0 0.0
    %1191 = vmatprep.subr.mxu0 0.0
    %1192 = vmatpush1.msra.mxu0 0.0
    %1193 = vmatprep.subr.mxu0 0.0
    %1194 = vmatpush1.msra.mxu0 0.0
    %1195 = vmatprep.subr.mxu0 0.0
    %1196 = vmatpush1.msra.mxu0 0.0
    %1197 = vmatprep.subr.mxu0 0.0
    %1198 = vmatpush1.msra.mxu0 0.0
    %1199 = vmatprep.subr.mxu0 0.0
    %1200 = vmatpush1.msra.mxu0 0.0
    %1201 = vmatprep.subr.mxu0 0.0
    %1202 = vmatpush1.msra.mxu0 0.0
    %1203 = vmatprep.mubr.f32.mxu0 0.0
    %1204 = vmatmul.mubr.f32.gmra.mrb[0].mxu0 %v1054
    %v1205 = vpop.f32.mrb[0].mxu0
    %v1206 = vadd.f32 0.0, %v1205
    %v1207 = vpop.f32.mrb[0].mxu0
    %v1208 = vadd.f32 0.0, %v1207
    %1209 = vdwg.mxu0
    %1210 = vmatprep.subr.mxu0 %v1066
    %1211 = vmatpush1.msra.mxu0 %v1064
    %1212 = vmatprep.subr.mxu0 0.0
    %1213 = vmatpush1.msra.mxu0 0.0
    %1214 = vmatprep.subr.mxu0 0.0
    %1215 = vmatpush1.msra.mxu0 0.0
    %1216 = vmatprep.subr.mxu0 0.0
    %1217 = vmatpush1.msra.mxu0 0.0
    %1218 = vmatprep.subr.mxu0 0.0
    %1219 = vmatpush1.msra.mxu0 0.0
    %1220 = vmatprep.subr.mxu0 0.0
    %1221 = vmatpush1.msra.mxu0 0.0
    %1222 = vmatprep.subr.mxu0 0.0
    %1223 = vmatpush1.msra.mxu0 0.0
    %1224 = vmatprep.subr.mxu0 0.0
    %1225 = vmatpush1.msra.mxu0 0.0
    %1226 = vmatprep.subr.mxu0 0.0
    %1227 = vmatpush1.msra.mxu0 0.0
    %1228 = vmatprep.subr.mxu0 0.0
    %1229 = vmatpush1.msra.mxu0 0.0
    %1230 = vmatprep.subr.mxu0 0.0
    %1231 = vmatpush1.msra.mxu0 0.0
    %1232 = vmatprep.subr.mxu0 0.0
    %1233 = vmatpush1.msra.mxu0 0.0
    %1234 = vmatprep.subr.mxu0 0.0
    %1235 = vmatpush1.msra.mxu0 0.0
    %1236 = vmatprep.subr.mxu0 0.0
    %1237 = vmatpush1.msra.mxu0 0.0
    %1238 = vmatprep.subr.mxu0 0.0
    %1239 = vmatpush1.msra.mxu0 0.0
    %1240 = vmatprep.subr.mxu0 0.0
    %1241 = vmatpush1.msra.mxu0 0.0
    %1242 = vmatprep.subr.mxu0 0.0
    %1243 = vmatpush1.msra.mxu0 0.0
    %1244 = vmatprep.subr.mxu0 0.0
    %1245 = vmatpush1.msra.mxu0 0.0
    %1246 = vmatprep.subr.mxu0 0.0
    %1247 = vmatpush1.msra.mxu0 0.0
    %1248 = vmatprep.subr.mxu0 0.0
    %1249 = vmatpush1.msra.mxu0 0.0
    %1250 = vmatprep.subr.mxu0 0.0
    %1251 = vmatpush1.msra.mxu0 0.0
    %1252 = vmatprep.subr.mxu0 0.0
    %1253 = vmatpush1.msra.mxu0 0.0
    %1254 = vmatprep.subr.mxu0 0.0
    %1255 = vmatpush1.msra.mxu0 0.0
    %1256 = vmatprep.subr.mxu0 0.0
    %1257 = vmatpush1.msra.mxu0 0.0
    %1258 = vmatprep.subr.mxu0 0.0
    %1259 = vmatpush1.msra.mxu0 0.0
    %1260 = vmatprep.subr.mxu0 0.0
    %1261 = vmatpush1.msra.mxu0 0.0
    %1262 = vmatprep.subr.mxu0 0.0
    %1263 = vmatpush1.msra.mxu0 0.0
    %1264 = vmatprep.subr.mxu0 0.0
    %1265 = vmatpush1.msra.mxu0 0.0
    %1266 = vmatprep.subr.mxu0 0.0
    %1267 = vmatpush1.msra.mxu0 0.0
    %1268 = vmatprep.subr.mxu0 0.0
    %1269 = vmatpush1.msra.mxu0 0.0
    %1270 = vmatprep.subr.mxu0 0.0
    %1271 = vmatpush1.msra.mxu0 0.0
    %1272 = vmatprep.subr.mxu0 0.0
    %1273 = vmatpush1.msra.mxu0 0.0
    %1274 = vmatprep.mubr.f32.mxu0 0.0
    %1275 = vmatmul.mubr.f32.gmra.mrb[0].mxu0 %v1054
    %v1276 = vpop.f32.mrb[0].mxu0
    %v1277 = vadd.f32 0.0, %v1276
    %v1278 = vpop.f32.mrb[0].mxu0
    %v1279 = vadd.f32 0.0, %v1278
    %1280 = vdwg.mxu0
    %v1281 = vadd.f32 %v1027, %v1135
    %v1282 = vadd.f32 %v1028, %v1137
    %v1283 = vadd.f32 %v1029, %v1206
    %v1284 = vadd.f32 %v1030, %v1208
    %v1285 = vadd.f32 %v1031, %v1277
    %v1286 = vadd.f32 %v1032, %v1279
    %s1287 = scalar_lea.vmem %s2, 20
    %v1288 = vld [vmem:[%s1287] sm:$0xf]
    %1289 = vrot.lane.b32.xlu0 %v37, 108
    %v1290 = vpop.permute.xlu0 %1289
    %1291 = vrot.lane.b32.xlu0 %v46, 108
    %v1292 = vpop.permute.xlu0 %1291
    %1293 = vrot.lane.b32.xlu0 %v38, 108
    %v1294 = vpop.permute.xlu0 %1293
    %1295 = vrot.lane.b32.xlu0 %v47, 108
    %v1296 = vpop.permute.xlu0 %1295
    %1297 = vrot.lane.b32.xlu0 %v39, 108
    %v1298 = vpop.permute.xlu0 %1297
    %1299 = vrot.lane.b32.xlu0 %v48, 108
    %v1300 = vpop.permute.xlu0 %1299
    %vm1301 = vcmask 883712
    %v1302 = vsel %vm1301, %v1290, %v1292
    %v1303 = vsel %vm1301, %v1292, %v1294
    %v1304 = vsel %vm1301, %v1294, %v1296
    %v1305 = vsel %vm1301, %v1296, %v1298
    %v1306 = vsel %vm1301, %v1298, %v1300
    %v1308 = vsel %vm67, %v1288, 0
    %v1310 = vsel %vm71, %v1302, 0
    %v1312 = vsel %vm71, %v1303, 0
    %v1314 = vsel %vm71, %v1304, 0
    %v1316 = vsel %vm71, %v1305, 0
    %v1318 = vsel %vm71, %v1306, 0
    %v1320 = vsel %vm71, %v1300, 0
    %1322 = vmatprep.subr.mxu0 %v1312
    %1323 = vmatpush1.msra.mxu0 %v1310
    %1324 = vmatprep.subr.mxu0 0.0
    %1325 = vmatpush1.msra.mxu0 0.0
    %1326 = vmatprep.subr.mxu0 0.0
    %1327 = vmatpush1.msra.mxu0 0.0
    %1328 = vmatprep.subr.mxu0 0.0
    %1329 = vmatpush1.msra.mxu0 0.0
    %1330 = vmatprep.subr.mxu0 0.0
    %1331 = vmatpush1.msra.mxu0 0.0
    %1332 = vmatprep.subr.mxu0 0.0
    %1333 = vmatpush1.msra.mxu0 0.0
    %1334 = vmatprep.subr.mxu0 0.0
    %1335 = vmatpush1.msra.mxu0 0.0
    %1336 = vmatprep.subr.mxu0 0.0
    %1337 = vmatpush1.msra.mxu0 0.0
    %1338 = vmatprep.subr.mxu0 0.0
    %1339 = vmatpush1.msra.mxu0 0.0
    %1340 = vmatprep.subr.mxu0 0.0
    %1341 = vmatpush1.msra.mxu0 0.0
    %1342 = vmatprep.subr.mxu0 0.0
    %1343 = vmatpush1.msra.mxu0 0.0
    %1344 = vmatprep.subr.mxu0 0.0
    %1345 = vmatpush1.msra.mxu0 0.0
    %1346 = vmatprep.subr.mxu0 0.0
    %1347 = vmatpush1.msra.mxu0 0.0
    %1348 = vmatprep.subr.mxu0 0.0
    %1349 = vmatpush1.msra.mxu0 0.0
    %1350 = vmatprep.subr.mxu0 0.0
    %1351 = vmatpush1.msra.mxu0 0.0
    %1352 = vmatprep.subr.mxu0 0.0
    %1353 = vmatpush1.msra.mxu0 0.0
    %1354 = vmatprep.subr.mxu0 0.0
    %1355 = vmatpush1.msra.mxu0 0.0
    %1356 = vmatprep.subr.mxu0 0.0
    %1357 = vmatpush1.msra.mxu0 0.0
    %1358 = vmatprep.subr.mxu0 0.0
    %1359 = vmatpush1.msra.mxu0 0.0
    %1360 = vmatprep.subr.mxu0 0.0
    %1361 = vmatpush1.msra.mxu0 0.0
    %1362 = vmatprep.subr.mxu0 0.0
    %1363 = vmatpush1.msra.mxu0 0.0
    %1364 = vmatprep.subr.mxu0 0.0
    %1365 = vmatpush1.msra.mxu0 0.0
    %1366 = vmatprep.subr.mxu0 0.0
    %1367 = vmatpush1.msra.mxu0 0.0
    %1368 = vmatprep.subr.mxu0 0.0
    %1369 = vmatpush1.msra.mxu0 0.0
    %1370 = vmatprep.subr.mxu0 0.0
    %1371 = vmatpush1.msra.mxu0 0.0
    %1372 = vmatprep.subr.mxu0 0.0
    %1373 = vmatpush1.msra.mxu0 0.0
    %1374 = vmatprep.subr.mxu0 0.0
    %1375 = vmatpush1.msra.mxu0 0.0
    %1376 = vmatprep.subr.mxu0 0.0
    %1377 = vmatpush1.msra.mxu0 0.0
    %1378 = vmatprep.subr.mxu0 0.0
    %1379 = vmatpush1.msra.mxu0 0.0
    %1380 = vmatprep.subr.mxu0 0.0
    %1381 = vmatpush1.msra.mxu0 0.0
    %1382 = vmatprep.subr.mxu0 0.0
    %1383 = vmatpush1.msra.mxu0 0.0
    %1384 = vmatprep.subr.mxu0 0.0
    %1385 = vmatpush1.msra.mxu0 0.0
    %1386 = vmatprep.mubr.f32.mxu0 0.0
    %1387 = vmatmul.mubr.f32.gmra.mrb[0].mxu0 %v1308
    %v1388 = vpop.f32.mrb[0].mxu0
    %v1389 = vadd.f32 0.0, %v1388
    %v1390 = vpop.f32.mrb[0].mxu0
    %v1391 = vadd.f32 0.0, %v1390
    %1392 = vdwg.mxu0
    %1393 = vmatprep.subr.mxu0 %v1316
    %1394 = vmatpush1.msra.mxu0 %v1314
    %1395 = vmatprep.subr.mxu0 0.0
    %1396 = vmatpush1.msra.mxu0 0.0
    %1397 = vmatprep.subr.mxu0 0.0
    %1398 = vmatpush1.msra.mxu0 0.0
    %1399 = vmatprep.subr.mxu0 0.0
    %1400 = vmatpush1.msra.mxu0 0.0
    %1401 = vmatprep.subr.mxu0 0.0
    %1402 = vmatpush1.msra.mxu0 0.0
    %1403 = vmatprep.subr.mxu0 0.0
    %1404 = vmatpush1.msra.mxu0 0.0
    %1405 = vmatprep.subr.mxu0 0.0
    %1406 = vmatpush1.msra.mxu0 0.0
    %1407 = vmatprep.subr.mxu0 0.0
    %1408 = vmatpush1.msra.mxu0 0.0
    %1409 = vmatprep.subr.mxu0 0.0
    %1410 = vmatpush1.msra.mxu0 0.0
    %1411 = vmatprep.subr.mxu0 0.0
    %1412 = vmatpush1.msra.mxu0 0.0
    %1413 = vmatprep.subr.mxu0 0.0
    %1414 = vmatpush1.msra.mxu0 0.0
    %1415 = vmatprep.subr.mxu0 0.0
    %1416 = vmatpush1.msra.mxu0 0.0
    %1417 = vmatprep.subr.mxu0 0.0
    %1418 = vmatpush1.msra.mxu0 0.0
    %1419 = vmatprep.subr.mxu0 0.0
    %1420 = vmatpush1.msra.mxu0 0.0
    %1421 = vmatprep.subr.mxu0 0.0
    %1422 = vmatpush1.msra.mxu0 0.0
    %1423 = vmatprep.subr.mxu0 0.0
    %1424 = vmatpush1.msra.mxu0 0.0
    %1425 = vmatprep.subr.mxu0 0.0
    %1426 = vmatpush1.msra.mxu0 0.0
    %1427 = vmatprep.subr.mxu0 0.0
    %1428 = vmatpush1.msra.mxu0 0.0
    %1429 = vmatprep.subr.mxu0 0.0
    %1430 = vmatpush1.msra.mxu0 0.0
    %1431 = vmatprep.subr.mxu0 0.0
    %1432 = vmatpush1.msra.mxu0 0.0
    %1433 = vmatprep.subr.mxu0 0.0
    %1434 = vmatpush1.msra.mxu0 0.0
    %1435 = vmatprep.subr.mxu0 0.0
    %1436 = vmatpush1.msra.mxu0 0.0
    %1437 = vmatprep.subr.mxu0 0.0
    %1438 = vmatpush1.msra.mxu0 0.0
    %1439 = vmatprep.subr.mxu0 0.0
    %1440 = vmatpush1.msra.mxu0 0.0
    %1441 = vmatprep.subr.mxu0 0.0
    %1442 = vmatpush1.msra.mxu0 0.0
    %1443 = vmatprep.subr.mxu0 0.0
    %1444 = vmatpush1.msra.mxu0 0.0
    %1445 = vmatprep.subr.mxu0 0.0
    %1446 = vmatpush1.msra.mxu0 0.0
    %1447 = vmatprep.subr.mxu0 0.0
    %1448 = vmatpush1.msra.mxu0 0.0
    %1449 = vmatprep.subr.mxu0 0.0
    %1450 = vmatpush1.msra.mxu0 0.0
    %1451 = vmatprep.subr.mxu0 0.0
    %1452 = vmatpush1.msra.mxu0 0.0
    %1453 = vmatprep.subr.mxu0 0.0
    %1454 = vmatpush1.msra.mxu0 0.0
    %1455 = vmatprep.subr.mxu0 0.0
    %1456 = vmatpush1.msra.mxu0 0.0
    %1457 = vmatprep.mubr.f32.mxu0 0.0
    %1458 = vmatmul.mubr.f32.gmra.mrb[0].mxu0 %v1308
    %v1459 = vpop.f32.mrb[0].mxu0
    %v1460 = vadd.f32 0.0, %v1459
    %v1461 = vpop.f32.mrb[0].mxu0
    %v1462 = vadd.f32 0.0, %v1461
    %1463 = vdwg.mxu0
    %1464 = vmatprep.subr.mxu0 %v1320
    %1465 = vmatpush1.msra.mxu0 %v1318
    %1466 = vmatprep.subr.mxu0 0.0
    %1467 = vmatpush1.msra.mxu0 0.0
    %1468 = vmatprep.subr.mxu0 0.0
    %1469 = vmatpush1.msra.mxu0 0.0
    %1470 = vmatprep.subr.mxu0 0.0
    %1471 = vmatpush1.msra.mxu0 0.0
    %1472 = vmatprep.subr.mxu0 0.0
    %1473 = vmatpush1.msra.mxu0 0.0
    %1474 = vmatprep.subr.mxu0 0.0
    %1475 = vmatpush1.msra.mxu0 0.0
    %1476 = vmatprep.subr.mxu0 0.0
    %1477 = vmatpush1.msra.mxu0 0.0
    %1478 = vmatprep.subr.mxu0 0.0
    %1479 = vmatpush1.msra.mxu0 0.0
    %1480 = vmatprep.subr.mxu0 0.0
    %1481 = vmatpush1.msra.mxu0 0.0
    %1482 = vmatprep.subr.mxu0 0.0
    %1483 = vmatpush1.msra.mxu0 0.0
    %1484 = vmatprep.subr.mxu0 0.0
    %1485 = vmatpush1.msra.mxu0 0.0
    %1486 = vmatprep.subr.mxu0 0.0
    %1487 = vmatpush1.msra.mxu0 0.0
    %1488 = vmatprep.subr.mxu0 0.0
    %1489 = vmatpush1.msra.mxu0 0.0
    %1490 = vmatprep.subr.mxu0 0.0
    %1491 = vmatpush1.msra.mxu0 0.0
    %1492 = vmatprep.subr.mxu0 0.0
    %1493 = vmatpush1.msra.mxu0 0.0
    %1494 = vmatprep.subr.mxu0 0.0
    %1495 = vmatpush1.msra.mxu0 0.0
    %1496 = vmatprep.subr.mxu0 0.0
    %1497 = vmatpush1.msra.mxu0 0.0
    %1498 = vmatprep.subr.mxu0 0.0
    %1499 = vmatpush1.msra.mxu0 0.0
    %1500 = vmatprep.subr.mxu0 0.0
    %1501 = vmatpush1.msra.mxu0 0.0
    %1502 = vmatprep.subr.mxu0 0.0
    %1503 = vmatpush1.msra.mxu0 0.0
    %1504 = vmatprep.subr.mxu0 0.0
    %1505 = vmatpush1.msra.mxu0 0.0
    %1506 = vmatprep.subr.mxu0 0.0
    %1507 = vmatpush1.msra.mxu0 0.0
    %1508 = vmatprep.subr.mxu0 0.0
    %1509 = vmatpush1.msra.mxu0 0.0
    %1510 = vmatprep.subr.mxu0 0.0
    %1511 = vmatpush1.msra.mxu0 0.0
    %1512 = vmatprep.subr.mxu0 0.0
    %1513 = vmatpush1.msra.mxu0 0.0
    %1514 = vmatprep.subr.mxu0 0.0
    %1515 = vmatpush1.msra.mxu0 0.0
    %1516 = vmatprep.subr.mxu0 0.0
    %1517 = vmatpush1.msra.mxu0 0.0
    %1518 = vmatprep.subr.mxu0 0.0
    %1519 = vmatpush1.msra.mxu0 0.0
    %1520 = vmatprep.subr.mxu0 0.0
    %1521 = vmatpush1.msra.mxu0 0.0
    %1522 = vmatprep.subr.mxu0 0.0
    %1523 = vmatpush1.msra.mxu0 0.0
    %1524 = vmatprep.subr.mxu0 0.0
    %1525 = vmatpush1.msra.mxu0 0.0
    %1526 = vmatprep.subr.mxu0 0.0
    %1527 = vmatpush1.msra.mxu0 0.0
    %1528 = vmatprep.mubr.f32.mxu0 0.0
    %1529 = vmatmul.mubr.f32.gmra.mrb[0].mxu0 %v1308
    %v1530 = vpop.f32.mrb[0].mxu0
    %v1531 = vadd.f32 0.0, %v1530
    %v1532 = vpop.f32.mrb[0].mxu0
    %v1533 = vadd.f32 0.0, %v1532
    %1534 = vdwg.mxu0
    %v1535 = vadd.f32 %v1281, %v1389
    %v1536 = vadd.f32 %v1282, %v1391
    %v1537 = vadd.f32 %v1283, %v1460
    %v1538 = vadd.f32 %v1284, %v1462
    %v1539 = vadd.f32 %v1285, %v1531
    %v1540 = vadd.f32 %v1286, %v1533
    %s1541 = scalar_lea.vmem %s2, 24
    %v1542 = vld [vmem:[%s1541] sm:$0xf]
    %1543 = vrot.lane.b32.xlu0 %v37, 92
    %v1544 = vpop.permute.xlu0 %1543
    %1545 = vrot.lane.b32.xlu0 %v46, 92
    %v1546 = vpop.permute.xlu0 %1545
    %1547 = vrot.lane.b32.xlu0 %v38, 92
    %v1548 = vpop.permute.xlu0 %1547
    %1549 = vrot.lane.b32.xlu0 %v47, 92
    %v1550 = vpop.permute.xlu0 %1549
    %1551 = vrot.lane.b32.xlu0 %v39, 92
    %v1552 = vpop.permute.xlu0 %1551
    %1553 = vrot.lane.b32.xlu0 %v48, 92
    %v1554 = vpop.permute.xlu0 %1553
    %vm1555 = vcmask 752640
    %v1556 = vsel %vm1555, %v1544, %v1546
    %v1557 = vsel %vm1555, %v1546, %v1548
    %v1558 = vsel %vm1555, %v1548, %v1550
    %v1559 = vsel %vm1555, %v1550, %v1552
    %v1560 = vsel %vm1555, %v1552, %v1554
    %v1562 = vsel %vm67, %v1542, 0
    %v1564 = vsel %vm71, %v1556, 0
    %v1566 = vsel %vm71, %v1557, 0
    %v1568 = vsel %vm71, %v1558, 0
    %v1570 = vsel %vm71, %v1559, 0
    %v1572 = vsel %vm71, %v1560, 0
    %v1574 = vsel %vm71, %v1554, 0
    %1576 = vmatprep.subr.mxu0 %v1566
    %1577 = vmatpush1.msra.mxu0 %v1564
    %1578 = vmatprep.subr.mxu0 0.0
    %1579 = vmatpush1.msra.mxu0 0.0
    %1580 = vmatprep.subr.mxu0 0.0
    %1581 = vmatpush1.msra.mxu0 0.0
    %1582 = vmatprep.subr.mxu0 0.0
    %1583 = vmatpush1.msra.mxu0 0.0
    %1584 = vmatprep.subr.mxu0 0.0
    %1585 = vmatpush1.msra.mxu0 0.0
    %1586 = vmatprep.subr.mxu0 0.0
    %1587 = vmatpush1.msra.mxu0 0.0
    %1588 = vmatprep.subr.mxu0 0.0
    %1589 = vmatpush1.msra.mxu0 0.0
    %1590 = vmatprep.subr.mxu0 0.0
    %1591 = vmatpush1.msra.mxu0 0.0
    %1592 = vmatprep.subr.mxu0 0.0
    %1593 = vmatpush1.msra.mxu0 0.0
    %1594 = vmatprep.subr.mxu0 0.0
    %1595 = vmatpush1.msra.mxu0 0.0
    %1596 = vmatprep.subr.mxu0 0.0
    %1597 = vmatpush1.msra.mxu0 0.0
    %1598 = vmatprep.subr.mxu0 0.0
    %1599 = vmatpush1.msra.mxu0 0.0
    %1600 = vmatprep.subr.mxu0 0.0
    %1601 = vmatpush1.msra.mxu0 0.0
    %1602 = vmatprep.subr.mxu0 0.0
    %1603 = vmatpush1.msra.mxu0 0.0
    %1604 = vmatprep.subr.mxu0 0.0
    %1605 = vmatpush1.msra.mxu0 0.0
    %1606 = vmatprep.subr.mxu0 0.0
    %1607 = vmatpush1.msra.mxu0 0.0
    %1608 = vmatprep.subr.mxu0 0.0
    %1609 = vmatpush1.msra.mxu0 0.0
    %1610 = vmatprep.subr.mxu0 0.0
    %1611 = vmatpush1.msra.mxu0 0.0
    %1612 = vmatprep.subr.mxu0 0.0
    %1613 = vmatpush1.msra.mxu0 0.0
    %1614 = vmatprep.subr.mxu0 0.0
    %1615 = vmatpush1.msra.mxu0 0.0
    %1616 = vmatprep.subr.mxu0 0.0
    %1617 = vmatpush1.msra.mxu0 0.0
    %1618 = vmatprep.subr.mxu0 0.0
    %1619 = vmatpush1.msra.mxu0 0.0
    %1620 = vmatprep.subr.mxu0 0.0
    %1621 = vmatpush1.msra.mxu0 0.0
    %1622 = vmatprep.subr.mxu0 0.0
    %1623 = vmatpush1.msra.mxu0 0.0
    %1624 = vmatprep.subr.mxu0 0.0
    %1625 = vmatpush1.msra.mxu0 0.0
    %1626 = vmatprep.subr.mxu0 0.0
    %1627 = vmatpush1.msra.mxu0 0.0
    %1628 = vmatprep.subr.mxu0 0.0
    %1629 = vmatpush1.msra.mxu0 0.0
    %1630 = vmatprep.subr.mxu0 0.0
    %1631 = vmatpush1.msra.mxu0 0.0
    %1632 = vmatprep.subr.mxu0 0.0
    %1633 = vmatpush1.msra.mxu0 0.0
    %1634 = vmatprep.subr.mxu0 0.0
    %1635 = vmatpush1.msra.mxu0 0.0
    %1636 = vmatprep.subr.mxu0 0.0
    %1637 = vmatpush1.msra.mxu0 0.0
    %1638 = vmatprep.subr.mxu0 0.0
    %1639 = vmatpush1.msra.mxu0 0.0
    %1640 = vmatprep.mubr.f32.mxu0 0.0
    %1641 = vmatmul.mubr.f32.gmra.mrb[0].mxu0 %v1562
    %v1642 = vpop.f32.mrb[0].mxu0
    %v1643 = vadd.f32 0.0, %v1642
    %v1644 = vpop.f32.mrb[0].mxu0
    %v1645 = vadd.f32 0.0, %v1644
    %1646 = vdwg.mxu0
    %1647 = vmatprep.subr.mxu0 %v1570
    %1648 = vmatpush1.msra.mxu0 %v1568
    %1649 = vmatprep.subr.mxu0 0.0
    %1650 = vmatpush1.msra.mxu0 0.0
    %1651 = vmatprep.subr.mxu0 0.0
    %1652 = vmatpush1.msra.mxu0 0.0
    %1653 = vmatprep.subr.mxu0 0.0
    %1654 = vmatpush1.msra.mxu0 0.0
    %1655 = vmatprep.subr.mxu0 0.0
    %1656 = vmatpush1.msra.mxu0 0.0
    %1657 = vmatprep.subr.mxu0 0.0
    %1658 = vmatpush1.msra.mxu0 0.0
    %1659 = vmatprep.subr.mxu0 0.0
    %1660 = vmatpush1.msra.mxu0 0.0
    %1661 = vmatprep.subr.mxu0 0.0
    %1662 = vmatpush1.msra.mxu0 0.0
    %1663 = vmatprep.subr.mxu0 0.0
    %1664 = vmatpush1.msra.mxu0 0.0
    %1665 = vmatprep.subr.mxu0 0.0
    %1666 = vmatpush1.msra.mxu0 0.0
    %1667 = vmatprep.subr.mxu0 0.0
    %1668 = vmatpush1.msra.mxu0 0.0
    %1669 = vmatprep.subr.mxu0 0.0
    %1670 = vmatpush1.msra.mxu0 0.0
    %1671 = vmatprep.subr.mxu0 0.0
    %1672 = vmatpush1.msra.mxu0 0.0
    %1673 = vmatprep.subr.mxu0 0.0
    %1674 = vmatpush1.msra.mxu0 0.0
    %1675 = vmatprep.subr.mxu0 0.0
    %1676 = vmatpush1.msra.mxu0 0.0
    %1677 = vmatprep.subr.mxu0 0.0
    %1678 = vmatpush1.msra.mxu0 0.0
    %1679 = vmatprep.subr.mxu0 0.0
    %1680 = vmatpush1.msra.mxu0 0.0
    %1681 = vmatprep.subr.mxu0 0.0
    %1682 = vmatpush1.msra.mxu0 0.0
    %1683 = vmatprep.subr.mxu0 0.0
    %1684 = vmatpush1.msra.mxu0 0.0
    %1685 = vmatprep.subr.mxu0 0.0
    %1686 = vmatpush1.msra.mxu0 0.0
    %1687 = vmatprep.subr.mxu0 0.0
    %1688 = vmatpush1.msra.mxu0 0.0
    %1689 = vmatprep.subr.mxu0 0.0
    %1690 = vmatpush1.msra.mxu0 0.0
    %1691 = vmatprep.subr.mxu0 0.0
    %1692 = vmatpush1.msra.mxu0 0.0
    %1693 = vmatprep.subr.mxu0 0.0
    %1694 = vmatpush1.msra.mxu0 0.0
    %1695 = vmatprep.subr.mxu0 0.0
    %1696 = vmatpush1.msra.mxu0 0.0
    %1697 = vmatprep.subr.mxu0 0.0
    %1698 = vmatpush1.msra.mxu0 0.0
    %1699 = vmatprep.subr.mxu0 0.0
    %1700 = vmatpush1.msra.mxu0 0.0
    %1701 = vmatprep.subr.mxu0 0.0
    %1702 = vmatpush1.msra.mxu0 0.0
    %1703 = vmatprep.subr.mxu0 0.0
    %1704 = vmatpush1.msra.mxu0 0.0
    %1705 = vmatprep.subr.mxu0 0.0
    %1706 = vmatpush1.msra.mxu0 0.0
    %1707 = vmatprep.subr.mxu0 0.0
    %1708 = vmatpush1.msra.mxu0 0.0
    %1709 = vmatprep.subr.mxu0 0.0
    %1710 = vmatpush1.msra.mxu0 0.0
    %1711 = vmatprep.mubr.f32.mxu0 0.0
    %1712 = vmatmul.mubr.f32.gmra.mrb[0].mxu0 %v1562
    %v1713 = vpop.f32.mrb[0].mxu0
    %v1714 = vadd.f32 0.0, %v1713
    %v1715 = vpop.f32.mrb[0].mxu0
    %v1716 = vadd.f32 0.0, %v1715
    %1717 = vdwg.mxu0
    %1718 = vmatprep.subr.mxu0 %v1574
    %1719 = vmatpush1.msra.mxu0 %v1572
    %1720 = vmatprep.subr.mxu0 0.0
    %1721 = vmatpush1.msra.mxu0 0.0
    %1722 = vmatprep.subr.mxu0 0.0
    %1723 = vmatpush1.msra.mxu0 0.0
    %1724 = vmatprep.subr.mxu0 0.0
    %1725 = vmatpush1.msra.mxu0 0.0
    %1726 = vmatprep.subr.mxu0 0.0
    %1727 = vmatpush1.msra.mxu0 0.0
    %1728 = vmatprep.subr.mxu0 0.0
    %1729 = vmatpush1.msra.mxu0 0.0
    %1730 = vmatprep.subr.mxu0 0.0
    %1731 = vmatpush1.msra.mxu0 0.0
    %1732 = vmatprep.subr.mxu0 0.0
    %1733 = vmatpush1.msra.mxu0 0.0
    %1734 = vmatprep.subr.mxu0 0.0
    %1735 = vmatpush1.msra.mxu0 0.0
    %1736 = vmatprep.subr.mxu0 0.0
    %1737 = vmatpush1.msra.mxu0 0.0
    %1738 = vmatprep.subr.mxu0 0.0
    %1739 = vmatpush1.msra.mxu0 0.0
    %1740 = vmatprep.subr.mxu0 0.0
    %1741 = vmatpush1.msra.mxu0 0.0
    %1742 = vmatprep.subr.mxu0 0.0
    %1743 = vmatpush1.msra.mxu0 0.0
    %1744 = vmatprep.subr.mxu0 0.0
    %1745 = vmatpush1.msra.mxu0 0.0
    %1746 = vmatprep.subr.mxu0 0.0
    %1747 = vmatpush1.msra.mxu0 0.0
    %1748 = vmatprep.subr.mxu0 0.0
    %1749 = vmatpush1.msra.mxu0 0.0
    %1750 = vmatprep.subr.mxu0 0.0
    %1751 = vmatpush1.msra.mxu0 0.0
    %1752 = vmatprep.subr.mxu0 0.0
    %1753 = vmatpush1.msra.mxu0 0.0
    %1754 = vmatprep.subr.mxu0 0.0
    %1755 = vmatpush1.msra.mxu0 0.0
    %1756 = vmatprep.subr.mxu0 0.0
    %1757 = vmatpush1.msra.mxu0 0.0
    %1758 = vmatprep.subr.mxu0 0.0
    %1759 = vmatpush1.msra.mxu0 0.0
    %1760 = vmatprep.subr.mxu0 0.0
    %1761 = vmatpush1.msra.mxu0 0.0
    %1762 = vmatprep.subr.mxu0 0.0
    %1763 = vmatpush1.msra.mxu0 0.0
    %1764 = vmatprep.subr.mxu0 0.0
    %1765 = vmatpush1.msra.mxu0 0.0
    %1766 = vmatprep.subr.mxu0 0.0
    %1767 = vmatpush1.msra.mxu0 0.0
    %1768 = vmatprep.subr.mxu0 0.0
    %1769 = vmatpush1.msra.mxu0 0.0
    %1770 = vmatprep.subr.mxu0 0.0
    %1771 = vmatpush1.msra.mxu0 0.0
    %1772 = vmatprep.subr.mxu0 0.0
    %1773 = vmatpush1.msra.mxu0 0.0
    %1774 = vmatprep.subr.mxu0 0.0
    %1775 = vmatpush1.msra.mxu0 0.0
    %1776 = vmatprep.subr.mxu0 0.0
    %1777 = vmatpush1.msra.mxu0 0.0
    %1778 = vmatprep.subr.mxu0 0.0
    %1779 = vmatpush1.msra.mxu0 0.0
    %1780 = vmatprep.subr.mxu0 0.0
    %1781 = vmatpush1.msra.mxu0 0.0
    %1782 = vmatprep.mubr.f32.mxu0 0.0
    %1783 = vmatmul.mubr.f32.gmra.mrb[0].mxu0 %v1562
    %v1784 = vpop.f32.mrb[0].mxu0
    %v1785 = vadd.f32 0.0, %v1784
    %v1786 = vpop.f32.mrb[0].mxu0
    %v1787 = vadd.f32 0.0, %v1786
    %1788 = vdwg.mxu0
    %v1789 = vadd.f32 %v1535, %v1643
    %v1790 = vadd.f32 %v1536, %v1645
    %v1791 = vadd.f32 %v1537, %v1714
    %v1792 = vadd.f32 %v1538, %v1716
    %v1793 = vadd.f32 %v1539, %v1785
    %v1794 = vadd.f32 %v1540, %v1787
    %s1795 = scalar_lea.vmem %s2, 28
    %v1796 = vld [vmem:[%s1795] sm:$0xf]
    %1797 = vrot.lane.b32.xlu0 %v37, 91
    %v1798 = vpop.permute.xlu0 %1797
    %1799 = vrot.lane.b32.xlu0 %v46, 91
    %v1800 = vpop.permute.xlu0 %1799
    %1801 = vrot.lane.b32.xlu0 %v38, 91
    %v1802 = vpop.permute.xlu0 %1801
    %1803 = vrot.lane.b32.xlu0 %v47, 91
    %v1804 = vpop.permute.xlu0 %1803
    %1805 = vrot.lane.b32.xlu0 %v39, 91
    %v1806 = vpop.permute.xlu0 %1805
    %1807 = vrot.lane.b32.xlu0 %v48, 91
    %v1808 = vpop.permute.xlu0 %1807
    %vm1809 = vcmask 744448
    %v1810 = vsel %vm1809, %v1798, %v1800
    %v1811 = vsel %vm1809, %v1800, %v1802
    %v1812 = vsel %vm1809, %v1802, %v1804
    %v1813 = vsel %vm1809, %v1804, %v1806
    %v1814 = vsel %vm1809, %v1806, %v1808
    %v1816 = vsel %vm67, %v1796, 0
    %v1818 = vsel %vm71, %v1810, 0
    %v1820 = vsel %vm71, %v1811, 0
    %v1822 = vsel %vm71, %v1812, 0
    %v1824 = vsel %vm71, %v1813, 0
    %v1826 = vsel %vm71, %v1814, 0
    %v1828 = vsel %vm71, %v1808, 0
    %1830 = vmatprep.subr.mxu0 %v1820
    %1831 = vmatpush1.msra.mxu0 %v1818
    %1832 = vmatprep.subr.mxu0 0.0
    %1833 = vmatpush1.msra.mxu0 0.0
    %1834 = vmatprep.subr.mxu0 0.0
    %1835 = vmatpush1.msra.mxu0 0.0
    %1836 = vmatprep.subr.mxu0 0.0
    %1837 = vmatpush1.msra.mxu0 0.0
    %1838 = vmatprep.subr.mxu0 0.0
    %1839 = vmatpush1.msra.mxu0 0.0
    %1840 = vmatprep.subr.mxu0 0.0
    %1841 = vmatpush1.msra.mxu0 0.0
    %1842 = vmatprep.subr.mxu0 0.0
    %1843 = vmatpush1.msra.mxu0 0.0
    %1844 = vmatprep.subr.mxu0 0.0
    %1845 = vmatpush1.msra.mxu0 0.0
    %1846 = vmatprep.subr.mxu0 0.0
    %1847 = vmatpush1.msra.mxu0 0.0
    %1848 = vmatprep.subr.mxu0 0.0
    %1849 = vmatpush1.msra.mxu0 0.0
    %1850 = vmatprep.subr.mxu0 0.0
    %1851 = vmatpush1.msra.mxu0 0.0
    %1852 = vmatprep.subr.mxu0 0.0
    %1853 = vmatpush1.msra.mxu0 0.0
    %1854 = vmatprep.subr.mxu0 0.0
    %1855 = vmatpush1.msra.mxu0 0.0
    %1856 = vmatprep.subr.mxu0 0.0
    %1857 = vmatpush1.msra.mxu0 0.0
    %1858 = vmatprep.subr.mxu0 0.0
    %1859 = vmatpush1.msra.mxu0 0.0
    %1860 = vmatprep.subr.mxu0 0.0
    %1861 = vmatpush1.msra.mxu0 0.0
    %1862 = vmatprep.subr.mxu0 0.0
    %1863 = vmatpush1.msra.mxu0 0.0
    %1864 = vmatprep.subr.mxu0 0.0
    %1865 = vmatpush1.msra.mxu0 0.0
    %1866 = vmatprep.subr.mxu0 0.0
    %1867 = vmatpush1.msra.mxu0 0.0
    %1868 = vmatprep.subr.mxu0 0.0
    %1869 = vmatpush1.msra.mxu0 0.0
    %1870 = vmatprep.subr.mxu0 0.0
    %1871 = vmatpush1.msra.mxu0 0.0
    %1872 = vmatprep.subr.mxu0 0.0
    %1873 = vmatpush1.msra.mxu0 0.0
    %1874 = vmatprep.subr.mxu0 0.0
    %1875 = vmatpush1.msra.mxu0 0.0
    %1876 = vmatprep.subr.mxu0 0.0
    %1877 = vmatpush1.msra.mxu0 0.0
    %1878 = vmatprep.subr.mxu0 0.0
    %1879 = vmatpush1.msra.mxu0 0.0
    %1880 = vmatprep.subr.mxu0 0.0
    %1881 = vmatpush1.msra.mxu0 0.0
    %1882 = vmatprep.subr.mxu0 0.0
    %1883 = vmatpush1.msra.mxu0 0.0
    %1884 = vmatprep.subr.mxu0 0.0
    %1885 = vmatpush1.msra.mxu0 0.0
    %1886 = vmatprep.subr.mxu0 0.0
    %1887 = vmatpush1.msra.mxu0 0.0
    %1888 = vmatprep.subr.mxu0 0.0
    %1889 = vmatpush1.msra.mxu0 0.0
    %1890 = vmatprep.subr.mxu0 0.0
    %1891 = vmatpush1.msra.mxu0 0.0
    %1892 = vmatprep.subr.mxu0 0.0
    %1893 = vmatpush1.msra.mxu0 0.0
    %1894 = vmatprep.mubr.f32.mxu0 0.0
    %1895 = vmatmul.mubr.f32.gmra.mrb[0].mxu0 %v1816
    %v1896 = vpop.f32.mrb[0].mxu0
    %v1897 = vadd.f32 0.0, %v1896
    %v1898 = vpop.f32.mrb[0].mxu0
    %v1899 = vadd.f32 0.0, %v1898
    %1900 = vdwg.mxu0
    %1901 = vmatprep.subr.mxu0 %v1824
    %1902 = vmatpush1.msra.mxu0 %v1822
    %1903 = vmatprep.subr.mxu0 0.0
    %1904 = vmatpush1.msra.mxu0 0.0
    %1905 = vmatprep.subr.mxu0 0.0
    %1906 = vmatpush1.msra.mxu0 0.0
    %1907 = vmatprep.subr.mxu0 0.0
    %1908 = vmatpush1.msra.mxu0 0.0
    %1909 = vmatprep.subr.mxu0 0.0
    %1910 = vmatpush1.msra.mxu0 0.0
    %1911 = vmatprep.subr.mxu0 0.0
    %1912 = vmatpush1.msra.mxu0 0.0
    %1913 = vmatprep.subr.mxu0 0.0
    %1914 = vmatpush1.msra.mxu0 0.0
    %1915 = vmatprep.subr.mxu0 0.0
    %1916 = vmatpush1.msra.mxu0 0.0
    %1917 = vmatprep.subr.mxu0 0.0
    %1918 = vmatpush1.msra.mxu0 0.0
    %1919 = vmatprep.subr.mxu0 0.0
    %1920 = vmatpush1.msra.mxu0 0.0
    %1921 = vmatprep.subr.mxu0 0.0
    %1922 = vmatpush1.msra.mxu0 0.0
    %1923 = vmatprep.subr.mxu0 0.0
    %1924 = vmatpush1.msra.mxu0 0.0
    %1925 = vmatprep.subr.mxu0 0.0
    %1926 = vmatpush1.msra.mxu0 0.0
    %1927 = vmatprep.subr.mxu0 0.0
    %1928 = vmatpush1.msra.mxu0 0.0
    %1929 = vmatprep.subr.mxu0 0.0
    %1930 = vmatpush1.msra.mxu0 0.0
    %1931 = vmatprep.subr.mxu0 0.0
    %1932 = vmatpush1.msra.mxu0 0.0
    %1933 = vmatprep.subr.mxu0 0.0
    %1934 = vmatpush1.msra.mxu0 0.0
    %1935 = vmatprep.subr.mxu0 0.0
    %1936 = vmatpush1.msra.mxu0 0.0
    %1937 = vmatprep.subr.mxu0 0.0
    %1938 = vmatpush1.msra.mxu0 0.0
    %1939 = vmatprep.subr.mxu0 0.0
    %1940 = vmatpush1.msra.mxu0 0.0
    %1941 = vmatprep.subr.mxu0 0.0
    %1942 = vmatpush1.msra.mxu0 0.0
    %1943 = vmatprep.subr.mxu0 0.0
    %1944 = vmatpush1.msra.mxu0 0.0
    %1945 = vmatprep.subr.mxu0 0.0
    %1946 = vmatpush1.msra.mxu0 0.0
    %1947 = vmatprep.subr.mxu0 0.0
    %1948 = vmatpush1.msra.mxu0 0.0
    %1949 = vmatprep.subr.mxu0 0.0
    %1950 = vmatpush1.msra.mxu0 0.0
    %1951 = vmatprep.subr.mxu0 0.0
    %1952 = vmatpush1.msra.mxu0 0.0
    %1953 = vmatprep.subr.mxu0 0.0
    %1954 = vmatpush1.msra.mxu0 0.0
    %1955 = vmatprep.subr.mxu0 0.0
    %1956 = vmatpush1.msra.mxu0 0.0
    %1957 = vmatprep.subr.mxu0 0.0
    %1958 = vmatpush1.msra.mxu0 0.0
    %1959 = vmatprep.subr.mxu0 0.0
    %1960 = vmatpush1.msra.mxu0 0.0
    %1961 = vmatprep.subr.mxu0 0.0
    %1962 = vmatpush1.msra.mxu0 0.0
    %1963 = vmatprep.subr.mxu0 0.0
    %1964 = vmatpush1.msra.mxu0 0.0
    %1965 = vmatprep.mubr.f32.mxu0 0.0
    %1966 = vmatmul.mubr.f32.gmra.mrb[0].mxu0 %v1816
    %v1967 = vpop.f32.mrb[0].mxu0
    %v1968 = vadd.f32 0.0, %v1967
    %v1969 = vpop.f32.mrb[0].mxu0
    %v1970 = vadd.f32 0.0, %v1969
    %1971 = vdwg.mxu0
    %1972 = vmatprep.subr.mxu0 %v1828
    %1973 = vmatpush1.msra.mxu0 %v1826
    %1974 = vmatprep.subr.mxu0 0.0
    %1975 = vmatpush1.msra.mxu0 0.0
    %1976 = vmatprep.subr.mxu0 0.0
    %1977 = vmatpush1.msra.mxu0 0.0
    %1978 = vmatprep.subr.mxu0 0.0
    %1979 = vmatpush1.msra.mxu0 0.0
    %1980 = vmatprep.subr.mxu0 0.0
    %1981 = vmatpush1.msra.mxu0 0.0
    %1982 = vmatprep.subr.mxu0 0.0
    %1983 = vmatpush1.msra.mxu0 0.0
    %1984 = vmatprep.subr.mxu0 0.0
    %1985 = vmatpush1.msra.mxu0 0.0
    %1986 = vmatprep.subr.mxu0 0.0
    %1987 = vmatpush1.msra.mxu0 0.0
    %1988 = vmatprep.subr.mxu0 0.0
    %1989 = vmatpush1.msra.mxu0 0.0
    %1990 = vmatprep.subr.mxu0 0.0
    %1991 = vmatpush1.msra.mxu0 0.0
    %1992 = vmatprep.subr.mxu0 0.0
    %1993 = vmatpush1.msra.mxu0 0.0
    %1994 = vmatprep.subr.mxu0 0.0
    %1995 = vmatpush1.msra.mxu0 0.0
    %1996 = vmatprep.subr.mxu0 0.0
    %1997 = vmatpush1.msra.mxu0 0.0
    %1998 = vmatprep.subr.mxu0 0.0
    %1999 = vmatpush1.msra.mxu0 0.0
    %2000 = vmatprep.subr.mxu0 0.0
    %2001 = vmatpush1.msra.mxu0 0.0
    %2002 = vmatprep.subr.mxu0 0.0
    %2003 = vmatpush1.msra.mxu0 0.0
    %2004 = vmatprep.subr.mxu0 0.0
    %2005 = vmatpush1.msra.mxu0 0.0
    %2006 = vmatprep.subr.mxu0 0.0
    %2007 = vmatpush1.msra.mxu0 0.0
    %2008 = vmatprep.subr.mxu0 0.0
    %2009 = vmatpush1.msra.mxu0 0.0
    %2010 = vmatprep.subr.mxu0 0.0
    %2011 = vmatpush1.msra.mxu0 0.0
    %2012 = vmatprep.subr.mxu0 0.0
    %2013 = vmatpush1.msra.mxu0 0.0
    %2014 = vmatprep.subr.mxu0 0.0
    %2015 = vmatpush1.msra.mxu0 0.0
    %2016 = vmatprep.subr.mxu0 0.0
    %2017 = vmatpush1.msra.mxu0 0.0
    %2018 = vmatprep.subr.mxu0 0.0
    %2019 = vmatpush1.msra.mxu0 0.0
    %2020 = vmatprep.subr.mxu0 0.0
    %2021 = vmatpush1.msra.mxu0 0.0
    %2022 = vmatprep.subr.mxu0 0.0
    %2023 = vmatpush1.msra.mxu0 0.0
    %2024 = vmatprep.subr.mxu0 0.0
    %2025 = vmatpush1.msra.mxu0 0.0
    %2026 = vmatprep.subr.mxu0 0.0
    %2027 = vmatpush1.msra.mxu0 0.0
    %2028 = vmatprep.subr.mxu0 0.0
    %2029 = vmatpush1.msra.mxu0 0.0
    %2030 = vmatprep.subr.mxu0 0.0
    %2031 = vmatpush1.msra.mxu0 0.0
    %2032 = vmatprep.subr.mxu0 0.0
    %2033 = vmatpush1.msra.mxu0 0.0
    %2034 = vmatprep.subr.mxu0 0.0
    %2035 = vmatpush1.msra.mxu0 0.0
    %2036 = vmatprep.mubr.f32.mxu0 0.0
    %2037 = vmatmul.mubr.f32.gmra.mrb[0].mxu0 %v1816
    %v2038 = vpop.f32.mrb[0].mxu0
    %v2039 = vadd.f32 0.0, %v2038
    %v2040 = vpop.f32.mrb[0].mxu0
    %v2041 = vadd.f32 0.0, %v2040
    %2042 = vdwg.mxu0
    %v2043 = vadd.f32 %v1789, %v1897
    %v2044 = vadd.f32 %v1790, %v1899
    %v2045 = vadd.f32 %v1791, %v1968
    %v2046 = vadd.f32 %v1792, %v1970
    %v2047 = vadd.f32 %v1793, %v2039
    %v2048 = vadd.f32 %v1794, %v2041
    %s2049 = scalar_lea.vmem %s2, 32
    %v2050 = vld [vmem:[%s2049] sm:$0xf]
    %2051 = vrot.lane.b32.xlu0 %v37, 90
    %v2052 = vpop.permute.xlu0 %2051
    %2053 = vrot.lane.b32.xlu0 %v46, 90
    %v2054 = vpop.permute.xlu0 %2053
    %2055 = vrot.lane.b32.xlu0 %v38, 90
    %v2056 = vpop.permute.xlu0 %2055
    %2057 = vrot.lane.b32.xlu0 %v47, 90
    %v2058 = vpop.permute.xlu0 %2057
    %2059 = vrot.lane.b32.xlu0 %v39, 90
    %v2060 = vpop.permute.xlu0 %2059
    %2061 = vrot.lane.b32.xlu0 %v48, 90
    %v2062 = vpop.permute.xlu0 %2061
    %vm2063 = vcmask 736256
    %v2064 = vsel %vm2063, %v2052, %v2054
    %v2065 = vsel %vm2063, %v2054, %v2056
    %v2066 = vsel %vm2063, %v2056, %v2058
    %v2067 = vsel %vm2063, %v2058, %v2060
    %v2068 = vsel %vm2063, %v2060, %v2062
    %v2070 = vsel %vm67, %v2050, 0
    %v2072 = vsel %vm71, %v2064, 0
    %v2074 = vsel %vm71, %v2065, 0
    %v2076 = vsel %vm71, %v2066, 0
    %v2078 = vsel %vm71, %v2067, 0
    %v2080 = vsel %vm71, %v2068, 0
    %v2082 = vsel %vm71, %v2062, 0
    %2084 = vmatprep.subr.mxu0 %v2074
    %2085 = vmatpush1.msra.mxu0 %v2072
    %2086 = vmatprep.subr.mxu0 0.0
    %2087 = vmatpush1.msra.mxu0 0.0
    %2088 = vmatprep.subr.mxu0 0.0
    %2089 = vmatpush1.msra.mxu0 0.0
    %2090 = vmatprep.subr.mxu0 0.0
    %2091 = vmatpush1.msra.mxu0 0.0
    %2092 = vmatprep.subr.mxu0 0.0
    %2093 = vmatpush1.msra.mxu0 0.0
    %2094 = vmatprep.subr.mxu0 0.0
    %2095 = vmatpush1.msra.mxu0 0.0
    %2096 = vmatprep.subr.mxu0 0.0
    %2097 = vmatpush1.msra.mxu0 0.0
    %2098 = vmatprep.subr.mxu0 0.0
    %2099 = vmatpush1.msra.mxu0 0.0
    %2100 = vmatprep.subr.mxu0 0.0
    %2101 = vmatpush1.msra.mxu0 0.0
    %2102 = vmatprep.subr.mxu0 0.0
    %2103 = vmatpush1.msra.mxu0 0.0
    %2104 = vmatprep.subr.mxu0 0.0
    %2105 = vmatpush1.msra.mxu0 0.0
    %2106 = vmatprep.subr.mxu0 0.0
    %2107 = vmatpush1.msra.mxu0 0.0
    %2108 = vmatprep.subr.mxu0 0.0
    %2109 = vmatpush1.msra.mxu0 0.0
    %2110 = vmatprep.subr.mxu0 0.0
    %2111 = vmatpush1.msra.mxu0 0.0
    %2112 = vmatprep.subr.mxu0 0.0
    %2113 = vmatpush1.msra.mxu0 0.0
    %2114 = vmatprep.subr.mxu0 0.0
    %2115 = vmatpush1.msra.mxu0 0.0
    %2116 = vmatprep.subr.mxu0 0.0
    %2117 = vmatpush1.msra.mxu0 0.0
    %2118 = vmatprep.subr.mxu0 0.0
    %2119 = vmatpush1.msra.mxu0 0.0
    %2120 = vmatprep.subr.mxu0 0.0
    %2121 = vmatpush1.msra.mxu0 0.0
    %2122 = vmatprep.subr.mxu0 0.0
    %2123 = vmatpush1.msra.mxu0 0.0
    %2124 = vmatprep.subr.mxu0 0.0
    %2125 = vmatpush1.msra.mxu0 0.0
    %2126 = vmatprep.subr.mxu0 0.0
    %2127 = vmatpush1.msra.mxu0 0.0
    %2128 = vmatprep.subr.mxu0 0.0
    %2129 = vmatpush1.msra.mxu0 0.0
    %2130 = vmatprep.subr.mxu0 0.0
    %2131 = vmatpush1.msra.mxu0 0.0
    %2132 = vmatprep.subr.mxu0 0.0
    %2133 = vmatpush1.msra.mxu0 0.0
    %2134 = vmatprep.subr.mxu0 0.0
    %2135 = vmatpush1.msra.mxu0 0.0
    %2136 = vmatprep.subr.mxu0 0.0
    %2137 = vmatpush1.msra.mxu0 0.0
    %2138 = vmatprep.subr.mxu0 0.0
    %2139 = vmatpush1.msra.mxu0 0.0
    %2140 = vmatprep.subr.mxu0 0.0
    %2141 = vmatpush1.msra.mxu0 0.0
    %2142 = vmatprep.subr.mxu0 0.0
    %2143 = vmatpush1.msra.mxu0 0.0
    %2144 = vmatprep.subr.mxu0 0.0
    %2145 = vmatpush1.msra.mxu0 0.0
    %2146 = vmatprep.subr.mxu0 0.0
    %2147 = vmatpush1.msra.mxu0 0.0
    %2148 = vmatprep.mubr.f32.mxu0 0.0
    %2149 = vmatmul.mubr.f32.gmra.mrb[0].mxu0 %v2070
    %v2150 = vpop.f32.mrb[0].mxu0
    %v2151 = vadd.f32 0.0, %v2150
    %v2152 = vpop.f32.mrb[0].mxu0
    %v2153 = vadd.f32 0.0, %v2152
    %2154 = vdwg.mxu0
    %2155 = vmatprep.subr.mxu0 %v2078
    %2156 = vmatpush1.msra.mxu0 %v2076
    %2157 = vmatprep.subr.mxu0 0.0
    %2158 = vmatpush1.msra.mxu0 0.0
    %2159 = vmatprep.subr.mxu0 0.0
    %2160 = vmatpush1.msra.mxu0 0.0
    %2161 = vmatprep.subr.mxu0 0.0
    %2162 = vmatpush1.msra.mxu0 0.0
    %2163 = vmatprep.subr.mxu0 0.0
    %2164 = vmatpush1.msra.mxu0 0.0
    %2165 = vmatprep.subr.mxu0 0.0
    %2166 = vmatpush1.msra.mxu0 0.0
    %2167 = vmatprep.subr.mxu0 0.0
    %2168 = vmatpush1.msra.mxu0 0.0
    %2169 = vmatprep.subr.mxu0 0.0
    %2170 = vmatpush1.msra.mxu0 0.0
    %2171 = vmatprep.subr.mxu0 0.0
    %2172 = vmatpush1.msra.mxu0 0.0
    %2173 = vmatprep.subr.mxu0 0.0
    %2174 = vmatpush1.msra.mxu0 0.0
    %2175 = vmatprep.subr.mxu0 0.0
    %2176 = vmatpush1.msra.mxu0 0.0
    %2177 = vmatprep.subr.mxu0 0.0
    %2178 = vmatpush1.msra.mxu0 0.0
    %2179 = vmatprep.subr.mxu0 0.0
    %2180 = vmatpush1.msra.mxu0 0.0
    %2181 = vmatprep.subr.mxu0 0.0
    %2182 = vmatpush1.msra.mxu0 0.0
    %2183 = vmatprep.subr.mxu0 0.0
    %2184 = vmatpush1.msra.mxu0 0.0
    %2185 = vmatprep.subr.mxu0 0.0
    %2186 = vmatpush1.msra.mxu0 0.0
    %2187 = vmatprep.subr.mxu0 0.0
    %2188 = vmatpush1.msra.mxu0 0.0
    %2189 = vmatprep.subr.mxu0 0.0
    %2190 = vmatpush1.msra.mxu0 0.0
    %2191 = vmatprep.subr.mxu0 0.0
    %2192 = vmatpush1.msra.mxu0 0.0
    %2193 = vmatprep.subr.mxu0 0.0
    %2194 = vmatpush1.msra.mxu0 0.0
    %2195 = vmatprep.subr.mxu0 0.0
    %2196 = vmatpush1.msra.mxu0 0.0
    %2197 = vmatprep.subr.mxu0 0.0
    %2198 = vmatpush1.msra.mxu0 0.0
    %2199 = vmatprep.subr.mxu0 0.0
    %2200 = vmatpush1.msra.mxu0 0.0
    %2201 = vmatprep.subr.mxu0 0.0
    %2202 = vmatpush1.msra.mxu0 0.0
    %2203 = vmatprep.subr.mxu0 0.0
    %2204 = vmatpush1.msra.mxu0 0.0
    %2205 = vmatprep.subr.mxu0 0.0
    %2206 = vmatpush1.msra.mxu0 0.0
    %2207 = vmatprep.subr.mxu0 0.0
    %2208 = vmatpush1.msra.mxu0 0.0
    %2209 = vmatprep.subr.mxu0 0.0
    %2210 = vmatpush1.msra.mxu0 0.0
    %2211 = vmatprep.subr.mxu0 0.0
    %2212 = vmatpush1.msra.mxu0 0.0
    %2213 = vmatprep.subr.mxu0 0.0
    %2214 = vmatpush1.msra.mxu0 0.0
    %2215 = vmatprep.subr.mxu0 0.0
    %2216 = vmatpush1.msra.mxu0 0.0
    %2217 = vmatprep.subr.mxu0 0.0
    %2218 = vmatpush1.msra.mxu0 0.0
    %2219 = vmatprep.mubr.f32.mxu0 0.0
    %2220 = vmatmul.mubr.f32.gmra.mrb[0].mxu0 %v2070
    %v2221 = vpop.f32.mrb[0].mxu0
    %v2222 = vadd.f32 0.0, %v2221
    %v2223 = vpop.f32.mrb[0].mxu0
    %v2224 = vadd.f32 0.0, %v2223
    %2225 = vdwg.mxu0
    %2226 = vmatprep.subr.mxu0 %v2082
    %2227 = vmatpush1.msra.mxu0 %v2080
    %2228 = vmatprep.subr.mxu0 0.0
    %2229 = vmatpush1.msra.mxu0 0.0
    %2230 = vmatprep.subr.mxu0 0.0
    %2231 = vmatpush1.msra.mxu0 0.0
    %2232 = vmatprep.subr.mxu0 0.0
    %2233 = vmatpush1.msra.mxu0 0.0
    %2234 = vmatprep.subr.mxu0 0.0
    %2235 = vmatpush1.msra.mxu0 0.0
    %2236 = vmatprep.subr.mxu0 0.0
    %2237 = vmatpush1.msra.mxu0 0.0
    %2238 = vmatprep.subr.mxu0 0.0
    %2239 = vmatpush1.msra.mxu0 0.0
    %2240 = vmatprep.subr.mxu0 0.0
    %2241 = vmatpush1.msra.mxu0 0.0
    %2242 = vmatprep.subr.mxu0 0.0
    %2243 = vmatpush1.msra.mxu0 0.0
    %2244 = vmatprep.subr.mxu0 0.0
    %2245 = vmatpush1.msra.mxu0 0.0
    %2246 = vmatprep.subr.mxu0 0.0
    %2247 = vmatpush1.msra.mxu0 0.0
    %2248 = vmatprep.subr.mxu0 0.0
    %2249 = vmatpush1.msra.mxu0 0.0
    %2250 = vmatprep.subr.mxu0 0.0
    %2251 = vmatpush1.msra.mxu0 0.0
    %2252 = vmatprep.subr.mxu0 0.0
    %2253 = vmatpush1.msra.mxu0 0.0
    %2254 = vmatprep.subr.mxu0 0.0
    %2255 = vmatpush1.msra.mxu0 0.0
    %2256 = vmatprep.subr.mxu0 0.0
    %2257 = vmatpush1.msra.mxu0 0.0
    %2258 = vmatprep.subr.mxu0 0.0
    %2259 = vmatpush1.msra.mxu0 0.0
    %2260 = vmatprep.subr.mxu0 0.0
    %2261 = vmatpush1.msra.mxu0 0.0
    %2262 = vmatprep.subr.mxu0 0.0
    %2263 = vmatpush1.msra.mxu0 0.0
    %2264 = vmatprep.subr.mxu0 0.0
    %2265 = vmatpush1.msra.mxu0 0.0
    %2266 = vmatprep.subr.mxu0 0.0
    %2267 = vmatpush1.msra.mxu0 0.0
    %2268 = vmatprep.subr.mxu0 0.0
    %2269 = vmatpush1.msra.mxu0 0.0
    %2270 = vmatprep.subr.mxu0 0.0
    %2271 = vmatpush1.msra.mxu0 0.0
    %2272 = vmatprep.subr.mxu0 0.0
    %2273 = vmatpush1.msra.mxu0 0.0
    %2274 = vmatprep.subr.mxu0 0.0
    %2275 = vmatpush1.msra.mxu0 0.0
    %2276 = vmatprep.subr.mxu0 0.0
    %2277 = vmatpush1.msra.mxu0 0.0
    %2278 = vmatprep.subr.mxu0 0.0
    %2279 = vmatpush1.msra.mxu0 0.0
    %2280 = vmatprep.subr.mxu0 0.0
    %2281 = vmatpush1.msra.mxu0 0.0
    %2282 = vmatprep.subr.mxu0 0.0
    %2283 = vmatpush1.msra.mxu0 0.0
    %2284 = vmatprep.subr.mxu0 0.0
    %2285 = vmatpush1.msra.mxu0 0.0
    %2286 = vmatprep.subr.mxu0 0.0
    %2287 = vmatpush1.msra.mxu0 0.0
    %2288 = vmatprep.subr.mxu0 0.0
    %2289 = vmatpush1.msra.mxu0 0.0
    %2290 = vmatprep.mubr.f32.mxu0 0.0
    %2291 = vmatmul.mubr.f32.gmra.mrb[0].mxu0 %v2070
    %v2292 = vpop.f32.mrb[0].mxu0
    %v2293 = vadd.f32 0.0, %v2292
    %v2294 = vpop.f32.mrb[0].mxu0
    %v2295 = vadd.f32 0.0, %v2294
    %2296 = vdwg.mxu0
    %v2297 = vadd.f32 %v2043, %v2151
    %v2298 = vadd.f32 %v2044, %v2153
    %v2299 = vadd.f32 %v2045, %v2222
    %v2300 = vadd.f32 %v2046, %v2224
    %v2301 = vadd.f32 %v2047, %v2293
    %v2302 = vadd.f32 %v2048, %v2295
    %v2303 = vld [vmem:[%s3] sm:$0xf]
    %2305 = vset.pattern.permute.xlu0 0
    %2306 = vperm.xlu0 %2305, %v2303
    %v2307 = vpop.permute.xlu0 %2306
    %v2309 = vadd.f32 %v2297, %v2307
    %v2310 = vadd.f32 %v2298, %v2307
    %v2311 = vadd.f32 %v2299, %v2307
    %v2312 = vadd.f32 %v2300, %v2307
    %v2313 = vadd.f32 %v2301, %v2307
    %v2314 = vadd.f32 %v2302, %v2307
    %v2316 = vlaneseq
    %v2317 = vshrl.u32 %v2316, 7
    %v2318 = vsub.s32 0, %v2317
    %v2319 = vrot.slane %v36, %v2318
    %v2320 = vlaneseq
    %v2321 = vshrl.u32 %v2320, 7
    %v2322 = vsub.s32 1, %v2321
    %v2323 = vrot.slane %v36, %v2322
    %v2324 = vlaneseq
    %v2325 = vshrl.u32 %v2324, 7
    %v2326 = vsub.s32 2, %v2325
    %v2327 = vrot.slane %v36, %v2326
    %v2328 = vlaneseq
    %v2329 = vshrl.u32 %v2328, 7
    %v2330 = vsub.s32 3, %v2329
    %v2331 = vrot.slane %v36, %v2330
    %v2332 = vlaneseq
    %v2333 = vshrl.u32 %v2332, 7
    %v2334 = vsub.s32 4, %v2333
    %v2335 = vrot.slane %v36, %v2334
    %v2336 = vlaneseq
    %v2337 = vshrl.u32 %v2336, 7
    %v2338 = vsub.s32 5, %v2337
    %v2339 = vrot.slane %v36, %v2338
    %v2346 = vmul.f32 %v2309, %v2319
    %v2347 = vmul.f32 %v2310, %v2323
    %v2348 = vmul.f32 %v2311, %v2327
    %v2349 = vmul.f32 %v2312, %v2331
    %v2350 = vmul.f32 %v2313, %v2335
    %v2351 = vmul.f32 %v2314, %v2339
    %v2352 = vsel %vm71, %v2346, 0.0
    %v2353 = vsel %vm71, %v2347, 0.0
    %v2354 = vadd.f32 %v2352, %v2353
    %v2355 = vsel %vm71, %v2348, 0.0
    %v2356 = vadd.f32 %v2354, %v2355
    %v2357 = vsel %vm71, %v2349, 0.0
    %v2358 = vadd.f32 %v2356, %v2357
    %v2359 = vsel %vm71, %v2350, 0.0
    %v2360 = vadd.f32 %v2358, %v2359
    %vm2361 = vcmask 371712
    %v2362 = vsel %vm2361, %v2351, 0.0
    %v2363 = vadd.f32 %v2360, %v2362
    %2364 = vadd.xlane.f32.xlu0 %v2363
    %v2365 = vpop.xlane.xlu0 %2364
    %v2366 = vmul.f32 %v2346, %v2309
    %v2367 = vmul.f32 %v2347, %v2310
    %v2368 = vmul.f32 %v2348, %v2311
    %v2369 = vmul.f32 %v2349, %v2312
    %v2370 = vmul.f32 %v2350, %v2313
    %v2371 = vmul.f32 %v2351, %v2314
    %v2372 = vsel %vm71, %v2366, 0.0
    %v2373 = vsel %vm71, %v2367, 0.0
    %v2374 = vadd.f32 %v2372, %v2373
    %v2375 = vsel %vm71, %v2368, 0.0
    %v2376 = vadd.f32 %v2374, %v2375
    %v2377 = vsel %vm71, %v2369, 0.0
    %v2378 = vadd.f32 %v2376, %v2377
    %v2379 = vsel %vm71, %v2370, 0.0
    %v2380 = vadd.f32 %v2378, %v2379
    %v2381 = vsel %vm2361, %v2371, 0.0
    %v2382 = vadd.f32 %v2380, %v2381
    %2383 = vadd.xlane.f32.xlu0 %v2382
    %v2384 = vpop.xlane.xlu0 %2383
    %v2385 = vrcp.pop 512.0
    %v2386 = vmul.f32 %v2365, %v2385
    %v2387 = vmul.f32 %v2384, %v2385
    %v2388 = vmul.f32 %v2386, %v2386
    %v2389 = vsub.f32 %v2387, %v2388
    %v2390 = vadd.f32 %v2389, 1e-05
    %v2391 = vrsqrt.pop %v2390
    %v2392 = vsub.f32 %v2309, %v2386
    %v2393 = vsub.f32 %v2310, %v2386
    %v2394 = vsub.f32 %v2311, %v2386
    %v2395 = vsub.f32 %v2312, %v2386
    %v2396 = vsub.f32 %v2313, %v2386
    %v2397 = vsub.f32 %v2314, %v2386
    %v2398 = vld [vmem:[%s4] sm:$0xf]
    %v2399 = vmul.f32 %v2391, %v2398
    %2401 = vset.pattern.permute.xlu0 0
    %2402 = vperm.xlu0 %2401, %v2399
    %v2403 = vpop.permute.xlu0 %2402
    %v2405 = vmul.f32 %v2392, %v2403
    %v2406 = vmul.f32 %v2393, %v2403
    %v2407 = vmul.f32 %v2394, %v2403
    %v2408 = vmul.f32 %v2395, %v2403
    %v2409 = vmul.f32 %v2396, %v2403
    %v2410 = vmul.f32 %v2397, %v2403
    %v2411 = vld [vmem:[%s5] sm:$0xf]
    %2413 = vset.pattern.permute.xlu0 0
    %2414 = vperm.xlu0 %2413, %v2411
    %v2415 = vpop.permute.xlu0 %2414
    %v2417 = vadd.f32 %v2405, %v2415
    %v2418 = vadd.f32 %v2406, %v2415
    %v2419 = vadd.f32 %v2407, %v2415
    %v2420 = vadd.f32 %v2408, %v2415
    %v2421 = vadd.f32 %v2409, %v2415
    %v2422 = vadd.f32 %v2410, %v2415
    %v2423 = vmax.f32 %v2417, 0.0
    %v2424 = vmax.f32 %v2418, 0.0
    %v2425 = vmax.f32 %v2419, 0.0
    %v2426 = vmax.f32 %v2420, 0.0
    %v2427 = vmax.f32 %v2421, 0.0
    %v2428 = vmax.f32 %v2422, 0.0
    %v2429 = vmul.f32 %v2423, %v2319
    %v2430 = vmul.f32 %v2424, %v2323
    %v2431 = vmul.f32 %v2425, %v2327
    %v2432 = vmul.f32 %v2426, %v2331
    %v2433 = vmul.f32 %v2427, %v2335
    %v2434 = vmul.f32 %v2428, %v2339
    %v2435 = vld [vmem:[%s6] sm:$0xf]
    %s2436 = scalar_lea.vmem %s6, 4
    %v2437 = vld [vmem:[%s2436] sm:$0xf]
    %2444 = vrot.lane.b32.xlu0 %v2429, 127
    %v2445 = vpop.permute.xlu0 %2444
    %2446 = vrot.lane.b32.xlu0 %v2430, 127
    %v2447 = vpop.permute.xlu0 %2446
    %2448 = vrot.lane.b32.xlu0 %v2431, 127
    %v2449 = vpop.permute.xlu0 %2448
    %2450 = vrot.lane.b32.xlu0 %v2432, 127
    %v2451 = vpop.permute.xlu0 %2450
    %2452 = vrot.lane.b32.xlu0 %v2433, 127
    %v2453 = vpop.permute.xlu0 %2452
    %2454 = vrot.lane.b32.xlu0 %v2434, 127
    %v2455 = vpop.permute.xlu0 %2454
    %v2456 = vsel %vm61, %v2445, %v2447
    %v2457 = vsel %vm61, %v2447, %v2449
    %v2458 = vsel %vm61, %v2449, %v2451
    %v2459 = vsel %vm61, %v2451, %v2453
    %v2460 = vsel %vm61, %v2453, %v2455
    %v2462 = vsel %vm67, %v2437, 0
    %v2464 = vsel %vm71, %v2456, 0
    %v2466 = vsel %vm71, %v2457, 0
    %v2468 = vsel %vm71, %v2458, 0
    %v2470 = vsel %vm71, %v2459, 0
    %v2472 = vsel %vm71, %v2460, 0
    %v2474 = vsel %vm71, %v2455, 0
    %2476 = vmatprep.subr.mxu0 %v2466
    %2477 = vmatpush1.msra.mxu0 %v2464
    %2478 = vmatprep.subr.mxu0 0.0
    %2479 = vmatpush1.msra.mxu0 0.0
    %2480 = vmatprep.subr.mxu0 0.0
    %2481 = vmatpush1.msra.mxu0 0.0
    %2482 = vmatprep.subr.mxu0 0.0
    %2483 = vmatpush1.msra.mxu0 0.0
    %2484 = vmatprep.subr.mxu0 0.0
    %2485 = vmatpush1.msra.mxu0 0.0
    %2486 = vmatprep.subr.mxu0 0.0
    %2487 = vmatpush1.msra.mxu0 0.0
    %2488 = vmatprep.subr.mxu0 0.0
    %2489 = vmatpush1.msra.mxu0 0.0
    %2490 = vmatprep.subr.mxu0 0.0
    %2491 = vmatpush1.msra.mxu0 0.0
    %2492 = vmatprep.subr.mxu0 0.0
    %2493 = vmatpush1.msra.mxu0 0.0
    %2494 = vmatprep.subr.mxu0 0.0
    %2495 = vmatpush1.msra.mxu0 0.0
    %2496 = vmatprep.subr.mxu0 0.0
    %2497 = vmatpush1.msra.mxu0 0.0
    %2498 = vmatprep.subr.mxu0 0.0
    %2499 = vmatpush1.msra.mxu0 0.0
    %2500 = vmatprep.subr.mxu0 0.0
    %2501 = vmatpush1.msra.mxu0 0.0
    %2502 = vmatprep.subr.mxu0 0.0
    %2503 = vmatpush1.msra.mxu0 0.0
    %2504 = vmatprep.subr.mxu0 0.0
    %2505 = vmatpush1.msra.mxu0 0.0
    %2506 = vmatprep.subr.mxu0 0.0
    %2507 = vmatpush1.msra.mxu0 0.0
    %2508 = vmatprep.subr.mxu0 0.0
    %2509 = vmatpush1.msra.mxu0 0.0
    %2510 = vmatprep.subr.mxu0 0.0
    %2511 = vmatpush1.msra.mxu0 0.0
    %2512 = vmatprep.subr.mxu0 0.0
    %2513 = vmatpush1.msra.mxu0 0.0
    %2514 = vmatprep.subr.mxu0 0.0
    %2515 = vmatpush1.msra.mxu0 0.0
    %2516 = vmatprep.subr.mxu0 0.0
    %2517 = vmatpush1.msra.mxu0 0.0
    %2518 = vmatprep.subr.mxu0 0.0
    %2519 = vmatpush1.msra.mxu0 0.0
    %2520 = vmatprep.subr.mxu0 0.0
    %2521 = vmatpush1.msra.mxu0 0.0
    %2522 = vmatprep.subr.mxu0 0.0
    %2523 = vmatpush1.msra.mxu0 0.0
    %2524 = vmatprep.subr.mxu0 0.0
    %2525 = vmatpush1.msra.mxu0 0.0
    %2526 = vmatprep.subr.mxu0 0.0
    %2527 = vmatpush1.msra.mxu0 0.0
    %2528 = vmatprep.subr.mxu0 0.0
    %2529 = vmatpush1.msra.mxu0 0.0
    %2530 = vmatprep.subr.mxu0 0.0
    %2531 = vmatpush1.msra.mxu0 0.0
    %2532 = vmatprep.subr.mxu0 0.0
    %2533 = vmatpush1.msra.mxu0 0.0
    %2534 = vmatprep.subr.mxu0 0.0
    %2535 = vmatpush1.msra.mxu0 0.0
    %2536 = vmatprep.subr.mxu0 0.0
    %2537 = vmatpush1.msra.mxu0 0.0
    %2538 = vmatprep.subr.mxu0 0.0
    %2539 = vmatpush1.msra.mxu0 0.0
    %2540 = vmatprep.mubr.f32.mxu0 0.0
    %2541 = vmatmul.mubr.f32.gmra.mrb[0].mxu0 %v2462
    %v2542 = vpop.f32.mrb[0].mxu0
    %v2543 = vadd.f32 0.0, %v2542
    %v2544 = vpop.f32.mrb[0].mxu0
    %v2545 = vadd.f32 0.0, %v2544
    %2546 = vdwg.mxu0
    %2547 = vmatprep.subr.mxu0 %v2470
    %2548 = vmatpush1.msra.mxu0 %v2468
    %2549 = vmatprep.subr.mxu0 0.0
    %2550 = vmatpush1.msra.mxu0 0.0
    %2551 = vmatprep.subr.mxu0 0.0
    %2552 = vmatpush1.msra.mxu0 0.0
    %2553 = vmatprep.subr.mxu0 0.0
    %2554 = vmatpush1.msra.mxu0 0.0
    %2555 = vmatprep.subr.mxu0 0.0
    %2556 = vmatpush1.msra.mxu0 0.0
    %2557 = vmatprep.subr.mxu0 0.0
    %2558 = vmatpush1.msra.mxu0 0.0
    %2559 = vmatprep.subr.mxu0 0.0
    %2560 = vmatpush1.msra.mxu0 0.0
    %2561 = vmatprep.subr.mxu0 0.0
    %2562 = vmatpush1.msra.mxu0 0.0
    %2563 = vmatprep.subr.mxu0 0.0
    %2564 = vmatpush1.msra.mxu0 0.0
    %2565 = vmatprep.subr.mxu0 0.0
    %2566 = vmatpush1.msra.mxu0 0.0
    %2567 = vmatprep.subr.mxu0 0.0
    %2568 = vmatpush1.msra.mxu0 0.0
    %2569 = vmatprep.subr.mxu0 0.0
    %2570 = vmatpush1.msra.mxu0 0.0
    %2571 = vmatprep.subr.mxu0 0.0
    %2572 = vmatpush1.msra.mxu0 0.0
    %2573 = vmatprep.subr.mxu0 0.0
    %2574 = vmatpush1.msra.mxu0 0.0
    %2575 = vmatprep.subr.mxu0 0.0
    %2576 = vmatpush1.msra.mxu0 0.0
    %2577 = vmatprep.subr.mxu0 0.0
    %2578 = vmatpush1.msra.mxu0 0.0
    %2579 = vmatprep.subr.mxu0 0.0
    %2580 = vmatpush1.msra.mxu0 0.0
    %2581 = vmatprep.subr.mxu0 0.0
    %2582 = vmatpush1.msra.mxu0 0.0
    %2583 = vmatprep.subr.mxu0 0.0
    %2584 = vmatpush1.msra.mxu0 0.0
    %2585 = vmatprep.subr.mxu0 0.0
    %2586 = vmatpush1.msra.mxu0 0.0
    %2587 = vmatprep.subr.mxu0 0.0
    %2588 = vmatpush1.msra.mxu0 0.0
    %2589 = vmatprep.subr.mxu0 0.0
    %2590 = vmatpush1.msra.mxu0 0.0
    %2591 = vmatprep.subr.mxu0 0.0
    %2592 = vmatpush1.msra.mxu0 0.0
    %2593 = vmatprep.subr.mxu0 0.0
    %2594 = vmatpush1.msra.mxu0 0.0
    %2595 = vmatprep.subr.mxu0 0.0
    %2596 = vmatpush1.msra.mxu0 0.0
    %2597 = vmatprep.subr.mxu0 0.0
    %2598 = vmatpush1.msra.mxu0 0.0
    %2599 = vmatprep.subr.mxu0 0.0
    %2600 = vmatpush1.msra.mxu0 0.0
    %2601 = vmatprep.subr.mxu0 0.0
    %2602 = vmatpush1.msra.mxu0 0.0
    %2603 = vmatprep.subr.mxu0 0.0
    %2604 = vmatpush1.msra.mxu0 0.0
    %2605 = vmatprep.subr.mxu0 0.0
    %2606 = vmatpush1.msra.mxu0 0.0
    %2607 = vmatprep.subr.mxu0 0.0
    %2608 = vmatpush1.msra.mxu0 0.0
    %2609 = vmatprep.subr.mxu0 0.0
    %2610 = vmatpush1.msra.mxu0 0.0
    %2611 = vmatprep.mubr.f32.mxu0 0.0
    %2612 = vmatmul.mubr.f32.gmra.mrb[0].mxu0 %v2462
    %v2613 = vpop.f32.mrb[0].mxu0
    %v2614 = vadd.f32 0.0, %v2613
    %v2615 = vpop.f32.mrb[0].mxu0
    %v2616 = vadd.f32 0.0, %v2615
    %2617 = vdwg.mxu0
    %2618 = vmatprep.subr.mxu0 %v2474
    %2619 = vmatpush1.msra.mxu0 %v2472
    %2620 = vmatprep.subr.mxu0 0.0
    %2621 = vmatpush1.msra.mxu0 0.0
    %2622 = vmatprep.subr.mxu0 0.0
    %2623 = vmatpush1.msra.mxu0 0.0
    %2624 = vmatprep.subr.mxu0 0.0
    %2625 = vmatpush1.msra.mxu0 0.0
    %2626 = vmatprep.subr.mxu0 0.0
    %2627 = vmatpush1.msra.mxu0 0.0
    %2628 = vmatprep.subr.mxu0 0.0
    %2629 = vmatpush1.msra.mxu0 0.0
    %2630 = vmatprep.subr.mxu0 0.0
    %2631 = vmatpush1.msra.mxu0 0.0
    %2632 = vmatprep.subr.mxu0 0.0
    %2633 = vmatpush1.msra.mxu0 0.0
    %2634 = vmatprep.subr.mxu0 0.0
    %2635 = vmatpush1.msra.mxu0 0.0
    %2636 = vmatprep.subr.mxu0 0.0
    %2637 = vmatpush1.msra.mxu0 0.0
    %2638 = vmatprep.subr.mxu0 0.0
    %2639 = vmatpush1.msra.mxu0 0.0
    %2640 = vmatprep.subr.mxu0 0.0
    %2641 = vmatpush1.msra.mxu0 0.0
    %2642 = vmatprep.subr.mxu0 0.0
    %2643 = vmatpush1.msra.mxu0 0.0
    %2644 = vmatprep.subr.mxu0 0.0
    %2645 = vmatpush1.msra.mxu0 0.0
    %2646 = vmatprep.subr.mxu0 0.0
    %2647 = vmatpush1.msra.mxu0 0.0
    %2648 = vmatprep.subr.mxu0 0.0
    %2649 = vmatpush1.msra.mxu0 0.0
    %2650 = vmatprep.subr.mxu0 0.0
    %2651 = vmatpush1.msra.mxu0 0.0
    %2652 = vmatprep.subr.mxu0 0.0
    %2653 = vmatpush1.msra.mxu0 0.0
    %2654 = vmatprep.subr.mxu0 0.0
    %2655 = vmatpush1.msra.mxu0 0.0
    %2656 = vmatprep.subr.mxu0 0.0
    %2657 = vmatpush1.msra.mxu0 0.0
    %2658 = vmatprep.subr.mxu0 0.0
    %2659 = vmatpush1.msra.mxu0 0.0
    %2660 = vmatprep.subr.mxu0 0.0
    %2661 = vmatpush1.msra.mxu0 0.0
    %2662 = vmatprep.subr.mxu0 0.0
    %2663 = vmatpush1.msra.mxu0 0.0
    %2664 = vmatprep.subr.mxu0 0.0
    %2665 = vmatpush1.msra.mxu0 0.0
    %2666 = vmatprep.subr.mxu0 0.0
    %2667 = vmatpush1.msra.mxu0 0.0
    %2668 = vmatprep.subr.mxu0 0.0
    %2669 = vmatpush1.msra.mxu0 0.0
    %2670 = vmatprep.subr.mxu0 0.0
    %2671 = vmatpush1.msra.mxu0 0.0
    %2672 = vmatprep.subr.mxu0 0.0
    %2673 = vmatpush1.msra.mxu0 0.0
    %2674 = vmatprep.subr.mxu0 0.0
    %2675 = vmatpush1.msra.mxu0 0.0
    %2676 = vmatprep.subr.mxu0 0.0
    %2677 = vmatpush1.msra.mxu0 0.0
    %2678 = vmatprep.subr.mxu0 0.0
    %2679 = vmatpush1.msra.mxu0 0.0
    %2680 = vmatprep.subr.mxu0 0.0
    %2681 = vmatpush1.msra.mxu0 0.0
    %2682 = vmatprep.mubr.f32.mxu0 0.0
    %2683 = vmatmul.mubr.f32.gmra.mrb[0].mxu0 %v2462
    %v2684 = vpop.f32.mrb[0].mxu0
    %v2685 = vadd.f32 0.0, %v2684
    %v2686 = vpop.f32.mrb[0].mxu0
    %v2687 = vadd.f32 0.0, %v2686
    %2688 = vdwg.mxu0
    %v2690 = vsel %vm67, %v2435, 0
    %v2692 = vsel %vm71, %v2429, 0
    %v2694 = vsel %vm71, %v2430, 0
    %v2696 = vsel %vm71, %v2431, 0
    %v2698 = vsel %vm71, %v2432, 0
    %v2700 = vsel %vm71, %v2433, 0
    %v2702 = vsel %vm71, %v2434, 0
    %2704 = vmatprep.subr.mxu0 %v2694
    %2705 = vmatpush1.msra.mxu0 %v2692
    %2706 = vmatprep.subr.mxu0 0.0
    %2707 = vmatpush1.msra.mxu0 0.0
    %2708 = vmatprep.subr.mxu0 0.0
    %2709 = vmatpush1.msra.mxu0 0.0
    %2710 = vmatprep.subr.mxu0 0.0
    %2711 = vmatpush1.msra.mxu0 0.0
    %2712 = vmatprep.subr.mxu0 0.0
    %2713 = vmatpush1.msra.mxu0 0.0
    %2714 = vmatprep.subr.mxu0 0.0
    %2715 = vmatpush1.msra.mxu0 0.0
    %2716 = vmatprep.subr.mxu0 0.0
    %2717 = vmatpush1.msra.mxu0 0.0
    %2718 = vmatprep.subr.mxu0 0.0
    %2719 = vmatpush1.msra.mxu0 0.0
    %2720 = vmatprep.subr.mxu0 0.0
    %2721 = vmatpush1.msra.mxu0 0.0
    %2722 = vmatprep.subr.mxu0 0.0
    %2723 = vmatpush1.msra.mxu0 0.0
    %2724 = vmatprep.subr.mxu0 0.0
    %2725 = vmatpush1.msra.mxu0 0.0
    %2726 = vmatprep.subr.mxu0 0.0
    %2727 = vmatpush1.msra.mxu0 0.0
    %2728 = vmatprep.subr.mxu0 0.0
    %2729 = vmatpush1.msra.mxu0 0.0
    %2730 = vmatprep.subr.mxu0 0.0
    %2731 = vmatpush1.msra.mxu0 0.0
    %2732 = vmatprep.subr.mxu0 0.0
    %2733 = vmatpush1.msra.mxu0 0.0
    %2734 = vmatprep.subr.mxu0 0.0
    %2735 = vmatpush1.msra.mxu0 0.0
    %2736 = vmatprep.subr.mxu0 0.0
    %2737 = vmatpush1.msra.mxu0 0.0
    %2738 = vmatprep.subr.mxu0 0.0
    %2739 = vmatpush1.msra.mxu0 0.0
    %2740 = vmatprep.subr.mxu0 0.0
    %2741 = vmatpush1.msra.mxu0 0.0
    %2742 = vmatprep.subr.mxu0 0.0
    %2743 = vmatpush1.msra.mxu0 0.0
    %2744 = vmatprep.subr.mxu0 0.0
    %2745 = vmatpush1.msra.mxu0 0.0
    %2746 = vmatprep.subr.mxu0 0.0
    %2747 = vmatpush1.msra.mxu0 0.0
    %2748 = vmatprep.subr.mxu0 0.0
    %2749 = vmatpush1.msra.mxu0 0.0
    %2750 = vmatprep.subr.mxu0 0.0
    %2751 = vmatpush1.msra.mxu0 0.0
    %2752 = vmatprep.subr.mxu0 0.0
    %2753 = vmatpush1.msra.mxu0 0.0
    %2754 = vmatprep.subr.mxu0 0.0
    %2755 = vmatpush1.msra.mxu0 0.0
    %2756 = vmatprep.subr.mxu0 0.0
    %2757 = vmatpush1.msra.mxu0 0.0
    %2758 = vmatprep.subr.mxu0 0.0
    %2759 = vmatpush1.msra.mxu0 0.0
    %2760 = vmatprep.subr.mxu0 0.0
    %2761 = vmatpush1.msra.mxu0 0.0
    %2762 = vmatprep.subr.mxu0 0.0
    %2763 = vmatpush1.msra.mxu0 0.0
    %2764 = vmatprep.subr.mxu0 0.0
    %2765 = vmatpush1.msra.mxu0 0.0
    %2766 = vmatprep.subr.mxu0 0.0
    %2767 = vmatpush1.msra.mxu0 0.0
    %2768 = vmatprep.mubr.f32.mxu0 0.0
    %2769 = vmatmul.mubr.f32.gmra.mrb[0].mxu0 %v2690
    %v2770 = vpop.f32.mrb[0].mxu0
    %v2771 = vadd.f32 %v2543, %v2770
    %v2772 = vpop.f32.mrb[0].mxu0
    %v2773 = vadd.f32 %v2545, %v2772
    %2774 = vdwg.mxu0
    %2775 = vmatprep.subr.mxu0 %v2698
    %2776 = vmatpush1.msra.mxu0 %v2696
    %2777 = vmatprep.subr.mxu0 0.0
    %2778 = vmatpush1.msra.mxu0 0.0
    %2779 = vmatprep.subr.mxu0 0.0
    %2780 = vmatpush1.msra.mxu0 0.0
    %2781 = vmatprep.subr.mxu0 0.0
    %2782 = vmatpush1.msra.mxu0 0.0
    %2783 = vmatprep.subr.mxu0 0.0
    %2784 = vmatpush1.msra.mxu0 0.0
    %2785 = vmatprep.subr.mxu0 0.0
    %2786 = vmatpush1.msra.mxu0 0.0
    %2787 = vmatprep.subr.mxu0 0.0
    %2788 = vmatpush1.msra.mxu0 0.0
    %2789 = vmatprep.subr.mxu0 0.0
    %2790 = vmatpush1.msra.mxu0 0.0
    %2791 = vmatprep.subr.mxu0 0.0
    %2792 = vmatpush1.msra.mxu0 0.0
    %2793 = vmatprep.subr.mxu0 0.0
    %2794 = vmatpush1.msra.mxu0 0.0
    %2795 = vmatprep.subr.mxu0 0.0
    %2796 = vmatpush1.msra.mxu0 0.0
    %2797 = vmatprep.subr.mxu0 0.0
    %2798 = vmatpush1.msra.mxu0 0.0
    %2799 = vmatprep.subr.mxu0 0.0
    %2800 = vmatpush1.msra.mxu0 0.0
    %2801 = vmatprep.subr.mxu0 0.0
    %2802 = vmatpush1.msra.mxu0 0.0
    %2803 = vmatprep.subr.mxu0 0.0
    %2804 = vmatpush1.msra.mxu0 0.0
    %2805 = vmatprep.subr.mxu0 0.0
    %2806 = vmatpush1.msra.mxu0 0.0
    %2807 = vmatprep.subr.mxu0 0.0
    %2808 = vmatpush1.msra.mxu0 0.0
    %2809 = vmatprep.subr.mxu0 0.0
    %2810 = vmatpush1.msra.mxu0 0.0
    %2811 = vmatprep.subr.mxu0 0.0
    %2812 = vmatpush1.msra.mxu0 0.0
    %2813 = vmatprep.subr.mxu0 0.0
    %2814 = vmatpush1.msra.mxu0 0.0
    %2815 = vmatprep.subr.mxu0 0.0
    %2816 = vmatpush1.msra.mxu0 0.0
    %2817 = vmatprep.subr.mxu0 0.0
    %2818 = vmatpush1.msra.mxu0 0.0
    %2819 = vmatprep.subr.mxu0 0.0
    %2820 = vmatpush1.msra.mxu0 0.0
    %2821 = vmatprep.subr.mxu0 0.0
    %2822 = vmatpush1.msra.mxu0 0.0
    %2823 = vmatprep.subr.mxu0 0.0
    %2824 = vmatpush1.msra.mxu0 0.0
    %2825 = vmatprep.subr.mxu0 0.0
    %2826 = vmatpush1.msra.mxu0 0.0
    %2827 = vmatprep.subr.mxu0 0.0
    %2828 = vmatpush1.msra.mxu0 0.0
    %2829 = vmatprep.subr.mxu0 0.0
    %2830 = vmatpush1.msra.mxu0 0.0
    %2831 = vmatprep.subr.mxu0 0.0
    %2832 = vmatpush1.msra.mxu0 0.0
    %2833 = vmatprep.subr.mxu0 0.0
    %2834 = vmatpush1.msra.mxu0 0.0
    %2835 = vmatprep.subr.mxu0 0.0
    %2836 = vmatpush1.msra.mxu0 0.0
    %2837 = vmatprep.subr.mxu0 0.0
    %2838 = vmatpush1.msra.mxu0 0.0
    %2839 = vmatprep.mubr.f32.mxu0 0.0
    %2840 = vmatmul.mubr.f32.gmra.mrb[0].mxu0 %v2690
    %v2841 = vpop.f32.mrb[0].mxu0
    %v2842 = vadd.f32 %v2614, %v2841
    %v2843 = vpop.f32.mrb[0].mxu0
    %v2844 = vadd.f32 %v2616, %v2843
    %2845 = vdwg.mxu0
    %2846 = vmatprep.subr.mxu0 %v2702
    %2847 = vmatpush1.msra.mxu0 %v2700
    %2848 = vmatprep.subr.mxu0 0.0
    %2849 = vmatpush1.msra.mxu0 0.0
    %2850 = vmatprep.subr.mxu0 0.0
    %2851 = vmatpush1.msra.mxu0 0.0
    %2852 = vmatprep.subr.mxu0 0.0
    %2853 = vmatpush1.msra.mxu0 0.0
    %2854 = vmatprep.subr.mxu0 0.0
    %2855 = vmatpush1.msra.mxu0 0.0
    %2856 = vmatprep.subr.mxu0 0.0
    %2857 = vmatpush1.msra.mxu0 0.0
    %2858 = vmatprep.subr.mxu0 0.0
    %2859 = vmatpush1.msra.mxu0 0.0
    %2860 = vmatprep.subr.mxu0 0.0
    %2861 = vmatpush1.msra.mxu0 0.0
    %2862 = vmatprep.subr.mxu0 0.0
    %2863 = vmatpush1.msra.mxu0 0.0
    %2864 = vmatprep.subr.mxu0 0.0
    %2865 = vmatpush1.msra.mxu0 0.0
    %2866 = vmatprep.subr.mxu0 0.0
    %2867 = vmatpush1.msra.mxu0 0.0
    %2868 = vmatprep.subr.mxu0 0.0
    %2869 = vmatpush1.msra.mxu0 0.0
    %2870 = vmatprep.subr.mxu0 0.0
    %2871 = vmatpush1.msra.mxu0 0.0
    %2872 = vmatprep.subr.mxu0 0.0
    %2873 = vmatpush1.msra.mxu0 0.0
    %2874 = vmatprep.subr.mxu0 0.0
    %2875 = vmatpush1.msra.mxu0 0.0
    %2876 = vmatprep.subr.mxu0 0.0
    %2877 = vmatpush1.msra.mxu0 0.0
    %2878 = vmatprep.subr.mxu0 0.0
    %2879 = vmatpush1.msra.mxu0 0.0
    %2880 = vmatprep.subr.mxu0 0.0
    %2881 = vmatpush1.msra.mxu0 0.0
    %2882 = vmatprep.subr.mxu0 0.0
    %2883 = vmatpush1.msra.mxu0 0.0
    %2884 = vmatprep.subr.mxu0 0.0
    %2885 = vmatpush1.msra.mxu0 0.0
    %2886 = vmatprep.subr.mxu0 0.0
    %2887 = vmatpush1.msra.mxu0 0.0
    %2888 = vmatprep.subr.mxu0 0.0
    %2889 = vmatpush1.msra.mxu0 0.0
    %2890 = vmatprep.subr.mxu0 0.0
    %2891 = vmatpush1.msra.mxu0 0.0
    %2892 = vmatprep.subr.mxu0 0.0
    %2893 = vmatpush1.msra.mxu0 0.0
    %2894 = vmatprep.subr.mxu0 0.0
    %2895 = vmatpush1.msra.mxu0 0.0
    %2896 = vmatprep.subr.mxu0 0.0
    %2897 = vmatpush1.msra.mxu0 0.0
    %2898 = vmatprep.subr.mxu0 0.0
    %2899 = vmatpush1.msra.mxu0 0.0
    %2900 = vmatprep.subr.mxu0 0.0
    %2901 = vmatpush1.msra.mxu0 0.0
    %2902 = vmatprep.subr.mxu0 0.0
    %2903 = vmatpush1.msra.mxu0 0.0
    %2904 = vmatprep.subr.mxu0 0.0
    %2905 = vmatpush1.msra.mxu0 0.0
    %2906 = vmatprep.subr.mxu0 0.0
    %2907 = vmatpush1.msra.mxu0 0.0
    %2908 = vmatprep.subr.mxu0 0.0
    %2909 = vmatpush1.msra.mxu0 0.0
    %2910 = vmatprep.mubr.f32.mxu0 0.0
    %2911 = vmatmul.mubr.f32.gmra.mrb[0].mxu0 %v2690
    %v2912 = vpop.f32.mrb[0].mxu0
    %v2913 = vadd.f32 %v2685, %v2912
    %v2914 = vpop.f32.mrb[0].mxu0
    %v2915 = vadd.f32 %v2687, %v2914
    %2916 = vdwg.mxu0
    %s2917 = scalar_lea.vmem %s6, 8
    %v2918 = vld [vmem:[%s2917] sm:$0xf]
    %2919 = vrot.lane.b32.xlu0 %v2429, 126
    %v2920 = vpop.permute.xlu0 %2919
    %2921 = vrot.lane.b32.xlu0 %v2430, 126
    %v2922 = vpop.permute.xlu0 %2921
    %2923 = vrot.lane.b32.xlu0 %v2431, 126
    %v2924 = vpop.permute.xlu0 %2923
    %2925 = vrot.lane.b32.xlu0 %v2432, 126
    %v2926 = vpop.permute.xlu0 %2925
    %2927 = vrot.lane.b32.xlu0 %v2433, 126
    %v2928 = vpop.permute.xlu0 %2927
    %2929 = vrot.lane.b32.xlu0 %v2434, 126
    %v2930 = vpop.permute.xlu0 %2929
    %v2931 = vsel %vm539, %v2920, %v2922
    %v2932 = vsel %vm539, %v2922, %v2924
    %v2933 = vsel %vm539, %v2924, %v2926
    %v2934 = vsel %vm539, %v2926, %v2928
    %v2935 = vsel %vm539, %v2928, %v2930
    %v2937 = vsel %vm67, %v2918, 0
    %v2939 = vsel %vm71, %v2931, 0
    %v2941 = vsel %vm71, %v2932, 0
    %v2943 = vsel %vm71, %v2933, 0
    %v2945 = vsel %vm71, %v2934, 0
    %v2947 = vsel %vm71, %v2935, 0
    %v2949 = vsel %vm71, %v2930, 0
    %2951 = vmatprep.subr.mxu0 %v2941
    %2952 = vmatpush1.msra.mxu0 %v2939
    %2953 = vmatprep.subr.mxu0 0.0
    %2954 = vmatpush1.msra.mxu0 0.0
    %2955 = vmatprep.subr.mxu0 0.0
    %2956 = vmatpush1.msra.mxu0 0.0
    %2957 = vmatprep.subr.mxu0 0.0
    %2958 = vmatpush1.msra.mxu0 0.0
    %2959 = vmatprep.subr.mxu0 0.0
    %2960 = vmatpush1.msra.mxu0 0.0
    %2961 = vmatprep.subr.mxu0 0.0
    %2962 = vmatpush1.msra.mxu0 0.0
    %2963 = vmatprep.subr.mxu0 0.0
    %2964 = vmatpush1.msra.mxu0 0.0
    %2965 = vmatprep.subr.mxu0 0.0
    %2966 = vmatpush1.msra.mxu0 0.0
    %2967 = vmatprep.subr.mxu0 0.0
    %2968 = vmatpush1.msra.mxu0 0.0
    %2969 = vmatprep.subr.mxu0 0.0
    %2970 = vmatpush1.msra.mxu0 0.0
    %2971 = vmatprep.subr.mxu0 0.0
    %2972 = vmatpush1.msra.mxu0 0.0
    %2973 = vmatprep.subr.mxu0 0.0
    %2974 = vmatpush1.msra.mxu0 0.0
    %2975 = vmatprep.subr.mxu0 0.0
    %2976 = vmatpush1.msra.mxu0 0.0
    %2977 = vmatprep.subr.mxu0 0.0
    %2978 = vmatpush1.msra.mxu0 0.0
    %2979 = vmatprep.subr.mxu0 0.0
    %2980 = vmatpush1.msra.mxu0 0.0
    %2981 = vmatprep.subr.mxu0 0.0
    %2982 = vmatpush1.msra.mxu0 0.0
    %2983 = vmatprep.subr.mxu0 0.0
    %2984 = vmatpush1.msra.mxu0 0.0
    %2985 = vmatprep.subr.mxu0 0.0
    %2986 = vmatpush1.msra.mxu0 0.0
    %2987 = vmatprep.subr.mxu0 0.0
    %2988 = vmatpush1.msra.mxu0 0.0
    %2989 = vmatprep.subr.mxu0 0.0
    %2990 = vmatpush1.msra.mxu0 0.0
    %2991 = vmatprep.subr.mxu0 0.0
    %2992 = vmatpush1.msra.mxu0 0.0
    %2993 = vmatprep.subr.mxu0 0.0
    %2994 = vmatpush1.msra.mxu0 0.0
    %2995 = vmatprep.subr.mxu0 0.0
    %2996 = vmatpush1.msra.mxu0 0.0
    %2997 = vmatprep.subr.mxu0 0.0
    %2998 = vmatpush1.msra.mxu0 0.0
    %2999 = vmatprep.subr.mxu0 0.0
    %3000 = vmatpush1.msra.mxu0 0.0
    %3001 = vmatprep.subr.mxu0 0.0
    %3002 = vmatpush1.msra.mxu0 0.0
    %3003 = vmatprep.subr.mxu0 0.0
    %3004 = vmatpush1.msra.mxu0 0.0
    %3005 = vmatprep.subr.mxu0 0.0
    %3006 = vmatpush1.msra.mxu0 0.0
    %3007 = vmatprep.subr.mxu0 0.0
    %3008 = vmatpush1.msra.mxu0 0.0
    %3009 = vmatprep.subr.mxu0 0.0
    %3010 = vmatpush1.msra.mxu0 0.0
    %3011 = vmatprep.subr.mxu0 0.0
    %3012 = vmatpush1.msra.mxu0 0.0
    %3013 = vmatprep.subr.mxu0 0.0
    %3014 = vmatpush1.msra.mxu0 0.0
    %3015 = vmatprep.mubr.f32.mxu0 0.0
    %3016 = vmatmul.mubr.f32.gmra.mrb[0].mxu0 %v2937
    %v3017 = vpop.f32.mrb[0].mxu0
    %v3018 = vadd.f32 0.0, %v3017
    %v3019 = vpop.f32.mrb[0].mxu0
    %v3020 = vadd.f32 0.0, %v3019
    %3021 = vdwg.mxu0
    %3022 = vmatprep.subr.mxu0 %v2945
    %3023 = vmatpush1.msra.mxu0 %v2943
    %3024 = vmatprep.subr.mxu0 0.0
    %3025 = vmatpush1.msra.mxu0 0.0
    %3026 = vmatprep.subr.mxu0 0.0
    %3027 = vmatpush1.msra.mxu0 0.0
    %3028 = vmatprep.subr.mxu0 0.0
    %3029 = vmatpush1.msra.mxu0 0.0
    %3030 = vmatprep.subr.mxu0 0.0
    %3031 = vmatpush1.msra.mxu0 0.0
    %3032 = vmatprep.subr.mxu0 0.0
    %3033 = vmatpush1.msra.mxu0 0.0
    %3034 = vmatprep.subr.mxu0 0.0
    %3035 = vmatpush1.msra.mxu0 0.0
    %3036 = vmatprep.subr.mxu0 0.0
    %3037 = vmatpush1.msra.mxu0 0.0
    %3038 = vmatprep.subr.mxu0 0.0
    %3039 = vmatpush1.msra.mxu0 0.0
    %3040 = vmatprep.subr.mxu0 0.0
    %3041 = vmatpush1.msra.mxu0 0.0
    %3042 = vmatprep.subr.mxu0 0.0
    %3043 = vmatpush1.msra.mxu0 0.0
    %3044 = vmatprep.subr.mxu0 0.0
    %3045 = vmatpush1.msra.mxu0 0.0
    %3046 = vmatprep.subr.mxu0 0.0
    %3047 = vmatpush1.msra.mxu0 0.0
    %3048 = vmatprep.subr.mxu0 0.0
    %3049 = vmatpush1.msra.mxu0 0.0
    %3050 = vmatprep.subr.mxu0 0.0
    %3051 = vmatpush1.msra.mxu0 0.0
    %3052 = vmatprep.subr.mxu0 0.0
    %3053 = vmatpush1.msra.mxu0 0.0
    %3054 = vmatprep.subr.mxu0 0.0
    %3055 = vmatpush1.msra.mxu0 0.0
    %3056 = vmatprep.subr.mxu0 0.0
    %3057 = vmatpush1.msra.mxu0 0.0
    %3058 = vmatprep.subr.mxu0 0.0
    %3059 = vmatpush1.msra.mxu0 0.0
    %3060 = vmatprep.subr.mxu0 0.0
    %3061 = vmatpush1.msra.mxu0 0.0
    %3062 = vmatprep.subr.mxu0 0.0
    %3063 = vmatpush1.msra.mxu0 0.0
    %3064 = vmatprep.subr.mxu0 0.0
    %3065 = vmatpush1.msra.mxu0 0.0
    %3066 = vmatprep.subr.mxu0 0.0
    %3067 = vmatpush1.msra.mxu0 0.0
    %3068 = vmatprep.subr.mxu0 0.0
    %3069 = vmatpush1.msra.mxu0 0.0
    %3070 = vmatprep.subr.mxu0 0.0
    %3071 = vmatpush1.msra.mxu0 0.0
    %3072 = vmatprep.subr.mxu0 0.0
    %3073 = vmatpush1.msra.mxu0 0.0
    %3074 = vmatprep.subr.mxu0 0.0
    %3075 = vmatpush1.msra.mxu0 0.0
    %3076 = vmatprep.subr.mxu0 0.0
    %3077 = vmatpush1.msra.mxu0 0.0
    %3078 = vmatprep.subr.mxu0 0.0
    %3079 = vmatpush1.msra.mxu0 0.0
    %3080 = vmatprep.subr.mxu0 0.0
    %3081 = vmatpush1.msra.mxu0 0.0
    %3082 = vmatprep.subr.mxu0 0.0
    %3083 = vmatpush1.msra.mxu0 0.0
    %3084 = vmatprep.subr.mxu0 0.0
    %3085 = vmatpush1.msra.mxu0 0.0
    %3086 = vmatprep.mubr.f32.mxu0 0.0
    %3087 = vmatmul.mubr.f32.gmra.mrb[0].mxu0 %v2937
    %v3088 = vpop.f32.mrb[0].mxu0
    %v3089 = vadd.f32 0.0, %v3088
    %v3090 = vpop.f32.mrb[0].mxu0
    %v3091 = vadd.f32 0.0, %v3090
    %3092 = vdwg.mxu0
    %3093 = vmatprep.subr.mxu0 %v2949
    %3094 = vmatpush1.msra.mxu0 %v2947
    %3095 = vmatprep.subr.mxu0 0.0
    %3096 = vmatpush1.msra.mxu0 0.0
    %3097 = vmatprep.subr.mxu0 0.0
    %3098 = vmatpush1.msra.mxu0 0.0
    %3099 = vmatprep.subr.mxu0 0.0
    %3100 = vmatpush1.msra.mxu0 0.0
    %3101 = vmatprep.subr.mxu0 0.0
    %3102 = vmatpush1.msra.mxu0 0.0
    %3103 = vmatprep.subr.mxu0 0.0
    %3104 = vmatpush1.msra.mxu0 0.0
    %3105 = vmatprep.subr.mxu0 0.0
    %3106 = vmatpush1.msra.mxu0 0.0
    %3107 = vmatprep.subr.mxu0 0.0
    %3108 = vmatpush1.msra.mxu0 0.0
    %3109 = vmatprep.subr.mxu0 0.0
    %3110 = vmatpush1.msra.mxu0 0.0
    %3111 = vmatprep.subr.mxu0 0.0
    %3112 = vmatpush1.msra.mxu0 0.0
    %3113 = vmatprep.subr.mxu0 0.0
    %3114 = vmatpush1.msra.mxu0 0.0
    %3115 = vmatprep.subr.mxu0 0.0
    %3116 = vmatpush1.msra.mxu0 0.0
    %3117 = vmatprep.subr.mxu0 0.0
    %3118 = vmatpush1.msra.mxu0 0.0
    %3119 = vmatprep.subr.mxu0 0.0
    %3120 = vmatpush1.msra.mxu0 0.0
    %3121 = vmatprep.subr.mxu0 0.0
    %3122 = vmatpush1.msra.mxu0 0.0
    %3123 = vmatprep.subr.mxu0 0.0
    %3124 = vmatpush1.msra.mxu0 0.0
    %3125 = vmatprep.subr.mxu0 0.0
    %3126 = vmatpush1.msra.mxu0 0.0
    %3127 = vmatprep.subr.mxu0 0.0
    %3128 = vmatpush1.msra.mxu0 0.0
    %3129 = vmatprep.subr.mxu0 0.0
    %3130 = vmatpush1.msra.mxu0 0.0
    %3131 = vmatprep.subr.mxu0 0.0
    %3132 = vmatpush1.msra.mxu0 0.0
    %3133 = vmatprep.subr.mxu0 0.0
    %3134 = vmatpush1.msra.mxu0 0.0
    %3135 = vmatprep.subr.mxu0 0.0
    %3136 = vmatpush1.msra.mxu0 0.0
    %3137 = vmatprep.subr.mxu0 0.0
    %3138 = vmatpush1.msra.mxu0 0.0
    %3139 = vmatprep.subr.mxu0 0.0
    %3140 = vmatpush1.msra.mxu0 0.0
    %3141 = vmatprep.subr.mxu0 0.0
    %3142 = vmatpush1.msra.mxu0 0.0
    %3143 = vmatprep.subr.mxu0 0.0
    %3144 = vmatpush1.msra.mxu0 0.0
    %3145 = vmatprep.subr.mxu0 0.0
    %3146 = vmatpush1.msra.mxu0 0.0
    %3147 = vmatprep.subr.mxu0 0.0
    %3148 = vmatpush1.msra.mxu0 0.0
    %3149 = vmatprep.subr.mxu0 0.0
    %3150 = vmatpush1.msra.mxu0 0.0
    %3151 = vmatprep.subr.mxu0 0.0
    %3152 = vmatpush1.msra.mxu0 0.0
    %3153 = vmatprep.subr.mxu0 0.0
    %3154 = vmatpush1.msra.mxu0 0.0
    %3155 = vmatprep.subr.mxu0 0.0
    %3156 = vmatpush1.msra.mxu0 0.0
    %3157 = vmatprep.mubr.f32.mxu0 0.0
    %3158 = vmatmul.mubr.f32.gmra.mrb[0].mxu0 %v2937
    %v3159 = vpop.f32.mrb[0].mxu0
    %v3160 = vadd.f32 0.0, %v3159
    %v3161 = vpop.f32.mrb[0].mxu0
    %v3162 = vadd.f32 0.0, %v3161
    %3163 = vdwg.mxu0
    %v3164 = vadd.f32 %v2771, %v3018
    %v3165 = vadd.f32 %v2773, %v3020
    %v3166 = vadd.f32 %v2842, %v3089
    %v3167 = vadd.f32 %v2844, %v3091
    %v3168 = vadd.f32 %v2913, %v3160
    %v3169 = vadd.f32 %v2915, %v3162
    %s3170 = scalar_lea.vmem %s6, 12
    %v3171 = vld [vmem:[%s3170] sm:$0xf]
    %3172 = vrot.lane.b32.xlu0 %v2429, 110
    %v3173 = vpop.permute.xlu0 %3172
    %3174 = vrot.lane.b32.xlu0 %v2430, 110
    %v3175 = vpop.permute.xlu0 %3174
    %3176 = vrot.lane.b32.xlu0 %v2431, 110
    %v3177 = vpop.permute.xlu0 %3176
    %3178 = vrot.lane.b32.xlu0 %v2432, 110
    %v3179 = vpop.permute.xlu0 %3178
    %3180 = vrot.lane.b32.xlu0 %v2433, 110
    %v3181 = vpop.permute.xlu0 %3180
    %3182 = vrot.lane.b32.xlu0 %v2434, 110
    %v3183 = vpop.permute.xlu0 %3182
    %v3184 = vsel %vm793, %v3173, %v3175
    %v3185 = vsel %vm793, %v3175, %v3177
    %v3186 = vsel %vm793, %v3177, %v3179
    %v3187 = vsel %vm793, %v3179, %v3181
    %v3188 = vsel %vm793, %v3181, %v3183
    %v3190 = vsel %vm67, %v3171, 0
    %v3192 = vsel %vm71, %v3184, 0
    %v3194 = vsel %vm71, %v3185, 0
    %v3196 = vsel %vm71, %v3186, 0
    %v3198 = vsel %vm71, %v3187, 0
    %v3200 = vsel %vm71, %v3188, 0
    %v3202 = vsel %vm71, %v3183, 0
    %3204 = vmatprep.subr.mxu0 %v3194
    %3205 = vmatpush1.msra.mxu0 %v3192
    %3206 = vmatprep.subr.mxu0 0.0
    %3207 = vmatpush1.msra.mxu0 0.0
    %3208 = vmatprep.subr.mxu0 0.0
    %3209 = vmatpush1.msra.mxu0 0.0
    %3210 = vmatprep.subr.mxu0 0.0
    %3211 = vmatpush1.msra.mxu0 0.0
    %3212 = vmatprep.subr.mxu0 0.0
    %3213 = vmatpush1.msra.mxu0 0.0
    %3214 = vmatprep.subr.mxu0 0.0
    %3215 = vmatpush1.msra.mxu0 0.0
    %3216 = vmatprep.subr.mxu0 0.0
    %3217 = vmatpush1.msra.mxu0 0.0
    %3218 = vmatprep.subr.mxu0 0.0
    %3219 = vmatpush1.msra.mxu0 0.0
    %3220 = vmatprep.subr.mxu0 0.0
    %3221 = vmatpush1.msra.mxu0 0.0
    %3222 = vmatprep.subr.mxu0 0.0
    %3223 = vmatpush1.msra.mxu0 0.0
    %3224 = vmatprep.subr.mxu0 0.0
    %3225 = vmatpush1.msra.mxu0 0.0
    %3226 = vmatprep.subr.mxu0 0.0
    %3227 = vmatpush1.msra.mxu0 0.0
    %3228 = vmatprep.subr.mxu0 0.0
    %3229 = vmatpush1.msra.mxu0 0.0
    %3230 = vmatprep.subr.mxu0 0.0
    %3231 = vmatpush1.msra.mxu0 0.0
    %3232 = vmatprep.subr.mxu0 0.0
    %3233 = vmatpush1.msra.mxu0 0.0
    %3234 = vmatprep.subr.mxu0 0.0
    %3235 = vmatpush1.msra.mxu0 0.0
    %3236 = vmatprep.subr.mxu0 0.0
    %3237 = vmatpush1.msra.mxu0 0.0
    %3238 = vmatprep.subr.mxu0 0.0
    %3239 = vmatpush1.msra.mxu0 0.0
    %3240 = vmatprep.subr.mxu0 0.0
    %3241 = vmatpush1.msra.mxu0 0.0
    %3242 = vmatprep.subr.mxu0 0.0
    %3243 = vmatpush1.msra.mxu0 0.0
    %3244 = vmatprep.subr.mxu0 0.0
    %3245 = vmatpush1.msra.mxu0 0.0
    %3246 = vmatprep.subr.mxu0 0.0
    %3247 = vmatpush1.msra.mxu0 0.0
    %3248 = vmatprep.subr.mxu0 0.0
    %3249 = vmatpush1.msra.mxu0 0.0
    %3250 = vmatprep.subr.mxu0 0.0
    %3251 = vmatpush1.msra.mxu0 0.0
    %3252 = vmatprep.subr.mxu0 0.0
    %3253 = vmatpush1.msra.mxu0 0.0
    %3254 = vmatprep.subr.mxu0 0.0
    %3255 = vmatpush1.msra.mxu0 0.0
    %3256 = vmatprep.subr.mxu0 0.0
    %3257 = vmatpush1.msra.mxu0 0.0
    %3258 = vmatprep.subr.mxu0 0.0
    %3259 = vmatpush1.msra.mxu0 0.0
    %3260 = vmatprep.subr.mxu0 0.0
    %3261 = vmatpush1.msra.mxu0 0.0
    %3262 = vmatprep.subr.mxu0 0.0
    %3263 = vmatpush1.msra.mxu0 0.0
    %3264 = vmatprep.subr.mxu0 0.0
    %3265 = vmatpush1.msra.mxu0 0.0
    %3266 = vmatprep.subr.mxu0 0.0
    %3267 = vmatpush1.msra.mxu0 0.0
    %3268 = vmatprep.mubr.f32.mxu0 0.0
    %3269 = vmatmul.mubr.f32.gmra.mrb[0].mxu0 %v3190
    %v3270 = vpop.f32.mrb[0].mxu0
    %v3271 = vadd.f32 0.0, %v3270
    %v3272 = vpop.f32.mrb[0].mxu0
    %v3273 = vadd.f32 0.0, %v3272
    %3274 = vdwg.mxu0
    %3275 = vmatprep.subr.mxu0 %v3198
    %3276 = vmatpush1.msra.mxu0 %v3196
    %3277 = vmatprep.subr.mxu0 0.0
    %3278 = vmatpush1.msra.mxu0 0.0
    %3279 = vmatprep.subr.mxu0 0.0
    %3280 = vmatpush1.msra.mxu0 0.0
    %3281 = vmatprep.subr.mxu0 0.0
    %3282 = vmatpush1.msra.mxu0 0.0
    %3283 = vmatprep.subr.mxu0 0.0
    %3284 = vmatpush1.msra.mxu0 0.0
    %3285 = vmatprep.subr.mxu0 0.0
    %3286 = vmatpush1.msra.mxu0 0.0
    %3287 = vmatprep.subr.mxu0 0.0
    %3288 = vmatpush1.msra.mxu0 0.0
    %3289 = vmatprep.subr.mxu0 0.0
    %3290 = vmatpush1.msra.mxu0 0.0
    %3291 = vmatprep.subr.mxu0 0.0
    %3292 = vmatpush1.msra.mxu0 0.0
    %3293 = vmatprep.subr.mxu0 0.0
    %3294 = vmatpush1.msra.mxu0 0.0
    %3295 = vmatprep.subr.mxu0 0.0
    %3296 = vmatpush1.msra.mxu0 0.0
    %3297 = vmatprep.subr.mxu0 0.0
    %3298 = vmatpush1.msra.mxu0 0.0
    %3299 = vmatprep.subr.mxu0 0.0
    %3300 = vmatpush1.msra.mxu0 0.0
    %3301 = vmatprep.subr.mxu0 0.0
    %3302 = vmatpush1.msra.mxu0 0.0
    %3303 = vmatprep.subr.mxu0 0.0
    %3304 = vmatpush1.msra.mxu0 0.0
    %3305 = vmatprep.subr.mxu0 0.0
    %3306 = vmatpush1.msra.mxu0 0.0
    %3307 = vmatprep.subr.mxu0 0.0
    %3308 = vmatpush1.msra.mxu0 0.0
    %3309 = vmatprep.subr.mxu0 0.0
    %3310 = vmatpush1.msra.mxu0 0.0
    %3311 = vmatprep.subr.mxu0 0.0
    %3312 = vmatpush1.msra.mxu0 0.0
    %3313 = vmatprep.subr.mxu0 0.0
    %3314 = vmatpush1.msra.mxu0 0.0
    %3315 = vmatprep.subr.mxu0 0.0
    %3316 = vmatpush1.msra.mxu0 0.0
    %3317 = vmatprep.subr.mxu0 0.0
    %3318 = vmatpush1.msra.mxu0 0.0
    %3319 = vmatprep.subr.mxu0 0.0
    %3320 = vmatpush1.msra.mxu0 0.0
    %3321 = vmatprep.subr.mxu0 0.0
    %3322 = vmatpush1.msra.mxu0 0.0
    %3323 = vmatprep.subr.mxu0 0.0
    %3324 = vmatpush1.msra.mxu0 0.0
    %3325 = vmatprep.subr.mxu0 0.0
    %3326 = vmatpush1.msra.mxu0 0.0
    %3327 = vmatprep.subr.mxu0 0.0
    %3328 = vmatpush1.msra.mxu0 0.0
    %3329 = vmatprep.subr.mxu0 0.0
    %3330 = vmatpush1.msra.mxu0 0.0
    %3331 = vmatprep.subr.mxu0 0.0
    %3332 = vmatpush1.msra.mxu0 0.0
    %3333 = vmatprep.subr.mxu0 0.0
    %3334 = vmatpush1.msra.mxu0 0.0
    %3335 = vmatprep.subr.mxu0 0.0
    %3336 = vmatpush1.msra.mxu0 0.0
    %3337 = vmatprep.subr.mxu0 0.0
    %3338 = vmatpush1.msra.mxu0 0.0
    %3339 = vmatprep.mubr.f32.mxu0 0.0
    %3340 = vmatmul.mubr.f32.gmra.mrb[0].mxu0 %v3190
    %v3341 = vpop.f32.mrb[0].mxu0
    %v3342 = vadd.f32 0.0, %v3341
    %v3343 = vpop.f32.mrb[0].mxu0
    %v3344 = vadd.f32 0.0, %v3343
    %3345 = vdwg.mxu0
    %3346 = vmatprep.subr.mxu0 %v3202
    %3347 = vmatpush1.msra.mxu0 %v3200
    %3348 = vmatprep.subr.mxu0 0.0
    %3349 = vmatpush1.msra.mxu0 0.0
    %3350 = vmatprep.subr.mxu0 0.0
    %3351 = vmatpush1.msra.mxu0 0.0
    %3352 = vmatprep.subr.mxu0 0.0
    %3353 = vmatpush1.msra.mxu0 0.0
    %3354 = vmatprep.subr.mxu0 0.0
    %3355 = vmatpush1.msra.mxu0 0.0
    %3356 = vmatprep.subr.mxu0 0.0
    %3357 = vmatpush1.msra.mxu0 0.0
    %3358 = vmatprep.subr.mxu0 0.0
    %3359 = vmatpush1.msra.mxu0 0.0
    %3360 = vmatprep.subr.mxu0 0.0
    %3361 = vmatpush1.msra.mxu0 0.0
    %3362 = vmatprep.subr.mxu0 0.0
    %3363 = vmatpush1.msra.mxu0 0.0
    %3364 = vmatprep.subr.mxu0 0.0
    %3365 = vmatpush1.msra.mxu0 0.0
    %3366 = vmatprep.subr.mxu0 0.0
    %3367 = vmatpush1.msra.mxu0 0.0
    %3368 = vmatprep.subr.mxu0 0.0
    %3369 = vmatpush1.msra.mxu0 0.0
    %3370 = vmatprep.subr.mxu0 0.0
    %3371 = vmatpush1.msra.mxu0 0.0
    %3372 = vmatprep.subr.mxu0 0.0
    %3373 = vmatpush1.msra.mxu0 0.0
    %3374 = vmatprep.subr.mxu0 0.0
    %3375 = vmatpush1.msra.mxu0 0.0
    %3376 = vmatprep.subr.mxu0 0.0
    %3377 = vmatpush1.msra.mxu0 0.0
    %3378 = vmatprep.subr.mxu0 0.0
    %3379 = vmatpush1.msra.mxu0 0.0
    %3380 = vmatprep.subr.mxu0 0.0
    %3381 = vmatpush1.msra.mxu0 0.0
    %3382 = vmatprep.subr.mxu0 0.0
    %3383 = vmatpush1.msra.mxu0 0.0
    %3384 = vmatprep.subr.mxu0 0.0
    %3385 = vmatpush1.msra.mxu0 0.0
    %3386 = vmatprep.subr.mxu0 0.0
    %3387 = vmatpush1.msra.mxu0 0.0
    %3388 = vmatprep.subr.mxu0 0.0
    %3389 = vmatpush1.msra.mxu0 0.0
    %3390 = vmatprep.subr.mxu0 0.0
    %3391 = vmatpush1.msra.mxu0 0.0
    %3392 = vmatprep.subr.mxu0 0.0
    %3393 = vmatpush1.msra.mxu0 0.0
    %3394 = vmatprep.subr.mxu0 0.0
    %3395 = vmatpush1.msra.mxu0 0.0
    %3396 = vmatprep.subr.mxu0 0.0
    %3397 = vmatpush1.msra.mxu0 0.0
    %3398 = vmatprep.subr.mxu0 0.0
    %3399 = vmatpush1.msra.mxu0 0.0
    %3400 = vmatprep.subr.mxu0 0.0
    %3401 = vmatpush1.msra.mxu0 0.0
    %3402 = vmatprep.subr.mxu0 0.0
    %3403 = vmatpush1.msra.mxu0 0.0
    %3404 = vmatprep.subr.mxu0 0.0
    %3405 = vmatpush1.msra.mxu0 0.0
    %3406 = vmatprep.subr.mxu0 0.0
    %3407 = vmatpush1.msra.mxu0 0.0
    %3408 = vmatprep.subr.mxu0 0.0
    %3409 = vmatpush1.msra.mxu0 0.0
    %3410 = vmatprep.mubr.f32.mxu0 0.0
    %3411 = vmatmul.mubr.f32.gmra.mrb[0].mxu0 %v3190
    %v3412 = vpop.f32.mrb[0].mxu0
    %v3413 = vadd.f32 0.0, %v3412
    %v3414 = vpop.f32.mrb[0].mxu0
    %v3415 = vadd.f32 0.0, %v3414
    %3416 = vdwg.mxu0
    %v3417 = vadd.f32 %v3164, %v3271
    %v3418 = vadd.f32 %v3165, %v3273
    %v3419 = vadd.f32 %v3166, %v3342
    %v3420 = vadd.f32 %v3167, %v3344
    %v3421 = vadd.f32 %v3168, %v3413
    %v3422 = vadd.f32 %v3169, %v3415
    %s3423 = scalar_lea.vmem %s6, 16
    %v3424 = vld [vmem:[%s3423] sm:$0xf]
    %3425 = vrot.lane.b32.xlu0 %v2429, 109
    %v3426 = vpop.permute.xlu0 %3425
    %3427 = vrot.lane.b32.xlu0 %v2430, 109
    %v3428 = vpop.permute.xlu0 %3427
    %3429 = vrot.lane.b32.xlu0 %v2431, 109
    %v3430 = vpop.permute.xlu0 %3429
    %3431 = vrot.lane.b32.xlu0 %v2432, 109
    %v3432 = vpop.permute.xlu0 %3431
    %3433 = vrot.lane.b32.xlu0 %v2433, 109
    %v3434 = vpop.permute.xlu0 %3433
    %3435 = vrot.lane.b32.xlu0 %v2434, 109
    %v3436 = vpop.permute.xlu0 %3435
    %v3437 = vsel %vm1047, %v3426, %v3428
    %v3438 = vsel %vm1047, %v3428, %v3430
    %v3439 = vsel %vm1047, %v3430, %v3432
    %v3440 = vsel %vm1047, %v3432, %v3434
    %v3441 = vsel %vm1047, %v3434, %v3436
    %v3443 = vsel %vm67, %v3424, 0
    %v3445 = vsel %vm71, %v3437, 0
    %v3447 = vsel %vm71, %v3438, 0
    %v3449 = vsel %vm71, %v3439, 0
    %v3451 = vsel %vm71, %v3440, 0
    %v3453 = vsel %vm71, %v3441, 0
    %v3455 = vsel %vm71, %v3436, 0
    %3457 = vmatprep.subr.mxu0 %v3447
    %3458 = vmatpush1.msra.mxu0 %v3445
    %3459 = vmatprep.subr.mxu0 0.0
    %3460 = vmatpush1.msra.mxu0 0.0
    %3461 = vmatprep.subr.mxu0 0.0
    %3462 = vmatpush1.msra.mxu0 0.0
    %3463 = vmatprep.subr.mxu0 0.0
    %3464 = vmatpush1.msra.mxu0 0.0
    %3465 = vmatprep.subr.mxu0 0.0
    %3466 = vmatpush1.msra.mxu0 0.0
    %3467 = vmatprep.subr.mxu0 0.0
    %3468 = vmatpush1.msra.mxu0 0.0
    %3469 = vmatprep.subr.mxu0 0.0
    %3470 = vmatpush1.msra.mxu0 0.0
    %3471 = vmatprep.subr.mxu0 0.0
    %3472 = vmatpush1.msra.mxu0 0.0
    %3473 = vmatprep.subr.mxu0 0.0
    %3474 = vmatpush1.msra.mxu0 0.0
    %3475 = vmatprep.subr.mxu0 0.0
    %3476 = vmatpush1.msra.mxu0 0.0
    %3477 = vmatprep.subr.mxu0 0.0
    %3478 = vmatpush1.msra.mxu0 0.0
    %3479 = vmatprep.subr.mxu0 0.0
    %3480 = vmatpush1.msra.mxu0 0.0
    %3481 = vmatprep.subr.mxu0 0.0
    %3482 = vmatpush1.msra.mxu0 0.0
    %3483 = vmatprep.subr.mxu0 0.0
    %3484 = vmatpush1.msra.mxu0 0.0
    %3485 = vmatprep.subr.mxu0 0.0
    %3486 = vmatpush1.msra.mxu0 0.0
    %3487 = vmatprep.subr.mxu0 0.0
    %3488 = vmatpush1.msra.mxu0 0.0
    %3489 = vmatprep.subr.mxu0 0.0
    %3490 = vmatpush1.msra.mxu0 0.0
    %3491 = vmatprep.subr.mxu0 0.0
    %3492 = vmatpush1.msra.mxu0 0.0
    %3493 = vmatprep.subr.mxu0 0.0
    %3494 = vmatpush1.msra.mxu0 0.0
    %3495 = vmatprep.subr.mxu0 0.0
    %3496 = vmatpush1.msra.mxu0 0.0
    %3497 = vmatprep.subr.mxu0 0.0
    %3498 = vmatpush1.msra.mxu0 0.0
    %3499 = vmatprep.subr.mxu0 0.0
    %3500 = vmatpush1.msra.mxu0 0.0
    %3501 = vmatprep.subr.mxu0 0.0
    %3502 = vmatpush1.msra.mxu0 0.0
    %3503 = vmatprep.subr.mxu0 0.0
    %3504 = vmatpush1.msra.mxu0 0.0
    %3505 = vmatprep.subr.mxu0 0.0
    %3506 = vmatpush1.msra.mxu0 0.0
    %3507 = vmatprep.subr.mxu0 0.0
    %3508 = vmatpush1.msra.mxu0 0.0
    %3509 = vmatprep.subr.mxu0 0.0
    %3510 = vmatpush1.msra.mxu0 0.0
    %3511 = vmatprep.subr.mxu0 0.0
    %3512 = vmatpush1.msra.mxu0 0.0
    %3513 = vmatprep.subr.mxu0 0.0
    %3514 = vmatpush1.msra.mxu0 0.0
    %3515 = vmatprep.subr.mxu0 0.0
    %3516 = vmatpush1.msra.mxu0 0.0
    %3517 = vmatprep.subr.mxu0 0.0
    %3518 = vmatpush1.msra.mxu0 0.0
    %3519 = vmatprep.subr.mxu0 0.0
    %3520 = vmatpush1.msra.mxu0 0.0
    %3521 = vmatprep.mubr.f32.mxu0 0.0
    %3522 = vmatmul.mubr.f32.gmra.mrb[0].mxu0 %v3443
    %v3523 = vpop.f32.mrb[0].mxu0
    %v3524 = vadd.f32 0.0, %v3523
    %v3525 = vpop.f32.mrb[0].mxu0
    %v3526 = vadd.f32 0.0, %v3525
    %3527 = vdwg.mxu0
    %3528 = vmatprep.subr.mxu0 %v3451
    %3529 = vmatpush1.msra.mxu0 %v3449
    %3530 = vmatprep.subr.mxu0 0.0
    %3531 = vmatpush1.msra.mxu0 0.0
    %3532 = vmatprep.subr.mxu0 0.0
    %3533 = vmatpush1.msra.mxu0 0.0
    %3534 = vmatprep.subr.mxu0 0.0
    %3535 = vmatpush1.msra.mxu0 0.0
    %3536 = vmatprep.subr.mxu0 0.0
    %3537 = vmatpush1.msra.mxu0 0.0
    %3538 = vmatprep.subr.mxu0 0.0
    %3539 = vmatpush1.msra.mxu0 0.0
    %3540 = vmatprep.subr.mxu0 0.0
    %3541 = vmatpush1.msra.mxu0 0.0
    %3542 = vmatprep.subr.mxu0 0.0
    %3543 = vmatpush1.msra.mxu0 0.0
    %3544 = vmatprep.subr.mxu0 0.0
    %3545 = vmatpush1.msra.mxu0 0.0
    %3546 = vmatprep.subr.mxu0 0.0
    %3547 = vmatpush1.msra.mxu0 0.0
    %3548 = vmatprep.subr.mxu0 0.0
    %3549 = vmatpush1.msra.mxu0 0.0
    %3550 = vmatprep.subr.mxu0 0.0
    %3551 = vmatpush1.msra.mxu0 0.0
    %3552 = vmatprep.subr.mxu0 0.0
    %3553 = vmatpush1.msra.mxu0 0.0
    %3554 = vmatprep.subr.mxu0 0.0
    %3555 = vmatpush1.msra.mxu0 0.0
    %3556 = vmatprep.subr.mxu0 0.0
    %3557 = vmatpush1.msra.mxu0 0.0
    %3558 = vmatprep.subr.mxu0 0.0
    %3559 = vmatpush1.msra.mxu0 0.0
    %3560 = vmatprep.subr.mxu0 0.0
    %3561 = vmatpush1.msra.mxu0 0.0
    %3562 = vmatprep.subr.mxu0 0.0
    %3563 = vmatpush1.msra.mxu0 0.0
    %3564 = vmatprep.subr.mxu0 0.0
    %3565 = vmatpush1.msra.mxu0 0.0
    %3566 = vmatprep.subr.mxu0 0.0
    %3567 = vmatpush1.msra.mxu0 0.0
    %3568 = vmatprep.subr.mxu0 0.0
    %3569 = vmatpush1.msra.mxu0 0.0
    %3570 = vmatprep.subr.mxu0 0.0
    %3571 = vmatpush1.msra.mxu0 0.0
    %3572 = vmatprep.subr.mxu0 0.0
    %3573 = vmatpush1.msra.mxu0 0.0
    %3574 = vmatprep.subr.mxu0 0.0
    %3575 = vmatpush1.msra.mxu0 0.0
    %3576 = vmatprep.subr.mxu0 0.0
    %3577 = vmatpush1.msra.mxu0 0.0
    %3578 = vmatprep.subr.mxu0 0.0
    %3579 = vmatpush1.msra.mxu0 0.0
    %3580 = vmatprep.subr.mxu0 0.0
    %3581 = vmatpush1.msra.mxu0 0.0
    %3582 = vmatprep.subr.mxu0 0.0
    %3583 = vmatpush1.msra.mxu0 0.0
    %3584 = vmatprep.subr.mxu0 0.0
    %3585 = vmatpush1.msra.mxu0 0.0
    %3586 = vmatprep.subr.mxu0 0.0
    %3587 = vmatpush1.msra.mxu0 0.0
    %3588 = vmatprep.subr.mxu0 0.0
    %3589 = vmatpush1.msra.mxu0 0.0
    %3590 = vmatprep.subr.mxu0 0.0
    %3591 = vmatpush1.msra.mxu0 0.0
    %3592 = vmatprep.mubr.f32.mxu0 0.0
    %3593 = vmatmul.mubr.f32.gmra.mrb[0].mxu0 %v3443
    %v3594 = vpop.f32.mrb[0].mxu0
    %v3595 = vadd.f32 0.0, %v3594
    %v3596 = vpop.f32.mrb[0].mxu0
    %v3597 = vadd.f32 0.0, %v3596
    %3598 = vdwg.mxu0
    %3599 = vmatprep.subr.mxu0 %v3455
    %3600 = vmatpush1.msra.mxu0 %v3453
    %3601 = vmatprep.subr.mxu0 0.0
    %3602 = vmatpush1.msra.mxu0 0.0
    %3603 = vmatprep.subr.mxu0 0.0
    %3604 = vmatpush1.msra.mxu0 0.0
    %3605 = vmatprep.subr.mxu0 0.0
    %3606 = vmatpush1.msra.mxu0 0.0
    %3607 = vmatprep.subr.mxu0 0.0
    %3608 = vmatpush1.msra.mxu0 0.0
    %3609 = vmatprep.subr.mxu0 0.0
    %3610 = vmatpush1.msra.mxu0 0.0
    %3611 = vmatprep.subr.mxu0 0.0
    %3612 = vmatpush1.msra.mxu0 0.0
    %3613 = vmatprep.subr.mxu0 0.0
    %3614 = vmatpush1.msra.mxu0 0.0
    %3615 = vmatprep.subr.mxu0 0.0
    %3616 = vmatpush1.msra.mxu0 0.0
    %3617 = vmatprep.subr.mxu0 0.0
    %3618 = vmatpush1.msra.mxu0 0.0
    %3619 = vmatprep.subr.mxu0 0.0
    %3620 = vmatpush1.msra.mxu0 0.0
    %3621 = vmatprep.subr.mxu0 0.0
    %3622 = vmatpush1.msra.mxu0 0.0
    %3623 = vmatprep.subr.mxu0 0.0
    %3624 = vmatpush1.msra.mxu0 0.0
    %3625 = vmatprep.subr.mxu0 0.0
    %3626 = vmatpush1.msra.mxu0 0.0
    %3627 = vmatprep.subr.mxu0 0.0
    %3628 = vmatpush1.msra.mxu0 0.0
    %3629 = vmatprep.subr.mxu0 0.0
    %3630 = vmatpush1.msra.mxu0 0.0
    %3631 = vmatprep.subr.mxu0 0.0
    %3632 = vmatpush1.msra.mxu0 0.0
    %3633 = vmatprep.subr.mxu0 0.0
    %3634 = vmatpush1.msra.mxu0 0.0
    %3635 = vmatprep.subr.mxu0 0.0
    %3636 = vmatpush1.msra.mxu0 0.0
    %3637 = vmatprep.subr.mxu0 0.0
    %3638 = vmatpush1.msra.mxu0 0.0
    %3639 = vmatprep.subr.mxu0 0.0
    %3640 = vmatpush1.msra.mxu0 0.0
    %3641 = vmatprep.subr.mxu0 0.0
    %3642 = vmatpush1.msra.mxu0 0.0
    %3643 = vmatprep.subr.mxu0 0.0
    %3644 = vmatpush1.msra.mxu0 0.0
    %3645 = vmatprep.subr.mxu0 0.0
    %3646 = vmatpush1.msra.mxu0 0.0
    %3647 = vmatprep.subr.mxu0 0.0
    %3648 = vmatpush1.msra.mxu0 0.0
    %3649 = vmatprep.subr.mxu0 0.0
    %3650 = vmatpush1.msra.mxu0 0.0
    %3651 = vmatprep.subr.mxu0 0.0
    %3652 = vmatpush1.msra.mxu0 0.0
    %3653 = vmatprep.subr.mxu0 0.0
    %3654 = vmatpush1.msra.mxu0 0.0
    %3655 = vmatprep.subr.mxu0 0.0
    %3656 = vmatpush1.msra.mxu0 0.0
    %3657 = vmatprep.subr.mxu0 0.0
    %3658 = vmatpush1.msra.mxu0 0.0
    %3659 = vmatprep.subr.mxu0 0.0
    %3660 = vmatpush1.msra.mxu0 0.0
    %3661 = vmatprep.subr.mxu0 0.0
    %3662 = vmatpush1.msra.mxu0 0.0
    %3663 = vmatprep.mubr.f32.mxu0 0.0
    %3664 = vmatmul.mubr.f32.gmra.mrb[0].mxu0 %v3443
    %v3665 = vpop.f32.mrb[0].mxu0
    %v3666 = vadd.f32 0.0, %v3665
    %v3667 = vpop.f32.mrb[0].mxu0
    %v3668 = vadd.f32 0.0, %v3667
    %3669 = vdwg.mxu0
    %v3670 = vadd.f32 %v3417, %v3524
    %v3671 = vadd.f32 %v3418, %v3526
    %v3672 = vadd.f32 %v3419, %v3595
    %v3673 = vadd.f32 %v3420, %v3597
    %v3674 = vadd.f32 %v3421, %v3666
    %v3675 = vadd.f32 %v3422, %v3668
    %s3676 = scalar_lea.vmem %s6, 20
    %v3677 = vld [vmem:[%s3676] sm:$0xf]
    %3678 = vrot.lane.b32.xlu0 %v2429, 108
    %v3679 = vpop.permute.xlu0 %3678
    %3680 = vrot.lane.b32.xlu0 %v2430, 108
    %v3681 = vpop.permute.xlu0 %3680
    %3682 = vrot.lane.b32.xlu0 %v2431, 108
    %v3683 = vpop.permute.xlu0 %3682
    %3684 = vrot.lane.b32.xlu0 %v2432, 108
    %v3685 = vpop.permute.xlu0 %3684
    %3686 = vrot.lane.b32.xlu0 %v2433, 108
    %v3687 = vpop.permute.xlu0 %3686
    %3688 = vrot.lane.b32.xlu0 %v2434, 108
    %v3689 = vpop.permute.xlu0 %3688
    %v3690 = vsel %vm1301, %v3679, %v3681
    %v3691 = vsel %vm1301, %v3681, %v3683
    %v3692 = vsel %vm1301, %v3683, %v3685
    %v3693 = vsel %vm1301, %v3685, %v3687
    %v3694 = vsel %vm1301, %v3687, %v3689
    %v3696 = vsel %vm67, %v3677, 0
    %v3698 = vsel %vm71, %v3690, 0
    %v3700 = vsel %vm71, %v3691, 0
    %v3702 = vsel %vm71, %v3692, 0
    %v3704 = vsel %vm71, %v3693, 0
    %v3706 = vsel %vm71, %v3694, 0
    %v3708 = vsel %vm71, %v3689, 0
    %3710 = vmatprep.subr.mxu0 %v3700
    %3711 = vmatpush1.msra.mxu0 %v3698
    %3712 = vmatprep.subr.mxu0 0.0
    %3713 = vmatpush1.msra.mxu0 0.0
    %3714 = vmatprep.subr.mxu0 0.0
    %3715 = vmatpush1.msra.mxu0 0.0
    %3716 = vmatprep.subr.mxu0 0.0
    %3717 = vmatpush1.msra.mxu0 0.0
    %3718 = vmatprep.subr.mxu0 0.0
    %3719 = vmatpush1.msra.mxu0 0.0
    %3720 = vmatprep.subr.mxu0 0.0
    %3721 = vmatpush1.msra.mxu0 0.0
    %3722 = vmatprep.subr.mxu0 0.0
    %3723 = vmatpush1.msra.mxu0 0.0
    %3724 = vmatprep.subr.mxu0 0.0
    %3725 = vmatpush1.msra.mxu0 0.0
    %3726 = vmatprep.subr.mxu0 0.0
    %3727 = vmatpush1.msra.mxu0 0.0
    %3728 = vmatprep.subr.mxu0 0.0
    %3729 = vmatpush1.msra.mxu0 0.0
    %3730 = vmatprep.subr.mxu0 0.0
    %3731 = vmatpush1.msra.mxu0 0.0
    %3732 = vmatprep.subr.mxu0 0.0
    %3733 = vmatpush1.msra.mxu0 0.0
    %3734 = vmatprep.subr.mxu0 0.0
    %3735 = vmatpush1.msra.mxu0 0.0
    %3736 = vmatprep.subr.mxu0 0.0
    %3737 = vmatpush1.msra.mxu0 0.0
    %3738 = vmatprep.subr.mxu0 0.0
    %3739 = vmatpush1.msra.mxu0 0.0
    %3740 = vmatprep.subr.mxu0 0.0
    %3741 = vmatpush1.msra.mxu0 0.0
    %3742 = vmatprep.subr.mxu0 0.0
    %3743 = vmatpush1.msra.mxu0 0.0
    %3744 = vmatprep.subr.mxu0 0.0
    %3745 = vmatpush1.msra.mxu0 0.0
    %3746 = vmatprep.subr.mxu0 0.0
    %3747 = vmatpush1.msra.mxu0 0.0
    %3748 = vmatprep.subr.mxu0 0.0
    %3749 = vmatpush1.msra.mxu0 0.0
    %3750 = vmatprep.subr.mxu0 0.0
    %3751 = vmatpush1.msra.mxu0 0.0
    %3752 = vmatprep.subr.mxu0 0.0
    %3753 = vmatpush1.msra.mxu0 0.0
    %3754 = vmatprep.subr.mxu0 0.0
    %3755 = vmatpush1.msra.mxu0 0.0
    %3756 = vmatprep.subr.mxu0 0.0
    %3757 = vmatpush1.msra.mxu0 0.0
    %3758 = vmatprep.subr.mxu0 0.0
    %3759 = vmatpush1.msra.mxu0 0.0
    %3760 = vmatprep.subr.mxu0 0.0
    %3761 = vmatpush1.msra.mxu0 0.0
    %3762 = vmatprep.subr.mxu0 0.0
    %3763 = vmatpush1.msra.mxu0 0.0
    %3764 = vmatprep.subr.mxu0 0.0
    %3765 = vmatpush1.msra.mxu0 0.0
    %3766 = vmatprep.subr.mxu0 0.0
    %3767 = vmatpush1.msra.mxu0 0.0
    %3768 = vmatprep.subr.mxu0 0.0
    %3769 = vmatpush1.msra.mxu0 0.0
    %3770 = vmatprep.subr.mxu0 0.0
    %3771 = vmatpush1.msra.mxu0 0.0
    %3772 = vmatprep.subr.mxu0 0.0
    %3773 = vmatpush1.msra.mxu0 0.0
    %3774 = vmatprep.mubr.f32.mxu0 0.0
    %3775 = vmatmul.mubr.f32.gmra.mrb[0].mxu0 %v3696
    %v3776 = vpop.f32.mrb[0].mxu0
    %v3777 = vadd.f32 0.0, %v3776
    %v3778 = vpop.f32.mrb[0].mxu0
    %v3779 = vadd.f32 0.0, %v3778
    %3780 = vdwg.mxu0
    %3781 = vmatprep.subr.mxu0 %v3704
    %3782 = vmatpush1.msra.mxu0 %v3702
    %3783 = vmatprep.subr.mxu0 0.0
    %3784 = vmatpush1.msra.mxu0 0.0
    %3785 = vmatprep.subr.mxu0 0.0
    %3786 = vmatpush1.msra.mxu0 0.0
    %3787 = vmatprep.subr.mxu0 0.0
    %3788 = vmatpush1.msra.mxu0 0.0
    %3789 = vmatprep.subr.mxu0 0.0
    %3790 = vmatpush1.msra.mxu0 0.0
    %3791 = vmatprep.subr.mxu0 0.0
    %3792 = vmatpush1.msra.mxu0 0.0
    %3793 = vmatprep.subr.mxu0 0.0
    %3794 = vmatpush1.msra.mxu0 0.0
    %3795 = vmatprep.subr.mxu0 0.0
    %3796 = vmatpush1.msra.mxu0 0.0
    %3797 = vmatprep.subr.mxu0 0.0
    %3798 = vmatpush1.msra.mxu0 0.0
    %3799 = vmatprep.subr.mxu0 0.0
    %3800 = vmatpush1.msra.mxu0 0.0
    %3801 = vmatprep.subr.mxu0 0.0
    %3802 = vmatpush1.msra.mxu0 0.0
    %3803 = vmatprep.subr.mxu0 0.0
    %3804 = vmatpush1.msra.mxu0 0.0
    %3805 = vmatprep.subr.mxu0 0.0
    %3806 = vmatpush1.msra.mxu0 0.0
    %3807 = vmatprep.subr.mxu0 0.0
    %3808 = vmatpush1.msra.mxu0 0.0
    %3809 = vmatprep.subr.mxu0 0.0
    %3810 = vmatpush1.msra.mxu0 0.0
    %3811 = vmatprep.subr.mxu0 0.0
    %3812 = vmatpush1.msra.mxu0 0.0
    %3813 = vmatprep.subr.mxu0 0.0
    %3814 = vmatpush1.msra.mxu0 0.0
    %3815 = vmatprep.subr.mxu0 0.0
    %3816 = vmatpush1.msra.mxu0 0.0
    %3817 = vmatprep.subr.mxu0 0.0
    %3818 = vmatpush1.msra.mxu0 0.0
    %3819 = vmatprep.subr.mxu0 0.0
    %3820 = vmatpush1.msra.mxu0 0.0
    %3821 = vmatprep.subr.mxu0 0.0
    %3822 = vmatpush1.msra.mxu0 0.0
    %3823 = vmatprep.subr.mxu0 0.0
    %3824 = vmatpush1.msra.mxu0 0.0
    %3825 = vmatprep.subr.mxu0 0.0
    %3826 = vmatpush1.msra.mxu0 0.0
    %3827 = vmatprep.subr.mxu0 0.0
    %3828 = vmatpush1.msra.mxu0 0.0
    %3829 = vmatprep.subr.mxu0 0.0
    %3830 = vmatpush1.msra.mxu0 0.0
    %3831 = vmatprep.subr.mxu0 0.0
    %3832 = vmatpush1.msra.mxu0 0.0
    %3833 = vmatprep.subr.mxu0 0.0
    %3834 = vmatpush1.msra.mxu0 0.0
    %3835 = vmatprep.subr.mxu0 0.0
    %3836 = vmatpush1.msra.mxu0 0.0
    %3837 = vmatprep.subr.mxu0 0.0
    %3838 = vmatpush1.msra.mxu0 0.0
    %3839 = vmatprep.subr.mxu0 0.0
    %3840 = vmatpush1.msra.mxu0 0.0
    %3841 = vmatprep.subr.mxu0 0.0
    %3842 = vmatpush1.msra.mxu0 0.0
    %3843 = vmatprep.subr.mxu0 0.0
    %3844 = vmatpush1.msra.mxu0 0.0
    %3845 = vmatprep.mubr.f32.mxu0 0.0
    %3846 = vmatmul.mubr.f32.gmra.mrb[0].mxu0 %v3696
    %v3847 = vpop.f32.mrb[0].mxu0
    %v3848 = vadd.f32 0.0, %v3847
    %v3849 = vpop.f32.mrb[0].mxu0
    %v3850 = vadd.f32 0.0, %v3849
    %3851 = vdwg.mxu0
    %3852 = vmatprep.subr.mxu0 %v3708
    %3853 = vmatpush1.msra.mxu0 %v3706
    %3854 = vmatprep.subr.mxu0 0.0
    %3855 = vmatpush1.msra.mxu0 0.0
    %3856 = vmatprep.subr.mxu0 0.0
    %3857 = vmatpush1.msra.mxu0 0.0
    %3858 = vmatprep.subr.mxu0 0.0
    %3859 = vmatpush1.msra.mxu0 0.0
    %3860 = vmatprep.subr.mxu0 0.0
    %3861 = vmatpush1.msra.mxu0 0.0
    %3862 = vmatprep.subr.mxu0 0.0
    %3863 = vmatpush1.msra.mxu0 0.0
    %3864 = vmatprep.subr.mxu0 0.0
    %3865 = vmatpush1.msra.mxu0 0.0
    %3866 = vmatprep.subr.mxu0 0.0
    %3867 = vmatpush1.msra.mxu0 0.0
    %3868 = vmatprep.subr.mxu0 0.0
    %3869 = vmatpush1.msra.mxu0 0.0
    %3870 = vmatprep.subr.mxu0 0.0
    %3871 = vmatpush1.msra.mxu0 0.0
    %3872 = vmatprep.subr.mxu0 0.0
    %3873 = vmatpush1.msra.mxu0 0.0
    %3874 = vmatprep.subr.mxu0 0.0
    %3875 = vmatpush1.msra.mxu0 0.0
    %3876 = vmatprep.subr.mxu0 0.0
    %3877 = vmatpush1.msra.mxu0 0.0
    %3878 = vmatprep.subr.mxu0 0.0
    %3879 = vmatpush1.msra.mxu0 0.0
    %3880 = vmatprep.subr.mxu0 0.0
    %3881 = vmatpush1.msra.mxu0 0.0
    %3882 = vmatprep.subr.mxu0 0.0
    %3883 = vmatpush1.msra.mxu0 0.0
    %3884 = vmatprep.subr.mxu0 0.0
    %3885 = vmatpush1.msra.mxu0 0.0
    %3886 = vmatprep.subr.mxu0 0.0
    %3887 = vmatpush1.msra.mxu0 0.0
    %3888 = vmatprep.subr.mxu0 0.0
    %3889 = vmatpush1.msra.mxu0 0.0
    %3890 = vmatprep.subr.mxu0 0.0
    %3891 = vmatpush1.msra.mxu0 0.0
    %3892 = vmatprep.subr.mxu0 0.0
    %3893 = vmatpush1.msra.mxu0 0.0
    %3894 = vmatprep.subr.mxu0 0.0
    %3895 = vmatpush1.msra.mxu0 0.0
    %3896 = vmatprep.subr.mxu0 0.0
    %3897 = vmatpush1.msra.mxu0 0.0
    %3898 = vmatprep.subr.mxu0 0.0
    %3899 = vmatpush1.msra.mxu0 0.0
    %3900 = vmatprep.subr.mxu0 0.0
    %3901 = vmatpush1.msra.mxu0 0.0
    %3902 = vmatprep.subr.mxu0 0.0
    %3903 = vmatpush1.msra.mxu0 0.0
    %3904 = vmatprep.subr.mxu0 0.0
    %3905 = vmatpush1.msra.mxu0 0.0
    %3906 = vmatprep.subr.mxu0 0.0
    %3907 = vmatpush1.msra.mxu0 0.0
    %3908 = vmatprep.subr.mxu0 0.0
    %3909 = vmatpush1.msra.mxu0 0.0
    %3910 = vmatprep.subr.mxu0 0.0
    %3911 = vmatpush1.msra.mxu0 0.0
    %3912 = vmatprep.subr.mxu0 0.0
    %3913 = vmatpush1.msra.mxu0 0.0
    %3914 = vmatprep.subr.mxu0 0.0
    %3915 = vmatpush1.msra.mxu0 0.0
    %3916 = vmatprep.mubr.f32.mxu0 0.0
    %3917 = vmatmul.mubr.f32.gmra.mrb[0].mxu0 %v3696
    %v3918 = vpop.f32.mrb[0].mxu0
    %v3919 = vadd.f32 0.0, %v3918
    %v3920 = vpop.f32.mrb[0].mxu0
    %v3921 = vadd.f32 0.0, %v3920
    %3922 = vdwg.mxu0
    %v3923 = vadd.f32 %v3670, %v3777
    %v3924 = vadd.f32 %v3671, %v3779
    %v3925 = vadd.f32 %v3672, %v3848
    %v3926 = vadd.f32 %v3673, %v3850
    %v3927 = vadd.f32 %v3674, %v3919
    %v3928 = vadd.f32 %v3675, %v3921
    %s3929 = scalar_lea.vmem %s6, 24
    %v3930 = vld [vmem:[%s3929] sm:$0xf]
    %3931 = vrot.lane.b32.xlu0 %v2429, 92
    %v3932 = vpop.permute.xlu0 %3931
    %3933 = vrot.lane.b32.xlu0 %v2430, 92
    %v3934 = vpop.permute.xlu0 %3933
    %3935 = vrot.lane.b32.xlu0 %v2431, 92
    %v3936 = vpop.permute.xlu0 %3935
    %3937 = vrot.lane.b32.xlu0 %v2432, 92
    %v3938 = vpop.permute.xlu0 %3937
    %3939 = vrot.lane.b32.xlu0 %v2433, 92
    %v3940 = vpop.permute.xlu0 %3939
    %3941 = vrot.lane.b32.xlu0 %v2434, 92
    %v3942 = vpop.permute.xlu0 %3941
    %v3943 = vsel %vm1555, %v3932, %v3934
    %v3944 = vsel %vm1555, %v3934, %v3936
    %v3945 = vsel %vm1555, %v3936, %v3938
    %v3946 = vsel %vm1555, %v3938, %v3940
    %v3947 = vsel %vm1555, %v3940, %v3942
    %v3949 = vsel %vm67, %v3930, 0
    %v3951 = vsel %vm71, %v3943, 0
    %v3953 = vsel %vm71, %v3944, 0
    %v3955 = vsel %vm71, %v3945, 0
    %v3957 = vsel %vm71, %v3946, 0
    %v3959 = vsel %vm71, %v3947, 0
    %v3961 = vsel %vm71, %v3942, 0
    %3963 = vmatprep.subr.mxu0 %v3953
    %3964 = vmatpush1.msra.mxu0 %v3951
    %3965 = vmatprep.subr.mxu0 0.0
    %3966 = vmatpush1.msra.mxu0 0.0
    %3967 = vmatprep.subr.mxu0 0.0
    %3968 = vmatpush1.msra.mxu0 0.0
    %3969 = vmatprep.subr.mxu0 0.0
    %3970 = vmatpush1.msra.mxu0 0.0
    %3971 = vmatprep.subr.mxu0 0.0
    %3972 = vmatpush1.msra.mxu0 0.0
    %3973 = vmatprep.subr.mxu0 0.0
    %3974 = vmatpush1.msra.mxu0 0.0
    %3975 = vmatprep.subr.mxu0 0.0
    %3976 = vmatpush1.msra.mxu0 0.0
    %3977 = vmatprep.subr.mxu0 0.0
    %3978 = vmatpush1.msra.mxu0 0.0
    %3979 = vmatprep.subr.mxu0 0.0
    %3980 = vmatpush1.msra.mxu0 0.0
    %3981 = vmatprep.subr.mxu0 0.0
    %3982 = vmatpush1.msra.mxu0 0.0
    %3983 = vmatprep.subr.mxu0 0.0
    %3984 = vmatpush1.msra.mxu0 0.0
    %3985 = vmatprep.subr.mxu0 0.0
    %3986 = vmatpush1.msra.mxu0 0.0
    %3987 = vmatprep.subr.mxu0 0.0
    %3988 = vmatpush1.msra.mxu0 0.0
    %3989 = vmatprep.subr.mxu0 0.0
    %3990 = vmatpush1.msra.mxu0 0.0
    %3991 = vmatprep.subr.mxu0 0.0
    %3992 = vmatpush1.msra.mxu0 0.0
    %3993 = vmatprep.subr.mxu0 0.0
    %3994 = vmatpush1.msra.mxu0 0.0
    %3995 = vmatprep.subr.mxu0 0.0
    %3996 = vmatpush1.msra.mxu0 0.0
    %3997 = vmatprep.subr.mxu0 0.0
    %3998 = vmatpush1.msra.mxu0 0.0
    %3999 = vmatprep.subr.mxu0 0.0
    %4000 = vmatpush1.msra.mxu0 0.0
    %4001 = vmatprep.subr.mxu0 0.0
    %4002 = vmatpush1.msra.mxu0 0.0
    %4003 = vmatprep.subr.mxu0 0.0
    %4004 = vmatpush1.msra.mxu0 0.0
    %4005 = vmatprep.subr.mxu0 0.0
    %4006 = vmatpush1.msra.mxu0 0.0
    %4007 = vmatprep.subr.mxu0 0.0
    %4008 = vmatpush1.msra.mxu0 0.0
    %4009 = vmatprep.subr.mxu0 0.0
    %4010 = vmatpush1.msra.mxu0 0.0
    %4011 = vmatprep.subr.mxu0 0.0
    %4012 = vmatpush1.msra.mxu0 0.0
    %4013 = vmatprep.subr.mxu0 0.0
    %4014 = vmatpush1.msra.mxu0 0.0
    %4015 = vmatprep.subr.mxu0 0.0
    %4016 = vmatpush1.msra.mxu0 0.0
    %4017 = vmatprep.subr.mxu0 0.0
    %4018 = vmatpush1.msra.mxu0 0.0
    %4019 = vmatprep.subr.mxu0 0.0
    %4020 = vmatpush1.msra.mxu0 0.0
    %4021 = vmatprep.subr.mxu0 0.0
    %4022 = vmatpush1.msra.mxu0 0.0
    %4023 = vmatprep.subr.mxu0 0.0
    %4024 = vmatpush1.msra.mxu0 0.0
    %4025 = vmatprep.subr.mxu0 0.0
    %4026 = vmatpush1.msra.mxu0 0.0
    %4027 = vmatprep.mubr.f32.mxu0 0.0
    %4028 = vmatmul.mubr.f32.gmra.mrb[0].mxu0 %v3949
    %v4029 = vpop.f32.mrb[0].mxu0
    %v4030 = vadd.f32 0.0, %v4029
    %v4031 = vpop.f32.mrb[0].mxu0
    %v4032 = vadd.f32 0.0, %v4031
    %4033 = vdwg.mxu0
    %4034 = vmatprep.subr.mxu0 %v3957
    %4035 = vmatpush1.msra.mxu0 %v3955
    %4036 = vmatprep.subr.mxu0 0.0
    %4037 = vmatpush1.msra.mxu0 0.0
    %4038 = vmatprep.subr.mxu0 0.0
    %4039 = vmatpush1.msra.mxu0 0.0
    %4040 = vmatprep.subr.mxu0 0.0
    %4041 = vmatpush1.msra.mxu0 0.0
    %4042 = vmatprep.subr.mxu0 0.0
    %4043 = vmatpush1.msra.mxu0 0.0
    %4044 = vmatprep.subr.mxu0 0.0
    %4045 = vmatpush1.msra.mxu0 0.0
    %4046 = vmatprep.subr.mxu0 0.0
    %4047 = vmatpush1.msra.mxu0 0.0
    %4048 = vmatprep.subr.mxu0 0.0
    %4049 = vmatpush1.msra.mxu0 0.0
    %4050 = vmatprep.subr.mxu0 0.0
    %4051 = vmatpush1.msra.mxu0 0.0
    %4052 = vmatprep.subr.mxu0 0.0
    %4053 = vmatpush1.msra.mxu0 0.0
    %4054 = vmatprep.subr.mxu0 0.0
    %4055 = vmatpush1.msra.mxu0 0.0
    %4056 = vmatprep.subr.mxu0 0.0
    %4057 = vmatpush1.msra.mxu0 0.0
    %4058 = vmatprep.subr.mxu0 0.0
    %4059 = vmatpush1.msra.mxu0 0.0
    %4060 = vmatprep.subr.mxu0 0.0
    %4061 = vmatpush1.msra.mxu0 0.0
    %4062 = vmatprep.subr.mxu0 0.0
    %4063 = vmatpush1.msra.mxu0 0.0
    %4064 = vmatprep.subr.mxu0 0.0
    %4065 = vmatpush1.msra.mxu0 0.0
    %4066 = vmatprep.subr.mxu0 0.0
    %4067 = vmatpush1.msra.mxu0 0.0
    %4068 = vmatprep.subr.mxu0 0.0
    %4069 = vmatpush1.msra.mxu0 0.0
    %4070 = vmatprep.subr.mxu0 0.0
    %4071 = vmatpush1.msra.mxu0 0.0
    %4072 = vmatprep.subr.mxu0 0.0
    %4073 = vmatpush1.msra.mxu0 0.0
    %4074 = vmatprep.subr.mxu0 0.0
    %4075 = vmatpush1.msra.mxu0 0.0
    %4076 = vmatprep.subr.mxu0 0.0
    %4077 = vmatpush1.msra.mxu0 0.0
    %4078 = vmatprep.subr.mxu0 0.0
    %4079 = vmatpush1.msra.mxu0 0.0
    %4080 = vmatprep.subr.mxu0 0.0
    %4081 = vmatpush1.msra.mxu0 0.0
    %4082 = vmatprep.subr.mxu0 0.0
    %4083 = vmatpush1.msra.mxu0 0.0
    %4084 = vmatprep.subr.mxu0 0.0
    %4085 = vmatpush1.msra.mxu0 0.0
    %4086 = vmatprep.subr.mxu0 0.0
    %4087 = vmatpush1.msra.mxu0 0.0
    %4088 = vmatprep.subr.mxu0 0.0
    %4089 = vmatpush1.msra.mxu0 0.0
    %4090 = vmatprep.subr.mxu0 0.0
    %4091 = vmatpush1.msra.mxu0 0.0
    %4092 = vmatprep.subr.mxu0 0.0
    %4093 = vmatpush1.msra.mxu0 0.0
    %4094 = vmatprep.subr.mxu0 0.0
    %4095 = vmatpush1.msra.mxu0 0.0
    %4096 = vmatprep.subr.mxu0 0.0
    %4097 = vmatpush1.msra.mxu0 0.0
    %4098 = vmatprep.mubr.f32.mxu0 0.0
    %4099 = vmatmul.mubr.f32.gmra.mrb[0].mxu0 %v3949
    %v4100 = vpop.f32.mrb[0].mxu0
    %v4101 = vadd.f32 0.0, %v4100
    %v4102 = vpop.f32.mrb[0].mxu0
    %v4103 = vadd.f32 0.0, %v4102
    %4104 = vdwg.mxu0
    %4105 = vmatprep.subr.mxu0 %v3961
    %4106 = vmatpush1.msra.mxu0 %v3959
    %4107 = vmatprep.subr.mxu0 0.0
    %4108 = vmatpush1.msra.mxu0 0.0
    %4109 = vmatprep.subr.mxu0 0.0
    %4110 = vmatpush1.msra.mxu0 0.0
    %4111 = vmatprep.subr.mxu0 0.0
    %4112 = vmatpush1.msra.mxu0 0.0
    %4113 = vmatprep.subr.mxu0 0.0
    %4114 = vmatpush1.msra.mxu0 0.0
    %4115 = vmatprep.subr.mxu0 0.0
    %4116 = vmatpush1.msra.mxu0 0.0
    %4117 = vmatprep.subr.mxu0 0.0
    %4118 = vmatpush1.msra.mxu0 0.0
    %4119 = vmatprep.subr.mxu0 0.0
    %4120 = vmatpush1.msra.mxu0 0.0
    %4121 = vmatprep.subr.mxu0 0.0
    %4122 = vmatpush1.msra.mxu0 0.0
    %4123 = vmatprep.subr.mxu0 0.0
    %4124 = vmatpush1.msra.mxu0 0.0
    %4125 = vmatprep.subr.mxu0 0.0
    %4126 = vmatpush1.msra.mxu0 0.0
    %4127 = vmatprep.subr.mxu0 0.0
    %4128 = vmatpush1.msra.mxu0 0.0
    %4129 = vmatprep.subr.mxu0 0.0
    %4130 = vmatpush1.msra.mxu0 0.0
    %4131 = vmatprep.subr.mxu0 0.0
    %4132 = vmatpush1.msra.mxu0 0.0
    %4133 = vmatprep.subr.mxu0 0.0
    %4134 = vmatpush1.msra.mxu0 0.0
    %4135 = vmatprep.subr.mxu0 0.0
    %4136 = vmatpush1.msra.mxu0 0.0
    %4137 = vmatprep.subr.mxu0 0.0
    %4138 = vmatpush1.msra.mxu0 0.0
    %4139 = vmatprep.subr.mxu0 0.0
    %4140 = vmatpush1.msra.mxu0 0.0
    %4141 = vmatprep.subr.mxu0 0.0
    %4142 = vmatpush1.msra.mxu0 0.0
    %4143 = vmatprep.subr.mxu0 0.0
    %4144 = vmatpush1.msra.mxu0 0.0
    %4145 = vmatprep.subr.mxu0 0.0
    %4146 = vmatpush1.msra.mxu0 0.0
    %4147 = vmatprep.subr.mxu0 0.0
    %4148 = vmatpush1.msra.mxu0 0.0
    %4149 = vmatprep.subr.mxu0 0.0
    %4150 = vmatpush1.msra.mxu0 0.0
    %4151 = vmatprep.subr.mxu0 0.0
    %4152 = vmatpush1.msra.mxu0 0.0
    %4153 = vmatprep.subr.mxu0 0.0
    %4154 = vmatpush1.msra.mxu0 0.0
    %4155 = vmatprep.subr.mxu0 0.0
    %4156 = vmatpush1.msra.mxu0 0.0
    %4157 = vmatprep.subr.mxu0 0.0
    %4158 = vmatpush1.msra.mxu0 0.0
    %4159 = vmatprep.subr.mxu0 0.0
    %4160 = vmatpush1.msra.mxu0 0.0
    %4161 = vmatprep.subr.mxu0 0.0
    %4162 = vmatpush1.msra.mxu0 0.0
    %4163 = vmatprep.subr.mxu0 0.0
    %4164 = vmatpush1.msra.mxu0 0.0
    %4165 = vmatprep.subr.mxu0 0.0
    %4166 = vmatpush1.msra.mxu0 0.0
    %4167 = vmatprep.subr.mxu0 0.0
    %4168 = vmatpush1.msra.mxu0 0.0
    %4169 = vmatprep.mubr.f32.mxu0 0.0
    %4170 = vmatmul.mubr.f32.gmra.mrb[0].mxu0 %v3949
    %v4171 = vpop.f32.mrb[0].mxu0
    %v4172 = vadd.f32 0.0, %v4171
    %v4173 = vpop.f32.mrb[0].mxu0
    %v4174 = vadd.f32 0.0, %v4173
    %4175 = vdwg.mxu0
    %v4176 = vadd.f32 %v3923, %v4030
    %v4177 = vadd.f32 %v3924, %v4032
    %v4178 = vadd.f32 %v3925, %v4101
    %v4179 = vadd.f32 %v3926, %v4103
    %v4180 = vadd.f32 %v3927, %v4172
    %v4181 = vadd.f32 %v3928, %v4174
    %s4182 = scalar_lea.vmem %s6, 28
    %v4183 = vld [vmem:[%s4182] sm:$0xf]
    %4184 = vrot.lane.b32.xlu0 %v2429, 91
    %v4185 = vpop.permute.xlu0 %4184
    %4186 = vrot.lane.b32.xlu0 %v2430, 91
    %v4187 = vpop.permute.xlu0 %4186
    %4188 = vrot.lane.b32.xlu0 %v2431, 91
    %v4189 = vpop.permute.xlu0 %4188
    %4190 = vrot.lane.b32.xlu0 %v2432, 91
    %v4191 = vpop.permute.xlu0 %4190
    %4192 = vrot.lane.b32.xlu0 %v2433, 91
    %v4193 = vpop.permute.xlu0 %4192
    %4194 = vrot.lane.b32.xlu0 %v2434, 91
    %v4195 = vpop.permute.xlu0 %4194
    %v4196 = vsel %vm1809, %v4185, %v4187
    %v4197 = vsel %vm1809, %v4187, %v4189
    %v4198 = vsel %vm1809, %v4189, %v4191
    %v4199 = vsel %vm1809, %v4191, %v4193
    %v4200 = vsel %vm1809, %v4193, %v4195
    %v4202 = vsel %vm67, %v4183, 0
    %v4204 = vsel %vm71, %v4196, 0
    %v4206 = vsel %vm71, %v4197, 0
    %v4208 = vsel %vm71, %v4198, 0
    %v4210 = vsel %vm71, %v4199, 0
    %v4212 = vsel %vm71, %v4200, 0
    %v4214 = vsel %vm71, %v4195, 0
    %4216 = vmatprep.subr.mxu0 %v4206
    %4217 = vmatpush1.msra.mxu0 %v4204
    %4218 = vmatprep.subr.mxu0 0.0
    %4219 = vmatpush1.msra.mxu0 0.0
    %4220 = vmatprep.subr.mxu0 0.0
    %4221 = vmatpush1.msra.mxu0 0.0
    %4222 = vmatprep.subr.mxu0 0.0
    %4223 = vmatpush1.msra.mxu0 0.0
    %4224 = vmatprep.subr.mxu0 0.0
    %4225 = vmatpush1.msra.mxu0 0.0
    %4226 = vmatprep.subr.mxu0 0.0
    %4227 = vmatpush1.msra.mxu0 0.0
    %4228 = vmatprep.subr.mxu0 0.0
    %4229 = vmatpush1.msra.mxu0 0.0
    %4230 = vmatprep.subr.mxu0 0.0
    %4231 = vmatpush1.msra.mxu0 0.0
    %4232 = vmatprep.subr.mxu0 0.0
    %4233 = vmatpush1.msra.mxu0 0.0
    %4234 = vmatprep.subr.mxu0 0.0
    %4235 = vmatpush1.msra.mxu0 0.0
    %4236 = vmatprep.subr.mxu0 0.0
    %4237 = vmatpush1.msra.mxu0 0.0
    %4238 = vmatprep.subr.mxu0 0.0
    %4239 = vmatpush1.msra.mxu0 0.0
    %4240 = vmatprep.subr.mxu0 0.0
    %4241 = vmatpush1.msra.mxu0 0.0
    %4242 = vmatprep.subr.mxu0 0.0
    %4243 = vmatpush1.msra.mxu0 0.0
    %4244 = vmatprep.subr.mxu0 0.0
    %4245 = vmatpush1.msra.mxu0 0.0
    %4246 = vmatprep.subr.mxu0 0.0
    %4247 = vmatpush1.msra.mxu0 0.0
    %4248 = vmatprep.subr.mxu0 0.0
    %4249 = vmatpush1.msra.mxu0 0.0
    %4250 = vmatprep.subr.mxu0 0.0
    %4251 = vmatpush1.msra.mxu0 0.0
    %4252 = vmatprep.subr.mxu0 0.0
    %4253 = vmatpush1.msra.mxu0 0.0
    %4254 = vmatprep.subr.mxu0 0.0
    %4255 = vmatpush1.msra.mxu0 0.0
    %4256 = vmatprep.subr.mxu0 0.0
    %4257 = vmatpush1.msra.mxu0 0.0
    %4258 = vmatprep.subr.mxu0 0.0
    %4259 = vmatpush1.msra.mxu0 0.0
    %4260 = vmatprep.subr.mxu0 0.0
    %4261 = vmatpush1.msra.mxu0 0.0
    %4262 = vmatprep.subr.mxu0 0.0
    %4263 = vmatpush1.msra.mxu0 0.0
    %4264 = vmatprep.subr.mxu0 0.0
    %4265 = vmatpush1.msra.mxu0 0.0
    %4266 = vmatprep.subr.mxu0 0.0
    %4267 = vmatpush1.msra.mxu0 0.0
    %4268 = vmatprep.subr.mxu0 0.0
    %4269 = vmatpush1.msra.mxu0 0.0
    %4270 = vmatprep.subr.mxu0 0.0
    %4271 = vmatpush1.msra.mxu0 0.0
    %4272 = vmatprep.subr.mxu0 0.0
    %4273 = vmatpush1.msra.mxu0 0.0
    %4274 = vmatprep.subr.mxu0 0.0
    %4275 = vmatpush1.msra.mxu0 0.0
    %4276 = vmatprep.subr.mxu0 0.0
    %4277 = vmatpush1.msra.mxu0 0.0
    %4278 = vmatprep.subr.mxu0 0.0
    %4279 = vmatpush1.msra.mxu0 0.0
    %4280 = vmatprep.mubr.f32.mxu0 0.0
    %4281 = vmatmul.mubr.f32.gmra.mrb[0].mxu0 %v4202
    %v4282 = vpop.f32.mrb[0].mxu0
    %v4283 = vadd.f32 0.0, %v4282
    %v4284 = vpop.f32.mrb[0].mxu0
    %v4285 = vadd.f32 0.0, %v4284
    %4286 = vdwg.mxu0
    %4287 = vmatprep.subr.mxu0 %v4210
    %4288 = vmatpush1.msra.mxu0 %v4208
    %4289 = vmatprep.subr.mxu0 0.0
    %4290 = vmatpush1.msra.mxu0 0.0
    %4291 = vmatprep.subr.mxu0 0.0
    %4292 = vmatpush1.msra.mxu0 0.0
    %4293 = vmatprep.subr.mxu0 0.0
    %4294 = vmatpush1.msra.mxu0 0.0
    %4295 = vmatprep.subr.mxu0 0.0
    %4296 = vmatpush1.msra.mxu0 0.0
    %4297 = vmatprep.subr.mxu0 0.0
    %4298 = vmatpush1.msra.mxu0 0.0
    %4299 = vmatprep.subr.mxu0 0.0
    %4300 = vmatpush1.msra.mxu0 0.0
    %4301 = vmatprep.subr.mxu0 0.0
    %4302 = vmatpush1.msra.mxu0 0.0
    %4303 = vmatprep.subr.mxu0 0.0
    %4304 = vmatpush1.msra.mxu0 0.0
    %4305 = vmatprep.subr.mxu0 0.0
    %4306 = vmatpush1.msra.mxu0 0.0
    %4307 = vmatprep.subr.mxu0 0.0
    %4308 = vmatpush1.msra.mxu0 0.0
    %4309 = vmatprep.subr.mxu0 0.0
    %4310 = vmatpush1.msra.mxu0 0.0
    %4311 = vmatprep.subr.mxu0 0.0
    %4312 = vmatpush1.msra.mxu0 0.0
    %4313 = vmatprep.subr.mxu0 0.0
    %4314 = vmatpush1.msra.mxu0 0.0
    %4315 = vmatprep.subr.mxu0 0.0
    %4316 = vmatpush1.msra.mxu0 0.0
    %4317 = vmatprep.subr.mxu0 0.0
    %4318 = vmatpush1.msra.mxu0 0.0
    %4319 = vmatprep.subr.mxu0 0.0
    %4320 = vmatpush1.msra.mxu0 0.0
    %4321 = vmatprep.subr.mxu0 0.0
    %4322 = vmatpush1.msra.mxu0 0.0
    %4323 = vmatprep.subr.mxu0 0.0
    %4324 = vmatpush1.msra.mxu0 0.0
    %4325 = vmatprep.subr.mxu0 0.0
    %4326 = vmatpush1.msra.mxu0 0.0
    %4327 = vmatprep.subr.mxu0 0.0
    %4328 = vmatpush1.msra.mxu0 0.0
    %4329 = vmatprep.subr.mxu0 0.0
    %4330 = vmatpush1.msra.mxu0 0.0
    %4331 = vmatprep.subr.mxu0 0.0
    %4332 = vmatpush1.msra.mxu0 0.0
    %4333 = vmatprep.subr.mxu0 0.0
    %4334 = vmatpush1.msra.mxu0 0.0
    %4335 = vmatprep.subr.mxu0 0.0
    %4336 = vmatpush1.msra.mxu0 0.0
    %4337 = vmatprep.subr.mxu0 0.0
    %4338 = vmatpush1.msra.mxu0 0.0
    %4339 = vmatprep.subr.mxu0 0.0
    %4340 = vmatpush1.msra.mxu0 0.0
    %4341 = vmatprep.subr.mxu0 0.0
    %4342 = vmatpush1.msra.mxu0 0.0
    %4343 = vmatprep.subr.mxu0 0.0
    %4344 = vmatpush1.msra.mxu0 0.0
    %4345 = vmatprep.subr.mxu0 0.0
    %4346 = vmatpush1.msra.mxu0 0.0
    %4347 = vmatprep.subr.mxu0 0.0
    %4348 = vmatpush1.msra.mxu0 0.0
    %4349 = vmatprep.subr.mxu0 0.0
    %4350 = vmatpush1.msra.mxu0 0.0
    %4351 = vmatprep.mubr.f32.mxu0 0.0
    %4352 = vmatmul.mubr.f32.gmra.mrb[0].mxu0 %v4202
    %v4353 = vpop.f32.mrb[0].mxu0
    %v4354 = vadd.f32 0.0, %v4353
    %v4355 = vpop.f32.mrb[0].mxu0
    %v4356 = vadd.f32 0.0, %v4355
    %4357 = vdwg.mxu0
    %4358 = vmatprep.subr.mxu0 %v4214
    %4359 = vmatpush1.msra.mxu0 %v4212
    %4360 = vmatprep.subr.mxu0 0.0
    %4361 = vmatpush1.msra.mxu0 0.0
    %4362 = vmatprep.subr.mxu0 0.0
    %4363 = vmatpush1.msra.mxu0 0.0
    %4364 = vmatprep.subr.mxu0 0.0
    %4365 = vmatpush1.msra.mxu0 0.0
    %4366 = vmatprep.subr.mxu0 0.0
    %4367 = vmatpush1.msra.mxu0 0.0
    %4368 = vmatprep.subr.mxu0 0.0
    %4369 = vmatpush1.msra.mxu0 0.0
    %4370 = vmatprep.subr.mxu0 0.0
    %4371 = vmatpush1.msra.mxu0 0.0
    %4372 = vmatprep.subr.mxu0 0.0
    %4373 = vmatpush1.msra.mxu0 0.0
    %4374 = vmatprep.subr.mxu0 0.0
    %4375 = vmatpush1.msra.mxu0 0.0
    %4376 = vmatprep.subr.mxu0 0.0
    %4377 = vmatpush1.msra.mxu0 0.0
    %4378 = vmatprep.subr.mxu0 0.0
    %4379 = vmatpush1.msra.mxu0 0.0
    %4380 = vmatprep.subr.mxu0 0.0
    %4381 = vmatpush1.msra.mxu0 0.0
    %4382 = vmatprep.subr.mxu0 0.0
    %4383 = vmatpush1.msra.mxu0 0.0
    %4384 = vmatprep.subr.mxu0 0.0
    %4385 = vmatpush1.msra.mxu0 0.0
    %4386 = vmatprep.subr.mxu0 0.0
    %4387 = vmatpush1.msra.mxu0 0.0
    %4388 = vmatprep.subr.mxu0 0.0
    %4389 = vmatpush1.msra.mxu0 0.0
    %4390 = vmatprep.subr.mxu0 0.0
    %4391 = vmatpush1.msra.mxu0 0.0
    %4392 = vmatprep.subr.mxu0 0.0
    %4393 = vmatpush1.msra.mxu0 0.0
    %4394 = vmatprep.subr.mxu0 0.0
    %4395 = vmatpush1.msra.mxu0 0.0
    %4396 = vmatprep.subr.mxu0 0.0
    %4397 = vmatpush1.msra.mxu0 0.0
    %4398 = vmatprep.subr.mxu0 0.0
    %4399 = vmatpush1.msra.mxu0 0.0
    %4400 = vmatprep.subr.mxu0 0.0
    %4401 = vmatpush1.msra.mxu0 0.0
    %4402 = vmatprep.subr.mxu0 0.0
    %4403 = vmatpush1.msra.mxu0 0.0
    %4404 = vmatprep.subr.mxu0 0.0
    %4405 = vmatpush1.msra.mxu0 0.0
    %4406 = vmatprep.subr.mxu0 0.0
    %4407 = vmatpush1.msra.mxu0 0.0
    %4408 = vmatprep.subr.mxu0 0.0
    %4409 = vmatpush1.msra.mxu0 0.0
    %4410 = vmatprep.subr.mxu0 0.0
    %4411 = vmatpush1.msra.mxu0 0.0
    %4412 = vmatprep.subr.mxu0 0.0
    %4413 = vmatpush1.msra.mxu0 0.0
    %4414 = vmatprep.subr.mxu0 0.0
    %4415 = vmatpush1.msra.mxu0 0.0
    %4416 = vmatprep.subr.mxu0 0.0
    %4417 = vmatpush1.msra.mxu0 0.0
    %4418 = vmatprep.subr.mxu0 0.0
    %4419 = vmatpush1.msra.mxu0 0.0
    %4420 = vmatprep.subr.mxu0 0.0
    %4421 = vmatpush1.msra.mxu0 0.0
    %4422 = vmatprep.mubr.f32.mxu0 0.0
    %4423 = vmatmul.mubr.f32.gmra.mrb[0].mxu0 %v4202
    %v4424 = vpop.f32.mrb[0].mxu0
    %v4425 = vadd.f32 0.0, %v4424
    %v4426 = vpop.f32.mrb[0].mxu0
    %v4427 = vadd.f32 0.0, %v4426
    %4428 = vdwg.mxu0
    %v4429 = vadd.f32 %v4176, %v4283
    %v4430 = vadd.f32 %v4177, %v4285
    %v4431 = vadd.f32 %v4178, %v4354
    %v4432 = vadd.f32 %v4179, %v4356
    %v4433 = vadd.f32 %v4180, %v4425
    %v4434 = vadd.f32 %v4181, %v4427
    %s4435 = scalar_lea.vmem %s6, 32
    %v4436 = vld [vmem:[%s4435] sm:$0xf]
    %4437 = vrot.lane.b32.xlu0 %v2429, 90
    %v4438 = vpop.permute.xlu0 %4437
    %4439 = vrot.lane.b32.xlu0 %v2430, 90
    %v4440 = vpop.permute.xlu0 %4439
    %4441 = vrot.lane.b32.xlu0 %v2431, 90
    %v4442 = vpop.permute.xlu0 %4441
    %4443 = vrot.lane.b32.xlu0 %v2432, 90
    %v4444 = vpop.permute.xlu0 %4443
    %4445 = vrot.lane.b32.xlu0 %v2433, 90
    %v4446 = vpop.permute.xlu0 %4445
    %4447 = vrot.lane.b32.xlu0 %v2434, 90
    %v4448 = vpop.permute.xlu0 %4447
    %v4449 = vsel %vm2063, %v4438, %v4440
    %v4450 = vsel %vm2063, %v4440, %v4442
    %v4451 = vsel %vm2063, %v4442, %v4444
    %v4452 = vsel %vm2063, %v4444, %v4446
    %v4453 = vsel %vm2063, %v4446, %v4448
    %v4455 = vsel %vm67, %v4436, 0
    %v4457 = vsel %vm71, %v4449, 0
    %v4459 = vsel %vm71, %v4450, 0
    %v4461 = vsel %vm71, %v4451, 0
    %v4463 = vsel %vm71, %v4452, 0
    %v4465 = vsel %vm71, %v4453, 0
    %v4467 = vsel %vm71, %v4448, 0
    %4469 = vmatprep.subr.mxu0 %v4459
    %4470 = vmatpush1.msra.mxu0 %v4457
    %4471 = vmatprep.subr.mxu0 0.0
    %4472 = vmatpush1.msra.mxu0 0.0
    %4473 = vmatprep.subr.mxu0 0.0
    %4474 = vmatpush1.msra.mxu0 0.0
    %4475 = vmatprep.subr.mxu0 0.0
    %4476 = vmatpush1.msra.mxu0 0.0
    %4477 = vmatprep.subr.mxu0 0.0
    %4478 = vmatpush1.msra.mxu0 0.0
    %4479 = vmatprep.subr.mxu0 0.0
    %4480 = vmatpush1.msra.mxu0 0.0
    %4481 = vmatprep.subr.mxu0 0.0
    %4482 = vmatpush1.msra.mxu0 0.0
    %4483 = vmatprep.subr.mxu0 0.0
    %4484 = vmatpush1.msra.mxu0 0.0
    %4485 = vmatprep.subr.mxu0 0.0
    %4486 = vmatpush1.msra.mxu0 0.0
    %4487 = vmatprep.subr.mxu0 0.0
    %4488 = vmatpush1.msra.mxu0 0.0
    %4489 = vmatprep.subr.mxu0 0.0
    %4490 = vmatpush1.msra.mxu0 0.0
    %4491 = vmatprep.subr.mxu0 0.0
    %4492 = vmatpush1.msra.mxu0 0.0
    %4493 = vmatprep.subr.mxu0 0.0
    %4494 = vmatpush1.msra.mxu0 0.0
    %4495 = vmatprep.subr.mxu0 0.0
    %4496 = vmatpush1.msra.mxu0 0.0
    %4497 = vmatprep.subr.mxu0 0.0
    %4498 = vmatpush1.msra.mxu0 0.0
    %4499 = vmatprep.subr.mxu0 0.0
    %4500 = vmatpush1.msra.mxu0 0.0
    %4501 = vmatprep.subr.mxu0 0.0
    %4502 = vmatpush1.msra.mxu0 0.0
    %4503 = vmatprep.subr.mxu0 0.0
    %4504 = vmatpush1.msra.mxu0 0.0
    %4505 = vmatprep.subr.mxu0 0.0
    %4506 = vmatpush1.msra.mxu0 0.0
    %4507 = vmatprep.subr.mxu0 0.0
    %4508 = vmatpush1.msra.mxu0 0.0
    %4509 = vmatprep.subr.mxu0 0.0
    %4510 = vmatpush1.msra.mxu0 0.0
    %4511 = vmatprep.subr.mxu0 0.0
    %4512 = vmatpush1.msra.mxu0 0.0
    %4513 = vmatprep.subr.mxu0 0.0
    %4514 = vmatpush1.msra.mxu0 0.0
    %4515 = vmatprep.subr.mxu0 0.0
    %4516 = vmatpush1.msra.mxu0 0.0
    %4517 = vmatprep.subr.mxu0 0.0
    %4518 = vmatpush1.msra.mxu0 0.0
    %4519 = vmatprep.subr.mxu0 0.0
    %4520 = vmatpush1.msra.mxu0 0.0
    %4521 = vmatprep.subr.mxu0 0.0
    %4522 = vmatpush1.msra.mxu0 0.0
    %4523 = vmatprep.subr.mxu0 0.0
    %4524 = vmatpush1.msra.mxu0 0.0
    %4525 = vmatprep.subr.mxu0 0.0
    %4526 = vmatpush1.msra.mxu0 0.0
    %4527 = vmatprep.subr.mxu0 0.0
    %4528 = vmatpush1.msra.mxu0 0.0
    %4529 = vmatprep.subr.mxu0 0.0
    %4530 = vmatpush1.msra.mxu0 0.0
    %4531 = vmatprep.subr.mxu0 0.0
    %4532 = vmatpush1.msra.mxu0 0.0
    %4533 = vmatprep.mubr.f32.mxu0 0.0
    %4534 = vmatmul.mubr.f32.gmra.mrb[0].mxu0 %v4455
    %v4535 = vpop.f32.mrb[0].mxu0
    %v4536 = vadd.f32 0.0, %v4535
    %v4537 = vpop.f32.mrb[0].mxu0
    %v4538 = vadd.f32 0.0, %v4537
    %4539 = vdwg.mxu0
    %4540 = vmatprep.subr.mxu0 %v4463
    %4541 = vmatpush1.msra.mxu0 %v4461
    %4542 = vmatprep.subr.mxu0 0.0
    %4543 = vmatpush1.msra.mxu0 0.0
    %4544 = vmatprep.subr.mxu0 0.0
    %4545 = vmatpush1.msra.mxu0 0.0
    %4546 = vmatprep.subr.mxu0 0.0
    %4547 = vmatpush1.msra.mxu0 0.0
    %4548 = vmatprep.subr.mxu0 0.0
    %4549 = vmatpush1.msra.mxu0 0.0
    %4550 = vmatprep.subr.mxu0 0.0
    %4551 = vmatpush1.msra.mxu0 0.0
    %4552 = vmatprep.subr.mxu0 0.0
    %4553 = vmatpush1.msra.mxu0 0.0
    %4554 = vmatprep.subr.mxu0 0.0
    %4555 = vmatpush1.msra.mxu0 0.0
    %4556 = vmatprep.subr.mxu0 0.0
    %4557 = vmatpush1.msra.mxu0 0.0
    %4558 = vmatprep.subr.mxu0 0.0
    %4559 = vmatpush1.msra.mxu0 0.0
    %4560 = vmatprep.subr.mxu0 0.0
    %4561 = vmatpush1.msra.mxu0 0.0
    %4562 = vmatprep.subr.mxu0 0.0
    %4563 = vmatpush1.msra.mxu0 0.0
    %4564 = vmatprep.subr.mxu0 0.0
    %4565 = vmatpush1.msra.mxu0 0.0
    %4566 = vmatprep.subr.mxu0 0.0
    %4567 = vmatpush1.msra.mxu0 0.0
    %4568 = vmatprep.subr.mxu0 0.0
    %4569 = vmatpush1.msra.mxu0 0.0
    %4570 = vmatprep.subr.mxu0 0.0
    %4571 = vmatpush1.msra.mxu0 0.0
    %4572 = vmatprep.subr.mxu0 0.0
    %4573 = vmatpush1.msra.mxu0 0.0
    %4574 = vmatprep.subr.mxu0 0.0
    %4575 = vmatpush1.msra.mxu0 0.0
    %4576 = vmatprep.subr.mxu0 0.0
    %4577 = vmatpush1.msra.mxu0 0.0
    %4578 = vmatprep.subr.mxu0 0.0
    %4579 = vmatpush1.msra.mxu0 0.0
    %4580 = vmatprep.subr.mxu0 0.0
    %4581 = vmatpush1.msra.mxu0 0.0
    %4582 = vmatprep.subr.mxu0 0.0
    %4583 = vmatpush1.msra.mxu0 0.0
    %4584 = vmatprep.subr.mxu0 0.0
    %4585 = vmatpush1.msra.mxu0 0.0
    %4586 = vmatprep.subr.mxu0 0.0
    %4587 = vmatpush1.msra.mxu0 0.0
    %4588 = vmatprep.subr.mxu0 0.0
    %4589 = vmatpush1.msra.mxu0 0.0
    %4590 = vmatprep.subr.mxu0 0.0
    %4591 = vmatpush1.msra.mxu0 0.0
    %4592 = vmatprep.subr.mxu0 0.0
    %4593 = vmatpush1.msra.mxu0 0.0
    %4594 = vmatprep.subr.mxu0 0.0
    %4595 = vmatpush1.msra.mxu0 0.0
    %4596 = vmatprep.subr.mxu0 0.0
    %4597 = vmatpush1.msra.mxu0 0.0
    %4598 = vmatprep.subr.mxu0 0.0
    %4599 = vmatpush1.msra.mxu0 0.0
    %4600 = vmatprep.subr.mxu0 0.0
    %4601 = vmatpush1.msra.mxu0 0.0
    %4602 = vmatprep.subr.mxu0 0.0
    %4603 = vmatpush1.msra.mxu0 0.0
    %4604 = vmatprep.mubr.f32.mxu0 0.0
    %4605 = vmatmul.mubr.f32.gmra.mrb[0].mxu0 %v4455
    %v4606 = vpop.f32.mrb[0].mxu0
    %v4607 = vadd.f32 0.0, %v4606
    %v4608 = vpop.f32.mrb[0].mxu0
    %v4609 = vadd.f32 0.0, %v4608
    %4610 = vdwg.mxu0
    %4611 = vmatprep.subr.mxu0 %v4467
    %4612 = vmatpush1.msra.mxu0 %v4465
    %4613 = vmatprep.subr.mxu0 0.0
    %4614 = vmatpush1.msra.mxu0 0.0
    %4615 = vmatprep.subr.mxu0 0.0
    %4616 = vmatpush1.msra.mxu0 0.0
    %4617 = vmatprep.subr.mxu0 0.0
    %4618 = vmatpush1.msra.mxu0 0.0
    %4619 = vmatprep.subr.mxu0 0.0
    %4620 = vmatpush1.msra.mxu0 0.0
    %4621 = vmatprep.subr.mxu0 0.0
    %4622 = vmatpush1.msra.mxu0 0.0
    %4623 = vmatprep.subr.mxu0 0.0
    %4624 = vmatpush1.msra.mxu0 0.0
    %4625 = vmatprep.subr.mxu0 0.0
    %4626 = vmatpush1.msra.mxu0 0.0
    %4627 = vmatprep.subr.mxu0 0.0
    %4628 = vmatpush1.msra.mxu0 0.0
    %4629 = vmatprep.subr.mxu0 0.0
    %4630 = vmatpush1.msra.mxu0 0.0
    %4631 = vmatprep.subr.mxu0 0.0
    %4632 = vmatpush1.msra.mxu0 0.0
    %4633 = vmatprep.subr.mxu0 0.0
    %4634 = vmatpush1.msra.mxu0 0.0
    %4635 = vmatprep.subr.mxu0 0.0
    %4636 = vmatpush1.msra.mxu0 0.0
    %4637 = vmatprep.subr.mxu0 0.0
    %4638 = vmatpush1.msra.mxu0 0.0
    %4639 = vmatprep.subr.mxu0 0.0
    %4640 = vmatpush1.msra.mxu0 0.0
    %4641 = vmatprep.subr.mxu0 0.0
    %4642 = vmatpush1.msra.mxu0 0.0
    %4643 = vmatprep.subr.mxu0 0.0
    %4644 = vmatpush1.msra.mxu0 0.0
    %4645 = vmatprep.subr.mxu0 0.0
    %4646 = vmatpush1.msra.mxu0 0.0
    %4647 = vmatprep.subr.mxu0 0.0
    %4648 = vmatpush1.msra.mxu0 0.0
    %4649 = vmatprep.subr.mxu0 0.0
    %4650 = vmatpush1.msra.mxu0 0.0
    %4651 = vmatprep.subr.mxu0 0.0
    %4652 = vmatpush1.msra.mxu0 0.0
    %4653 = vmatprep.subr.mxu0 0.0
    %4654 = vmatpush1.msra.mxu0 0.0
    %4655 = vmatprep.subr.mxu0 0.0
    %4656 = vmatpush1.msra.mxu0 0.0
    %4657 = vmatprep.subr.mxu0 0.0
    %4658 = vmatpush1.msra.mxu0 0.0
    %4659 = vmatprep.subr.mxu0 0.0
    %4660 = vmatpush1.msra.mxu0 0.0
    %4661 = vmatprep.subr.mxu0 0.0
    %4662 = vmatpush1.msra.mxu0 0.0
    %4663 = vmatprep.subr.mxu0 0.0
    %4664 = vmatpush1.msra.mxu0 0.0
    %4665 = vmatprep.subr.mxu0 0.0
    %4666 = vmatpush1.msra.mxu0 0.0
    %4667 = vmatprep.subr.mxu0 0.0
    %4668 = vmatpush1.msra.mxu0 0.0
    %4669 = vmatprep.subr.mxu0 0.0
    %4670 = vmatpush1.msra.mxu0 0.0
    %4671 = vmatprep.subr.mxu0 0.0
    %4672 = vmatpush1.msra.mxu0 0.0
    %4673 = vmatprep.subr.mxu0 0.0
    %4674 = vmatpush1.msra.mxu0 0.0
    %4675 = vmatprep.mubr.f32.mxu0 0.0
    %4676 = vmatmul.mubr.f32.gmra.mrb[0].mxu0 %v4455
    %v4677 = vpop.f32.mrb[0].mxu0
    %v4678 = vadd.f32 0.0, %v4677
    %v4679 = vpop.f32.mrb[0].mxu0
    %v4680 = vadd.f32 0.0, %v4679
    %4681 = vdwg.mxu0
    %v4682 = vadd.f32 %v4429, %v4536
    %v4683 = vadd.f32 %v4430, %v4538
    %v4684 = vadd.f32 %v4431, %v4607
    %v4685 = vadd.f32 %v4432, %v4609
    %v4686 = vadd.f32 %v4433, %v4678
    %v4687 = vadd.f32 %v4434, %v4680
    %v4688 = vld [vmem:[%s7] sm:$0xf]
    %4690 = vset.pattern.permute.xlu0 0
    %4691 = vperm.xlu0 %4690, %v4688
    %v4692 = vpop.permute.xlu0 %4691
    %v4694 = vadd.f32 %v4682, %v4692
    %v4695 = vadd.f32 %v4683, %v4692
    %v4696 = vadd.f32 %v4684, %v4692
    %v4697 = vadd.f32 %v4685, %v4692
    %v4698 = vadd.f32 %v4686, %v4692
    %v4699 = vadd.f32 %v4687, %v4692
    %v4706 = vcombine.low %v4694, %v4695
    %v4707 = vcombine.low %v4696, %v4697
    %v4708 = vcombine.low %v4698, %v4699
    %4709 = vrot.lane.b32.xlu0 %v4706, 38
    %v4710 = vpop.permute.xlu0 %4709
    %4711 = vrot.lane.b32.xlu0 %v4707, 38
    %v4712 = vpop.permute.xlu0 %4711
    %4713 = vrot.lane.b32.xlu0 %v4708, 38
    %v4714 = vpop.permute.xlu0 %4713
    %v4715 = vrot.slane %v4710, 4
    %v4716 = vrot.slane %v4712, 4
    %v4717 = vrot.slane %v4714, 4
    %vm4718 = vcmask 310272
    %v4719 = vsel %vm4718, %v4715, %v4710
    %v4720 = vsel %vm71, %v4715, %v4716
    %v4721 = vsel %vm4718, %v4720, %v4712
    %v4722 = vsel %vm71, %v4716, %v4717
    %v4723 = vsel %vm4718, %v4722, %v4714
    %v4727 = vadd.f32 %v37, %v4719
    %v4728 = vadd.f32 %v38, %v4721
    %v4729 = vadd.f32 %v39, %v4723
    %v4730 = vcombine.low %v2319, %v2323
    %v4731 = vcombine.low %v2327, %v2331
    %v4732 = vcombine.low %v2335, %v2339
    %4733 = vrot.lane.b32.xlu0 %v4730, 19
    %v4734 = vpop.permute.xlu0 %4733
    %4735 = vrot.lane.b32.xlu0 %v4731, 19
    %v4736 = vpop.permute.xlu0 %4735
    %4737 = vrot.lane.b32.xlu0 %v4732, 19
    %v4738 = vpop.permute.xlu0 %4737
    %v4739 = vrot.slane %v4734, 4
    %v4740 = vrot.slane %v4736, 4
    %v4741 = vrot.slane %v4738, 4
    %vm4742 = vcmask 154624
    %v4743 = vsel %vm4742, %v4739, %v4734
    %v4744 = vsel %vm71, %v4739, %v4740
    %v4745 = vsel %vm4742, %v4744, %v4736
    %v4746 = vsel %vm71, %v4740, %v4741
    %v4747 = vsel %vm4742, %v4746, %v4738
    %v4751 = vmul.f32 %v4727, %v4743
    %v4752 = vmul.f32 %v4728, %v4745
    %v4753 = vmul.f32 %v4729, %v4747
    %v4757 = vcombine.high %v4751, %v4751
    %v4758 = vcombine.high %v4752, %v4752
    %v4759 = vcombine.high %v4753, %v4753
    %4760 = vrot.lane.b32.xlu0 %v4751, 90
    %v4761 = vpop.permute.xlu0 %4760
    %4762 = vrot.lane.b32.xlu0 %v4757, 90
    %v4763 = vpop.permute.xlu0 %4762
    %4764 = vrot.lane.b32.xlu0 %v4752, 90
    %v4765 = vpop.permute.xlu0 %4764
    %4766 = vrot.lane.b32.xlu0 %v4758, 90
    %v4767 = vpop.permute.xlu0 %4766
    %4768 = vrot.lane.b32.xlu0 %v4753, 90
    %v4769 = vpop.permute.xlu0 %4768
    %4770 = vrot.lane.b32.xlu0 %v4759, 90
    %v4771 = vpop.permute.xlu0 %4770
    %v4772 = vsel %vm2063, %v4761, %v4763
    %v4773 = vsel %vm2063, %v4763, %v4765
    %v4774 = vsel %vm2063, %v4765, %v4767
    %v4775 = vsel %vm2063, %v4767, %v4769
    %v4776 = vsel %vm2063, %v4769, %v4771
    %v4783 = vsel %vm71, %v4772, 0.0
    %v4784 = vsel %vm71, %v4773, 0.0
    %v4785 = vadd.f32 %v4783, %v4784
    %v4786 = vsel %vm71, %v4774, 0.0
    %v4787 = vadd.f32 %v4785, %v4786
    %v4788 = vsel %vm71, %v4775, 0.0
    %v4789 = vadd.f32 %v4787, %v4788
    %v4790 = vsel %vm71, %v4776, 0.0
    %v4791 = vadd.f32 %v4789, %v4790
    %vm4792 = vcmask 60416
    %v4793 = vsel %vm4792, %v4771, 0.0
    %v4794 = vadd.f32 %v4791, %v4793
    %4795 = vadd.xlane.f32.xlu0 %v4794
    %v4796 = vpop.xlane.xlu0 %4795
    %v4797 = vmul.f32 %v4751, %v4727
    %v4798 = vmul.f32 %v4752, %v4728
    %v4799 = vmul.f32 %v4753, %v4729
    %v4803 = vcombine.high %v4797, %v4797
    %v4804 = vcombine.high %v4798, %v4798
    %v4805 = vcombine.high %v4799, %v4799
    %4806 = vrot.lane.b32.xlu0 %v4797, 90
    %v4807 = vpop.permute.xlu0 %4806
    %4808 = vrot.lane.b32.xlu0 %v4803, 90
    %v4809 = vpop.permute.xlu0 %4808
    %4810 = vrot.lane.b32.xlu0 %v4798, 90
    %v4811 = vpop.permute.xlu0 %4810
    %4812 = vrot.lane.b32.xlu0 %v4804, 90
    %v4813 = vpop.permute.xlu0 %4812
    %4814 = vrot.lane.b32.xlu0 %v4799, 90
    %v4815 = vpop.permute.xlu0 %4814
    %4816 = vrot.lane.b32.xlu0 %v4805, 90
    %v4817 = vpop.permute.xlu0 %4816
    %v4818 = vsel %vm2063, %v4807, %v4809
    %v4819 = vsel %vm2063, %v4809, %v4811
    %v4820 = vsel %vm2063, %v4811, %v4813
    %v4821 = vsel %vm2063, %v4813, %v4815
    %v4822 = vsel %vm2063, %v4815, %v4817
    %v4829 = vsel %vm71, %v4818, 0.0
    %v4830 = vsel %vm71, %v4819, 0.0
    %v4831 = vadd.f32 %v4829, %v4830
    %v4832 = vsel %vm71, %v4820, 0.0
    %v4833 = vadd.f32 %v4831, %v4832
    %v4834 = vsel %vm71, %v4821, 0.0
    %v4835 = vadd.f32 %v4833, %v4834
    %v4836 = vsel %vm71, %v4822, 0.0
    %v4837 = vadd.f32 %v4835, %v4836
    %v4838 = vsel %vm4792, %v4817, 0.0
    %v4839 = vadd.f32 %v4837, %v4838
    %4840 = vadd.xlane.f32.xlu0 %v4839
    %v4841 = vpop.xlane.xlu0 %4840
    %v4842 = vmul.f32 %v4796, %v2385
    %v4843 = vmul.f32 %v4841, %v2385
    %v4844 = vmul.f32 %v4842, %v4842
    %v4845 = vsub.f32 %v4843, %v4844
    %v4846 = vadd.f32 %v4845, 1e-05
    %v4847 = vrsqrt.pop %v4846
    %v4850 = vunpack.c.l.s4 839922192
    %v4851 = vunpack.c.0.s8 %v4850
    %v4852 = vlaneseq
    %v4853 = vshrl.u32 %v4852, 7
    %v4854 = vsub.s32 %v4851, %v4853
    %v4855 = vrot.slane %v4842, %v4854
    %v4857 = vsub.f32 %v4727, %v4855
    %v4858 = vsub.f32 %v4728, %v4855
    %v4859 = vsub.f32 %v4729, %v4855
    %v4860 = vld [vmem:[%s8] sm:$0xf]
    %v4861 = vmul.f32 %v4847, %v4860
    %4863 = vset.pattern.permute.xlu0 0
    %4864 = vperm.xlu0 %4863, %v4861
    %v4865 = vpop.permute.xlu0 %4864
    %v4867 = vunpack.c.l.s4 839922192
    %v4868 = vunpack.c.0.s8 %v4867
    %v4869 = vlaneseq
    %v4870 = vshrl.u32 %v4869, 7
    %v4871 = vsub.s32 %v4868, %v4870
    %v4872 = vrot.slane %v4865, %v4871
    %v4874 = vmul.f32 %v4857, %v4872
    %v4875 = vmul.f32 %v4858, %v4872
    %v4876 = vmul.f32 %v4859, %v4872
    %v4877 = vld [vmem:[%s9] sm:$0xf]
    %4879 = vset.pattern.permute.xlu0 0
    %4880 = vperm.xlu0 %4879, %v4877
    %v4881 = vpop.permute.xlu0 %4880
    %v4883 = vunpack.c.l.s4 839922192
    %v4884 = vunpack.c.0.s8 %v4883
    %v4885 = vlaneseq
    %v4886 = vshrl.u32 %v4885, 7
    %v4887 = vsub.s32 %v4884, %v4886
    %v4888 = vrot.slane %v4881, %v4887
    %v4890 = vadd.f32 %v4874, %v4888
    %v4891 = vadd.f32 %v4875, %v4888
    %v4892 = vadd.f32 %v4876, %v4888
    %v4893 = vmax.f32 %v4890, 0.0
    %v4894 = vmax.f32 %v4891, 0.0
    %v4895 = vmax.f32 %v4892, 0.0
    %4899 = vrot.lane.b32.xlu0 %v4893, 90
    %v4900 = vpop.permute.xlu0 %4899
    %4901 = vrot.lane.b32.xlu0 %v4894, 90
    %v4902 = vpop.permute.xlu0 %4901
    %4903 = vrot.lane.b32.xlu0 %v4895, 90
    %v4904 = vpop.permute.xlu0 %4903
    %v4905 = vrot.slane %v4900, 4
    %v4906 = vrot.slane %v4902, 4
    %v4907 = vrot.slane %v4904, 4
    %v4908 = vsel %vm71, %v4905, %v4906
    %v4909 = vsel %vm2063, %v4900, %v4908
    %v4910 = vsel %vm71, %v4906, %v4907
    %v4911 = vsel %vm2063, %v4902, %v4910
    %v4912 = vsel %vm2063, %v4904, %v4907
    %4916 = vst [vmem:[#allocation2] sm:$0xff] %v4909
    %4917 = vst [vmem:[#allocation2 + $0x8] sm:$0xff] %v4911
    %vm4918 = vcmask 64516
    %vm4919 = vmor %vm4918, %vm71
    %4920 = vst.msk [vmem:[#allocation2 + $0x10] sm:$0xff] %vm4919, %v4912
    // Predicated region
    $region42: #{tpu_custom_call.1} parent=1 // pred_check
      _
    $region43: #{tpu_custom_call.1} parent=1 // pred_check_branch
      %4922 = sbr.rel (0) target = $region45
    $region44: #{tpu_custom_call.1} parent=1 // pred_region
      %s4924 = ssub.s32 384, 384
      %4925 = vsyncadd [#allocation3], %s4924
      %s4927 = sshll.u32 [#allocation2], 4
      %s4928 = int_to_ptr.vmem [resolvable:$true] %s4927
      %4930 = dma.vmem_to_hbm [thread:$0]  %s4928, 384, %s10, [#allocation3]
    $region45: #{tpu_custom_call.1} parent=1 // pred_fallthru
      _
    // Predicated region
    $region46: #{tpu_custom_call.1} parent=1 // pred_check
      _
    $region47: #{tpu_custom_call.1} parent=1 // pred_check_branch
      %4932 = sbr.rel (0) target = $region49
    $region48: #{tpu_custom_call.1} parent=1 // pred_region
      %4933 = dma.done [#allocation3], 384
    $region49: #{tpu_custom_call.1} parent=1 // pred_fallthru
      _
    %4934 = vsyncpa [#allocation3], 1

</llo_original>
